<compile_context>
chip_gen: v7x
topology: tpu7x:2x2x1
jax: 0.10.0
libtpu: 0.0.40
codegen_flags: <defaults>
</compile_context>

<pallas_src>
import functools
import math

import jax
import jax.numpy as jnp
from jax import lax
from jax.experimental import pallas as pl
from jax.experimental.pallas import tpu as pltpu


def _round_up(x, m):
    return ((x + m - 1) // m) * m


def _vmem_limit_bytes():
    """Generation-aware VMEM limit (~75% of physical, capped)."""
    try:
        cap = pltpu.get_tpu_info().vmem_capacity_bytes
    except Exception:
        cap = 64 * 1024 * 1024
    return min(int(cap * 3 // 4), 112 * 1024 * 1024)


def _choose_tiles(n, vmem_limit, node_tile=None, k_tile=None):
    """Pick (row tile tm, reduction tile tk, padded node count np_)."""
    tm = node_tile if node_tile is not None else min(_round_up(n, 128), 512)
    np_ = _round_up(n, tm)
    if k_tile is not None:
        tk = k_tile
    else:
        # ~35% of the VMEM budget for the double-buffered bf16 A row-slab.
        a_budget = max(int(vmem_limit * 0.35), 4 * 1024 * 1024)
        tk_cap = max(tm, (a_budget // (2 * tm * 2)) // 128 * 128)
        if np_ <= tk_cap:
            tk = np_                       # single K step, no re-streaming
        else:
            k_tiles = -(-np_ // tk_cap)
            tk = _round_up(-(-np_ // k_tiles), tm)
    lcm = tm * tk // math.gcd(tm, tk)
    np_ = _round_up(n, lcm)
    return tm, tk, np_


# ---------------------------------------------------------------------------
# Kernel 1: XW = X @ W   (the GCNConv "lin" step; trivially cheap)
# ---------------------------------------------------------------------------
def xw_kernel(x_ref, w_ref, o_ref):
    o_ref[...] = jnp.dot(x_ref[...], w_ref[...],
                         preferred_element_type=jnp.float32).astype(o_ref.dtype)


# ---------------------------------------------------------------------------
# Kernel 2: conv1 aggregation fused with conv2's lin step.
#   out[i] = ReLU(A[i, :] @ XW1 + b1) @ W2        (H1 never written to HBM)
# grid = (row_tiles, k_tiles); XW1 is fully VMEM-resident (constant index map)
# and sliced in-kernel, so it is not re-streamed per row tile.
# ---------------------------------------------------------------------------
def gcn_agg_matmul_kernel(a_ref, xw_ref, b_ref, wnext_ref, o_ref, acc_ref, *, tk):
    k = pl.program_id(1)

    @pl.when(k == 0)
    def _init():
        acc_ref[...] = jnp.zeros_like(acc_ref)

    start = pl.multiple_of(k * tk, 128)
    acc_ref[...] += jnp.dot(a_ref[...], xw_ref[pl.ds(start, tk), :],
                            preferred_element_type=jnp.float32)

    @pl.when(k == pl.num_programs(1) - 1)
    def _finalize():
        h = jnp.maximum(acc_ref[...] + b_ref[...], 0.0)      # bias + ReLU, f32
        # (dropout p=0.2: identity at eval time)
        o_ref[...] = jnp.dot(h.astype(jnp.bfloat16), wnext_ref[...],
                             preferred_element_type=jnp.float32).astype(o_ref.dtype)


# ---------------------------------------------------------------------------
# Kernel 3: conv2 aggregation + global_mean_pool + MLP classifier + log_softmax.
#   h2[i] = ReLU(A[i, :] @ XW2 + b2)   (stays in VMEM)
#   pooled += P[:, i] @ h2[i]          (row axis is a reduction -> "arbitrary")
#   at last grid point: classifier + masked log_softmax -> out
# ---------------------------------------------------------------------------
def gcn_agg_pool_classify_kernel(a_ref, xw_ref, b_ref, p_ref,
                                 wc1_ref, bc1_ref, wc2_ref, bc2_ref,
                                 out_ref, acc_ref, pooled_ref,
                                 *, tk, num_classes):
    i = pl.program_id(0)
    k = pl.program_id(1)

    @pl.when((i == 0) & (k == 0))
    def _init_pool():
        pooled_ref[...] = jnp.zeros_like(pooled_ref)

    @pl.when(k == 0)
    def _init_acc():
        acc_ref[...] = jnp.zeros_like(acc_ref)

    start = pl.multiple_of(k * tk, 128)
    acc_ref[...] += jnp.dot(a_ref[...], xw_ref[pl.ds(start, tk), :],
                            preferred_element_type=jnp.float32)

    @pl.when(k == pl.num_programs(1) - 1)
    def _row_finalize():
        h2 = jnp.maximum(acc_ref[...] + b_ref[...], 0.0)      # (tm, hp) f32
        pooled_ref[...] += jnp.dot(p_ref[...], h2,
                                   preferred_element_type=jnp.float32)

        @pl.when(i == pl.num_programs(0) - 1)
        def _classify():
            z = jnp.dot(pooled_ref[...].astype(jnp.bfloat16), wc1_ref[...],
                        preferred_element_type=jnp.float32) + bc1_ref[...]
            z = jnp.maximum(z, 0.0)
            # (dropout p=0.5: identity at eval time)
            logits = jnp.dot(z.astype(jnp.bfloat16), wc2_ref[...],
                             preferred_element_type=jnp.float32) + bc2_ref[...]
            col = lax.broadcasted_iota(jnp.int32, logits.shape, 1)
            logits = jnp.where(col < num_classes, logits, -1e30)
            m = jnp.max(logits, axis=-1, keepdims=True)
            shifted = logits - m
            lse = jnp.log(jnp.sum(jnp.exp(shifted), axis=-1, keepdims=True))
            out_ref[...] = shifted - lse


# ---------------------------------------------------------------------------
# pallas_call wrappers
# ---------------------------------------------------------------------------
def _xw(x, w, *, tm, vmem_limit):
    np_, din = x.shape
    hp = w.shape[1]
    cost = pl.CostEstimate(flops=2 * np_ * din * hp, transcendentals=0,
                           bytes_accessed=2 * (np_ * din + din * hp + np_ * hp))
    return pl.pallas_call(
        xw_kernel,
        out_shape=jax.ShapeDtypeStruct((np_, hp), jnp.bfloat16),
        grid=(np_ // tm,),
        in_specs=[pl.BlockSpec((tm, din), lambda i: (i, 0)),
                  pl.BlockSpec(w.shape, lambda i: (0, 0))],
        out_specs=pl.BlockSpec((tm, hp), lambda i: (i, 0)),
        compiler_params=pltpu.CompilerParams(
            dimension_semantics=("parallel",), vmem_limit_bytes=vmem_limit),
        cost_estimate=cost,
    )(x, w)


def _gcn_agg_matmul(a, xw, b, wnext, *, tm, tk, vmem_limit):
    np_ = a.shape[0]
    hp = xw.shape[1]
    dout = wnext.shape[1]
    cost = pl.CostEstimate(
        flops=2 * np_ * np_ * hp + 2 * np_ * hp * dout,
        transcendentals=0,
        bytes_accessed=2 * (np_ * np_ + np_ * hp + np_ * dout + wnext.size)
        + 4 * b.size,
    )
    return pl.pallas_call(
        functools.partial(gcn_agg_matmul_kernel, tk=tk),
        out_shape=jax.ShapeDtypeStruct((np_, dout), jnp.bfloat16),
        grid=(np_ // tm, np_ // tk),
        in_specs=[
            pl.BlockSpec((tm, tk), lambda i, k: (i, k)),
            pl.BlockSpec(xw.shape, lambda i, k: (0, 0)),   # VMEM-resident, no re-stream
            pl.BlockSpec(b.shape, lambda i, k: (0, 0)),
            pl.BlockSpec(wnext.shape, lambda i, k: (0, 0)),
        ],
        out_specs=pl.BlockSpec((tm, dout), lambda i, k: (i, 0)),
        scratch_shapes=[pltpu.VMEM((tm, hp), jnp.float32)],
        compiler_params=pltpu.CompilerParams(
            dimension_semantics=("parallel", "arbitrary"),
            vmem_limit_bytes=vmem_limit),
        cost_estimate=cost,
    )(a, xw, b, wnext)


def _gcn_agg_pool_classify(a, xw, b, pmat, wc1, bc1, wc2, bc2, *, tm, tk,
                           num_classes, vmem_limit):
    np_ = a.shape[0]
    hp = xw.shape[1]
    gp = pmat.shape[0]
    cp = wc2.shape[1]
    cost = pl.CostEstimate(
        flops=2 * np_ * np_ * hp + 2 * gp * np_ * hp
        + 2 * gp * hp * hp + 2 * gp * hp * cp,
        transcendentals=gp * cp,
        bytes_accessed=2 * (np_ * np_ + np_ * hp + wc1.size + wc2.size)
        + 4 * (gp * np_ + gp * cp + b.size + bc1.size + bc2.size),
    )
    return pl.pallas_call(
        functools.partial(gcn_agg_pool_classify_kernel, tk=tk,
                          num_classes=num_classes),
        out_shape=jax.ShapeDtypeStruct((gp, cp), jnp.float32),
        grid=(np_ // tm, np_ // tk),
        in_specs=[
            pl.BlockSpec((tm, tk), lambda i, k: (i, k)),
            pl.BlockSpec(xw.shape, lambda i, k: (0, 0)),
            pl.BlockSpec(b.shape, lambda i, k: (0, 0)),
            pl.BlockSpec((gp, tm), lambda i, k: (0, i)),
            pl.BlockSpec(wc1.shape, lambda i, k: (0, 0)),
            pl.BlockSpec(bc1.shape, lambda i, k: (0, 0)),
            pl.BlockSpec(wc2.shape, lambda i, k: (0, 0)),
            pl.BlockSpec(bc2.shape, lambda i, k: (0, 0)),
        ],
        out_specs=pl.BlockSpec((gp, cp), lambda i, k: (0, 0)),
        scratch_shapes=[pltpu.VMEM((tm, hp), jnp.float32),    # per-row-tile acc
                        pltpu.VMEM((gp, hp), jnp.float32)],   # pooled acc
        compiler_params=pltpu.CompilerParams(
            dimension_semantics=("arbitrary", "arbitrary"),
            vmem_limit_bytes=vmem_limit),
        cost_estimate=cost,
    )(a, xw, b, pmat, wc1, bc1, wc2, bc2)


# ---------------------------------------------------------------------------
# XLA-side glue: normalized adjacency / pool matrix built at padded shape.
# Invariant relied on by the kernels: padded node columns of A_hat and padded
# node columns of the pool matrix are exactly zero, so ReLU(bias) on padded
# rows of H1/H2 never leaks into real rows or the pooled result.
# ---------------------------------------------------------------------------
def gcn_normalized_adjacency(edge_index, num_nodes, padded_nodes=None,
                             dtype=jnp.float32):
    """A_hat = D^{-1/2} (A + I) D^{-1/2}; duplicate edges sum (matches PyG)."""
    padded_nodes = num_nodes if padded_nodes is None else padded_nodes
    src, dst = edge_index[0], edge_index[1]
    a = jnp.zeros((padded_nodes, padded_nodes), jnp.float32)
    a = a.at[dst, src].add(1.0)                    # one message per directed edge
    idx = jnp.arange(num_nodes)
    a = a.at[idx, idx].add(1.0)                    # self loops on real nodes only
    deg = jnp.sum(a, axis=1)
    d = jnp.where(deg > 0, lax.rsqrt(deg), 0.0)
    return (a * d[:, None] * d[None, :]).astype(dtype)


def mean_pool_matrix(batch, num_graphs, padded_graphs=None, padded_nodes=None,
                     dtype=jnp.float32):
    n = batch.shape[0]
    padded_graphs = num_graphs if padded_graphs is None else padded_graphs
    padded_nodes = n if padded_nodes is None else padded_nodes
    bp = jnp.full((padded_nodes,), -1, jnp.int32).at[:n].set(batch)
    onehot = (bp[None, :] == jnp.arange(padded_graphs)[:, None]).astype(jnp.float32)
    counts = jnp.maximum(jnp.sum(onehot, axis=1, keepdims=True), 1.0)
    return (onehot / counts).astype(dtype)


def _pad2d(x, rows, cols, dtype):
    return jnp.pad(x, ((0, rows - x.shape[0]), (0, cols - x.shape[1]))).astype(dtype)


@functools.partial(jax.jit, static_argnames=("num_graphs", "node_tile", "k_tile"))
def job_classifier_gnn_forward(params, x, edge_index, batch, num_graphs,
                               node_tile=None, k_tile=None):
    w1, b1, w2, b2, wc1, bc1, wc2, bc2 = params
    n, f = x.shape
    h = w1.shape[1]
    c = wc2.shape[1]

    vmem_limit = _vmem_limit_bytes()
    tm, tk, np_ = _choose_tiles(n, vmem_limit, node_tile, k_tile)
    fp = _round_up(f, 128)
    hp = _round_up(h, 128)
    cp = _round_up(c, 128)
    gp = _round_up(num_graphs, 8)

    # Dense glue (see TODO): built directly at padded shape; A_hat in bf16.
    a_hat = gcn_normalized_adjacency(edge_index, n, np_, jnp.bfloat16)
    pmat = mean_pool_matrix(batch, num_graphs, gp, np_, jnp.float32)
    xb = _pad2d(x, np_, fp, jnp.bfloat16)

    w1p = _pad2d(w1, fp, hp, jnp.bfloat16)
    w2p = _pad2d(w2, hp, hp, jnp.bfloat16)
    wc1p = _pad2d(wc1, hp, hp, jnp.bfloat16)
    wc2p = _pad2d(wc2, hp, cp, jnp.bfloat16)
    b1p = _pad2d(b1.reshape(1, -1), 1, hp, jnp.float32)
    b2p = _pad2d(b2.reshape(1, -1), 1, hp, jnp.float32)
    bc1p = _pad2d(bc1.reshape(1, -1), 1, hp, jnp.float32)
    bc2p = _pad2d(bc2.reshape(1, -1), 1, cp, jnp.float32)

    # conv1 lin step:  XW1 = X @ W1
    xw1 = _xw(xb, w1p, tm=tm, vmem_limit=vmem_limit)
    # conv1 aggregation + bias + ReLU fused with conv2's lin (H1 stays in VMEM):
    #   XW2 = ReLU(A_hat @ XW1 + b1) @ W2
    xw2 = _gcn_agg_matmul(a_hat, xw1, b1p, w2p, tm=tm, tk=tk,
                          vmem_limit=vmem_limit)
    # conv2 aggregation + bias + ReLU + global_mean_pool + MLP + log_softmax
    out = _gcn_agg_pool_classify(a_hat, xw2, b2p, pmat, wc1p, bc1p, wc2p, bc2p,
                                 tm=tm, tk=tk, num_classes=c,
                                 vmem_limit=vmem_limit)
    return out[:num_graphs, :c]


# ---------------------------------------------------------------------------
# Deterministic parameter init (shapes from JobClassifierGNN.__init__).
# ---------------------------------------------------------------------------
def init_params(key, num_node_features, num_classes, hidden_channels):
    ks = jax.random.split(key, 8)

    def glorot(k, shape):
        fan_in, fan_out = shape
        lim = jnp.sqrt(6.0 / (fan_in + fan_out))
        return jax.random.uniform(k, shape, jnp.float32, -lim, lim)

    w1 = glorot(ks[0], (num_node_features, hidden_channels))
    b1 = jnp.zeros((1, hidden_channels), jnp.float32)
    w2 = glorot(ks[1], (hidden_channels, hidden_channels))
    b2 = jnp.zeros((1, hidden_channels), jnp.float32)
    wc1 = glorot(ks[2], (hidden_channels, hidden_channels))
    bc1 = 0.01 * jax.random.normal(ks[3], (1, hidden_channels), jnp.float32)
    wc2 = glorot(ks[4], (hidden_channels, num_classes))
    bc2 = 0.01 * jax.random.normal(ks[5], (1, num_classes), jnp.float32)
    return (w1, b1, w2, b2, wc1, bc1, wc2, bc2)


if __name__ == "__main__":
    key = jax.random.PRNGKey(0)
    k_param, k_x, k_e = jax.random.split(key, 3)

    num_node_features = 10
    num_classes = 5
    hidden_channels = 64          # module default
    num_nodes = 200               # pads to 256
    num_graphs = 4
    num_edges = 400

    params = init_params(k_param, num_node_features, num_classes, hidden_channels)

    x = jax.random.normal(k_x, (num_nodes, num_node_features), jnp.float32)

    # Random undirected edge_index [2, 2E] (both directions included).
    src = jax.random.randint(k_e, (num_edges,), 0, num_nodes)
    dst = jax.random.randint(jax.random.fold_in(k_e, 1), (num_edges,), 0, num_nodes)
    edge_index = jnp.concatenate(
        [jnp.stack([src, dst], axis=0), jnp.stack([dst, src], axis=0)], axis=1
    ).astype(jnp.int32)

    # Contiguous graph assignment: ~50 nodes per graph.
    batch = (jnp.arange(num_nodes) * num_graphs // num_nodes).astype(jnp.int32)

    log_probs = job_classifier_gnn_forward(params, x, edge_index, batch, num_graphs)
    jax.block_until_ready(log_probs)

    # Pure-JAX f32 reference (same dense formulation, PyG op order).
    def reference_forward(params, x, edge_index, batch, num_graphs):
        w1, b1, w2, b2, wc1, bc1, wc2, bc2 = params
        a = gcn_normalized_adjacency(edge_index, x.shape[0])
        p = mean_pool_matrix(batch, num_graphs)
        h1 = jnp.maximum(a @ (x @ w1) + b1, 0.0)
        h2 = jnp.maximum(a @ (h1 @ w2) + b2, 0.0)
        pooled = p @ h2
        z = jnp.maximum(pooled @ wc1 + bc1, 0.0)
        logits = z @ wc2 + bc2
        return jax.nn.log_softmax(logits, axis=-1)

    ref = reference_forward(params, x, edge_index, batch, num_graphs)

    assert log_probs.shape == (num_graphs, num_classes)
    assert bool(jnp.all(jnp.isfinite(log_probs)))
    # Rows of log_softmax exponentiate to ~1 (computed exactly in f32 in-kernel).
    assert jnp.allclose(jnp.exp(log_probs).sum(axis=1), 1.0, atol=1e-4)
    # bf16 matmuls vs f32 reference: loose band.
    max_diff = float(jnp.max(jnp.abs(log_probs - ref)))
    assert jnp.allclose(log_probs, ref, atol=0.15), max_diff

    # Exercise the K-tiled reduction path (multi row tiles + multi K tiles).
    log_probs_tiled = job_classifier_gnn_forward(
        params, x, edge_index, batch, num_graphs, node_tile=128, k_tile=128)
    jax.block_until_ready(log_probs_tiled)
    assert jnp.allclose(log_probs_tiled, log_probs, atol=5e-3), float(
        jnp.max(jnp.abs(log_probs_tiled - log_probs)))

    print("KERNEL_OK")
</pallas_src>

<mosaic_0001>
module attributes {stable_mosaic.version = 11 : i64} {
  func.func private @main(%arg0: i32) attributes {dimension_semantics = [#tpu.dimension_semantics<core_parallel>], iteration_bounds = array<i64: 2>, tpu.core_type = #tpu.core_type<sc_scalar_subcore>, window_params = []} {
    return
  }
}

module attributes {stable_mosaic.version = 11 : i64} {
  func.func private @main(%arg0: i32) attributes {dimension_semantics = [#tpu.dimension_semantics<core_parallel>], iteration_bounds = array<i64: 2>, tpu.core_type = #tpu.core_type<sc_scalar_subcore>, window_params = []} {
    return
  }
}

module attributes {stable_mosaic.version = 11 : i64} {
  func.func @xw_kernel(%arg0: i32, %arg1: memref<256x128xbf16, #tpu.memory_space<vmem>>, %arg2: memref<128x128xbf16, #tpu.memory_space<vmem>>, %arg3: memref<256x128xbf16, #tpu.memory_space<vmem>>) attributes {dimension_semantics = [#tpu.dimension_semantics<parallel>], iteration_bounds = array<i64: 1>, scalar_prefetch = 0 : i64, scratch_operands = 0 : i64, tpu.core_type = #tpu.core_type<tc>, window_params = [{transform_indices = @transform_0, window_bounds = array<i64: 256, 128>}, {pipeline_mode = #tpu.pipeline_mode<synchronous>, transform_indices = @transform_1, window_bounds = array<i64: 128, 128>}, {transform_indices = @transform_2, window_bounds = array<i64: 256, 128>}]} {
    %c0 = arith.constant 0 : index
    %c0_0 = arith.constant 0 : index
    %0 = vector.load %arg1[%c0, %c0_0] : memref<256x128xbf16, #tpu.memory_space<vmem>>, vector<256x128xbf16>
    %c0_1 = arith.constant 0 : index
    %c0_2 = arith.constant 0 : index
    %1 = vector.load %arg2[%c0_1, %c0_2] : memref<128x128xbf16, #tpu.memory_space<vmem>>, vector<128x128xbf16>
    %cst = arith.constant dense<0.000000e+00> : vector<256x128xf32>
    %2 = tpu.matmul %0, %1, %cst {dimension_numbers = #tpu.dot_dimension_numbers<[1], [0], [0], [1], [0, 0, 1, 1], [], []>} : vector<256x128xbf16>, vector<128x128xbf16>, vector<256x128xf32> -> vector<256x128xf32>
    %3 = arith.truncf %2 : vector<256x128xf32> to vector<256x128xbf16>
    %c0_3 = arith.constant 0 : index
    %c0_4 = arith.constant 0 : index
    %4 = vector.load %arg3[%c0_3, %c0_4] : memref<256x128xbf16, #tpu.memory_space<vmem>>, vector<256x128xbf16>
    tpu.vector_store %arg3[%c0_3, %c0_4], %3 {strides = array<i32>} : memref<256x128xbf16, #tpu.memory_space<vmem>>, vector<256x128xbf16>,
    return
  }
  func.func @transform_0(%arg0: i32) -> (i32, i32) {
    %c0_i32 = arith.constant 0 : i32
    %c0_i32_0 = arith.constant 0 : i32
    return %arg0, %c0_i32 : i32, i32
  }
  func.func @transform_1(%arg0: i32) -> (i32, i32) {
    %c0_i32 = arith.constant 0 : i32
    %c0_i32_0 = arith.constant 0 : i32
    %c0_i32_1 = arith.constant 0 : i32
    return %c0_i32, %c0_i32_0 : i32, i32
  }
  func.func @transform_2(%arg0: i32) -> (i32, i32) {
    %c0_i32 = arith.constant 0 : i32
    %c0_i32_0 = arith.constant 0 : i32
    return %arg0, %c0_i32 : i32, i32
  }
}

module attributes {stable_mosaic.version = 11 : i64} {
  func.func @gcn_agg_matmul_kernel(%arg0: i32, %arg1: i32, %arg2: memref<256x256xbf16, #tpu.memory_space<vmem>>, %arg3: memref<256x128xbf16, #tpu.memory_space<vmem>>, %arg4: memref<1x128xf32, #tpu.memory_space<vmem>>, %arg5: memref<128x128xbf16, #tpu.memory_space<vmem>>, %arg6: memref<256x128xbf16, #tpu.memory_space<vmem>>, %arg7: memref<256x128xf32, #tpu.memory_space<vmem>>) attributes {dimension_semantics = [#tpu.dimension_semantics<parallel>, #tpu.dimension_semantics<arbitrary>], iteration_bounds = array<i64: 1, 1>, scalar_prefetch = 0 : i64, scratch_operands = 1 : i64, tpu.core_type = #tpu.core_type<tc>, window_params = [{transform_indices = @transform_0, window_bounds = array<i64: 256, 256>}, {pipeline_mode = #tpu.pipeline_mode<synchronous>, transform_indices = @transform_1, window_bounds = array<i64: 256, 128>}, {pipeline_mode = #tpu.pipeline_mode<synchronous>, transform_indices = @transform_2, window_bounds = array<i64: 1, 128>}, {pipeline_mode = #tpu.pipeline_mode<synchronous>, transform_indices = @transform_3, window_bounds = array<i64: 128, 128>}, {transform_indices = @transform_4, window_bounds = array<i64: 256, 128>}]} {
    %c0_i32 = arith.constant 0 : i32
    %0 = arith.cmpi eq, %arg1, %c0_i32 : i32
    %1 = arith.extui %0 : i1 to i32
    %c0_i32_0 = arith.constant 0 : i32
    %2 = arith.cmpi ne, %1, %c0_i32_0 : i32
    scf.if %2 {
      %cst_9 = arith.constant 0.000000e+00 : f32
      %15 = vector.broadcast %cst_9 : f32 to vector<256x128xf32>
      %c0_10 = arith.constant 0 : index
      %c0_11 = arith.constant 0 : index
      %16 = vector.load %arg7[%c0_10, %c0_11] : memref<256x128xf32, #tpu.memory_space<vmem>>, vector<256x128xf32>
      tpu.vector_store %arg7[%c0_10, %c0_11], %15 {strides = array<i32>} : memref<256x128xf32, #tpu.memory_space<vmem>>, vector<256x128xf32>,
    } else {
    }
    %c256_i32 = arith.constant 256 : i32
    %3 = arith.muli %arg1, %c256_i32 : i32
    %4 = tpu.assume_multiple %3, 128 : i32
    %c0 = arith.constant 0 : index
    %c0_1 = arith.constant 0 : index
    %5 = vector.load %arg7[%c0, %c0_1] : memref<256x128xf32, #tpu.memory_space<vmem>>, vector<256x128xf32>
    %c0_2 = arith.constant 0 : index
    %c0_3 = arith.constant 0 : index
    %6 = vector.load %arg2[%c0_2, %c0_3] : memref<256x256xbf16, #tpu.memory_space<vmem>>, vector<256x256xbf16>
    %7 = arith.index_cast %4 : i32 to index
    %c0_4 = arith.constant 0 : index
    %8 = vector.load %arg3[%7, %c0_4] : memref<256x128xbf16, #tpu.memory_space<vmem>>, vector<256x128xbf16>
    %cst = arith.constant dense<0.000000e+00> : vector<256x128xf32>
    %9 = tpu.matmul %6, %8, %cst {dimension_numbers = #tpu.dot_dimension_numbers<[1], [0], [0], [1], [0, 0, 1, 1], [], []>} : vector<256x256xbf16>, vector<256x128xbf16>, vector<256x128xf32> -> vector<256x128xf32>
    %10 = arith.addf %5, %9 : vector<256x128xf32>
    %c0_5 = arith.constant 0 : index
    %c0_6 = arith.constant 0 : index
    %11 = vector.load %arg7[%c0_5, %c0_6] : memref<256x128xf32, #tpu.memory_space<vmem>>, vector<256x128xf32>
    tpu.vector_store %arg7[%c0_5, %c0_6], %10 {strides = array<i32>} : memref<256x128xf32, #tpu.memory_space<vmem>>, vector<256x128xf32>,
    %c0_i32_7 = arith.constant 0 : i32
    %12 = arith.cmpi eq, %arg1, %c0_i32_7 : i32
    %13 = arith.extui %12 : i1 to i32
    %c0_i32_8 = arith.constant 0 : i32
    %14 = arith.cmpi ne, %13, %c0_i32_8 : i32
    scf.if %14 {
      %c0_9 = arith.constant 0 : index
      %c0_10 = arith.constant 0 : index
      %15 = vector.load %arg7[%c0_9, %c0_10] : memref<256x128xf32, #tpu.memory_space<vmem>>, vector<256x128xf32>
      %c0_11 = arith.constant 0 : index
      %c0_12 = arith.constant 0 : index
      %16 = vector.load %arg4[%c0_11, %c0_12] : memref<1x128xf32, #tpu.memory_space<vmem>>, vector<1x128xf32>
      %17 = vector.broadcast %16 : vector<1x128xf32> to vector<256x128xf32>
      %18 = arith.addf %15, %17 : vector<256x128xf32>
      %cst_13 = arith.constant 0.000000e+00 : f32
      %19 = vector.broadcast %cst_13 : f32 to vector<256x128xf32>
      %20 = arith.maximumf %18, %19 : vector<256x128xf32>
      %21 = arith.truncf %20 : vector<256x128xf32> to vector<256x128xbf16>
      %c0_14 = arith.constant 0 : index
      %c0_15 = arith.constant 0 : index
      %22 = vector.load %arg5[%c0_14, %c0_15] : memref<128x128xbf16, #tpu.memory_space<vmem>>, vector<128x128xbf16>
      %cst_16 = arith.constant dense<0.000000e+00> : vector<256x128xf32>
      %23 = tpu.matmul %21, %22, %cst_16 {dimension_numbers = #tpu.dot_dimension_numbers<[1], [0], [0], [1], [0, 0, 1, 1], [], []>} : vector<256x128xbf16>, vector<128x128xbf16>, vector<256x128xf32> -> vector<256x128xf32>
      %24 = arith.truncf %23 : vector<256x128xf32> to vector<256x128xbf16>
      %c0_17 = arith.constant 0 : index
      %c0_18 = arith.constant 0 : index
      %25 = vector.load %arg6[%c0_17, %c0_18] : memref<256x128xbf16, #tpu.memory_space<vmem>>, vector<256x128xbf16>
      tpu.vector_store %arg6[%c0_17, %c0_18], %24 {strides = array<i32>} : memref<256x128xbf16, #tpu.memory_space<vmem>>, vector<256x128xbf16>,
    } else {
    }
    return
  }
  func.func @transform_0(%arg0: i32, %arg1: i32) -> (i32, i32) {
    %c0_i32 = arith.constant 0 : i32
    return %arg0, %arg1 : i32, i32
  }
  func.func @transform_1(%arg0: i32, %arg1: i32) -> (i32, i32) {
    %c0_i32 = arith.constant 0 : i32
    %c0_i32_0 = arith.constant 0 : i32
    %c0_i32_1 = arith.constant 0 : i32
    return %c0_i32, %c0_i32_0 : i32, i32
  }
  func.func @transform_2(%arg0: i32, %arg1: i32) -> (i32, i32) {
    %c0_i32 = arith.constant 0 : i32
    %c0_i32_0 = arith.constant 0 : i32
    %c0_i32_1 = arith.constant 0 : i32
    return %c0_i32, %c0_i32_0 : i32, i32
  }
  func.func @transform_3(%arg0: i32, %arg1: i32) -> (i32, i32) {
    %c0_i32 = arith.constant 0 : i32
    %c0_i32_0 = arith.constant 0 : i32
    %c0_i32_1 = arith.constant 0 : i32
    return %c0_i32, %c0_i32_0 : i32, i32
  }
  func.func @transform_4(%arg0: i32, %arg1: i32) -> (i32, i32) {
    %c0_i32 = arith.constant 0 : i32
    %c0_i32_0 = arith.constant 0 : i32
    return %arg0, %c0_i32 : i32, i32
  }
}

module attributes {stable_mosaic.version = 11 : i64} {
  func.func @gcn_agg_pool_classify_kernel(%arg0: i32, %arg1: i32, %arg2: memref<256x256xbf16, #tpu.memory_space<vmem>>, %arg3: memref<256x128xbf16, #tpu.memory_space<vmem>>, %arg4: memref<1x128xf32, #tpu.memory_space<vmem>>, %arg5: memref<8x256xf32, #tpu.memory_space<vmem>>, %arg6: memref<128x128xbf16, #tpu.memory_space<vmem>>, %arg7: memref<1x128xf32, #tpu.memory_space<vmem>>, %arg8: memref<128x128xbf16, #tpu.memory_space<vmem>>, %arg9: memref<1x128xf32, #tpu.memory_space<vmem>>, %arg10: memref<8x128xf32, #tpu.memory_space<vmem>>, %arg11: memref<256x128xf32, #tpu.memory_space<vmem>>, %arg12: memref<8x128xf32, #tpu.memory_space<vmem>>) attributes {dimension_semantics = [#tpu.dimension_semantics<arbitrary>, #tpu.dimension_semantics<arbitrary>], iteration_bounds = array<i64: 1, 1>, scalar_prefetch = 0 : i64, scratch_operands = 2 : i64, tpu.core_type = #tpu.core_type<tc>, window_params = [{transform_indices = @transform_0, window_bounds = array<i64: 256, 256>}, {pipeline_mode = #tpu.pipeline_mode<synchronous>, transform_indices = @transform_1, window_bounds = array<i64: 256, 128>}, {pipeline_mode = #tpu.pipeline_mode<synchronous>, transform_indices = @transform_2, window_bounds = array<i64: 1, 128>}, {transform_indices = @transform_3, window_bounds = array<i64: 8, 256>}, {pipeline_mode = #tpu.pipeline_mode<synchronous>, transform_indices = @transform_4, window_bounds = array<i64: 128, 128>}, {pipeline_mode = #tpu.pipeline_mode<synchronous>, transform_indices = @transform_5, window_bounds = array<i64: 1, 128>}, {pipeline_mode = #tpu.pipeline_mode<synchronous>, transform_indices = @transform_6, window_bounds = array<i64: 128, 128>}, {pipeline_mode = #tpu.pipeline_mode<synchronous>, transform_indices = @transform_7, window_bounds = array<i64: 1, 128>}, {pipeline_mode = #tpu.pipeline_mode<synchronous>, transform_indices = @transform_8, window_bounds = array<i64: 8, 128>}]} {
    %c0_i32 = arith.constant 0 : i32
    %0 = arith.cmpi eq, %arg0, %c0_i32 : i32
    %c0_i32_0 = arith.constant 0 : i32
    %1 = arith.cmpi eq, %arg1, %c0_i32_0 : i32
    %2 = arith.andi %0, %1 : i1
    %3 = arith.extui %2 : i1 to i32
    %c0_i32_1 = arith.constant 0 : i32
    %4 = arith.cmpi ne, %3, %c0_i32_1 : i32
    scf.if %4 {
      %cst_12 = arith.constant 0.000000e+00 : f32
      %20 = vector.broadcast %cst_12 : f32 to vector<8x128xf32>
      %c0_13 = arith.constant 0 : index
      %c0_14 = arith.constant 0 : index
      %21 = vector.load %arg12[%c0_13, %c0_14] : memref<8x128xf32, #tpu.memory_space<vmem>>, vector<8x128xf32>
      tpu.vector_store %arg12[%c0_13, %c0_14], %20 {strides = array<i32>} : memref<8x128xf32, #tpu.memory_space<vmem>>, vector<8x128xf32>,
    } else {
    }
    %c0_i32_2 = arith.constant 0 : i32
    %5 = arith.cmpi eq, %arg1, %c0_i32_2 : i32
    %6 = arith.extui %5 : i1 to i32
    %c0_i32_3 = arith.constant 0 : i32
    %7 = arith.cmpi ne, %6, %c0_i32_3 : i32
    scf.if %7 {
      %cst_12 = arith.constant 0.000000e+00 : f32
      %20 = vector.broadcast %cst_12 : f32 to vector<256x128xf32>
      %c0_13 = arith.constant 0 : index
      %c0_14 = arith.constant 0 : index
      %21 = vector.load %arg11[%c0_13, %c0_14] : memref<256x128xf32, #tpu.memory_space<vmem>>, vector<256x128xf32>
      tpu.vector_store %arg11[%c0_13, %c0_14], %20 {strides = array<i32>} : memref<256x128xf32, #tpu.memory_space<vmem>>, vector<256x128xf32>,
    } else {
    }
    %c256_i32 = arith.constant 256 : i32
    %8 = arith.muli %arg1, %c256_i32 : i32
    %9 = tpu.assume_multiple %8, 128 : i32
    %c0 = arith.constant 0 : index
    %c0_4 = arith.constant 0 : index
    %10 = vector.load %arg11[%c0, %c0_4] : memref<256x128xf32, #tpu.memory_space<vmem>>, vector<256x128xf32>
    %c0_5 = arith.constant 0 : index
    %c0_6 = arith.constant 0 : index
    %11 = vector.load %arg2[%c0_5, %c0_6] : memref<256x256xbf16, #tpu.memory_space<vmem>>, vector<256x256xbf16>
    %12 = arith.index_cast %9 : i32 to index
    %c0_7 = arith.constant 0 : index
    %13 = vector.load %arg3[%12, %c0_7] : memref<256x128xbf16, #tpu.memory_space<vmem>>, vector<256x128xbf16>
    %cst = arith.constant dense<0.000000e+00> : vector<256x128xf32>
    %14 = tpu.matmul %11, %13, %cst {dimension_numbers = #tpu.dot_dimension_numbers<[1], [0], [0], [1], [0, 0, 1, 1], [], []>} : vector<256x256xbf16>, vector<256x128xbf16>, vector<256x128xf32> -> vector<256x128xf32>
    %15 = arith.addf %10, %14 : vector<256x128xf32>
    %c0_8 = arith.constant 0 : index
    %c0_9 = arith.constant 0 : index
    %16 = vector.load %arg11[%c0_8, %c0_9] : memref<256x128xf32, #tpu.memory_space<vmem>>, vector<256x128xf32>
    tpu.vector_store %arg11[%c0_8, %c0_9], %15 {strides = array<i32>} : memref<256x128xf32, #tpu.memory_space<vmem>>, vector<256x128xf32>,
    %c0_i32_10 = arith.constant 0 : i32
    %17 = arith.cmpi eq, %arg1, %c0_i32_10 : i32
    %18 = arith.extui %17 : i1 to i32
    %c0_i32_11 = arith.constant 0 : i32
    %19 = arith.cmpi ne, %18, %c0_i32_11 : i32
    scf.if %19 {
      %c0_12 = arith.constant 0 : index
      %c0_13 = arith.constant 0 : index
      %20 = vector.load %arg11[%c0_12, %c0_13] : memref<256x128xf32, #tpu.memory_space<vmem>>, vector<256x128xf32>
      %c0_14 = arith.constant 0 : index
      %c0_15 = arith.constant 0 : index
      %21 = vector.load %arg4[%c0_14, %c0_15] : memref<1x128xf32, #tpu.memory_space<vmem>>, vector<1x128xf32>
      %22 = vector.broadcast %21 : vector<1x128xf32> to vector<256x128xf32>
      %23 = arith.addf %20, %22 : vector<256x128xf32>
      %cst_16 = arith.constant 0.000000e+00 : f32
      %24 = vector.broadcast %cst_16 : f32 to vector<256x128xf32>
      %25 = arith.maximumf %23, %24 : vector<256x128xf32>
      %c0_17 = arith.constant 0 : index
      %c0_18 = arith.constant 0 : index
      %26 = vector.load %arg12[%c0_17, %c0_18] : memref<8x128xf32, #tpu.memory_space<vmem>>, vector<8x128xf32>
      %c0_19 = arith.constant 0 : index
      %c0_20 = arith.constant 0 : index
      %27 = vector.load %arg5[%c0_19, %c0_20] : memref<8x256xf32, #tpu.memory_space<vmem>>, vector<8x256xf32>
      %cst_21 = arith.constant dense<0.000000e+00> : vector<8x128xf32>
      %28 = tpu.matmul %27, %25, %cst_21 {dimension_numbers = #tpu.dot_dimension_numbers<[1], [0], [0], [1], [0, 0, 1, 1], [], []>} : vector<8x256xf32>, vector<256x128xf32>, vector<8x128xf32> -> vector<8x128xf32>
      %29 = arith.addf %26, %28 : vector<8x128xf32>
      %c0_22 = arith.constant 0 : index
      %c0_23 = arith.constant 0 : index
      %30 = vector.load %arg12[%c0_22, %c0_23] : memref<8x128xf32, #tpu.memory_space<vmem>>, vector<8x128xf32>
      tpu.vector_store %arg12[%c0_22, %c0_23], %29 {strides = array<i32>} : memref<8x128xf32, #tpu.memory_space<vmem>>, vector<8x128xf32>,
      %c0_i32_24 = arith.constant 0 : i32
      %31 = arith.cmpi eq, %arg0, %c0_i32_24 : i32
      %32 = arith.extui %31 : i1 to i32
      %c0_i32_25 = arith.constant 0 : i32
      %33 = arith.cmpi ne, %32, %c0_i32_25 : i32
      scf.if %33 {
        %c0_26 = arith.constant 0 : index
        %c0_27 = arith.constant 0 : index
        %34 = vector.load %arg12[%c0_26, %c0_27] : memref<8x128xf32, #tpu.memory_space<vmem>>, vector<8x128xf32>
        %35 = arith.truncf %34 : vector<8x128xf32> to vector<8x128xbf16>
        %c0_28 = arith.constant 0 : index
        %c0_29 = arith.constant 0 : index
        %36 = vector.load %arg6[%c0_28, %c0_29] : memref<128x128xbf16, #tpu.memory_space<vmem>>, vector<128x128xbf16>
        %cst_30 = arith.constant dense<0.000000e+00> : vector<8x128xf32>
        %37 = tpu.matmul %35, %36, %cst_30 {dimension_numbers = #tpu.dot_dimension_numbers<[1], [0], [0], [1], [0, 0, 1, 1], [], []>} : vector<8x128xbf16>, vector<128x128xbf16>, vector<8x128xf32> -> vector<8x128xf32>
        %c0_31 = arith.constant 0 : index
        %c0_32 = arith.constant 0 : index
        %38 = vector.load %arg7[%c0_31, %c0_32] : memref<1x128xf32, #tpu.memory_space<vmem>>, vector<1x128xf32>
        %39 = vector.broadcast %38 : vector<1x128xf32> to vector<8x128xf32>
        %40 = arith.addf %37, %39 : vector<8x128xf32>
        %cst_33 = arith.constant 0.000000e+00 : f32
        %41 = vector.broadcast %cst_33 : f32 to vector<8x128xf32>
        %42 = arith.maximumf %40, %41 : vector<8x128xf32>
        %43 = arith.truncf %42 : vector<8x128xf32> to vector<8x128xbf16>
        %c0_34 = arith.constant 0 : index
        %c0_35 = arith.constant 0 : index
        %44 = vector.load %arg8[%c0_34, %c0_35] : memref<128x128xbf16, #tpu.memory_space<vmem>>, vector<128x128xbf16>
        %cst_36 = arith.constant dense<0.000000e+00> : vector<8x128xf32>
        %45 = tpu.matmul %43, %44, %cst_36 {dimension_numbers = #tpu.dot_dimension_numbers<[1], [0], [0], [1], [0, 0, 1, 1], [], []>} : vector<8x128xbf16>, vector<128x128xbf16>, vector<8x128xf32> -> vector<8x128xf32>
        %c0_37 = arith.constant 0 : index
        %c0_38 = arith.constant 0 : index
        %46 = vector.load %arg9[%c0_37, %c0_38] : memref<1x128xf32, #tpu.memory_space<vmem>>, vector<1x128xf32>
        %47 = vector.broadcast %46 : vector<1x128xf32> to vector<8x128xf32>
        %48 = arith.addf %45, %47 : vector<8x128xf32>
        %49 = tpu.iota {dimensions = array<i32: 1>} : vector<8x128xi32>
        %c5_i32 = arith.constant 5 : i32
        %50 = vector.broadcast %c5_i32 : i32 to vector<8x128xi32>
        %51 = arith.cmpi slt, %49, %50 : vector<8x128xi32>
        %cst_39 = arith.constant -1.000000e+30 : f32
        %52 = vector.broadcast %cst_39 : f32 to vector<8x128xf32>
        %53 = arith.select %51, %48, %52 : vector<8x128xi1>, vector<8x128xf32>
        %cst_40 = arith.constant dense<0xFF800000> : vector<8xf32>
        %54 = vector.multi_reduction <maximumf>, %53, %cst_40 [1] : vector<8x128xf32> to vector<8xf32>
        %55 = vector.shape_cast %54 : vector<8xf32> to vector<8x1xf32>
        %56 = vector.broadcast %55 : vector<8x1xf32> to vector<8x128xf32>
        %57 = arith.subf %53, %56 : vector<8x128xf32>
        %58 = math.exp %57 : vector<8x128xf32>
        %cst_41 = arith.constant dense<0.000000e+00> : vector<8xf32>
        %59 = vector.multi_reduction <add>, %58, %cst_41 [1] : vector<8x128xf32> to vector<8xf32>
        %60 = vector.shape_cast %59 : vector<8xf32> to vector<8x1xf32>
        %61 = math.log %60 : vector<8x1xf32>
        %62 = vector.broadcast %61 : vector<8x1xf32> to vector<8x128xf32>
        %63 = arith.subf %57, %62 : vector<8x128xf32>
        %c0_42 = arith.constant 0 : index
        %c0_43 = arith.constant 0 : index
        %64 = vector.load %arg10[%c0_42, %c0_43] : memref<8x128xf32, #tpu.memory_space<vmem>>, vector<8x128xf32>
        tpu.vector_store %arg10[%c0_42, %c0_43], %63 {strides = array<i32>} : memref<8x128xf32, #tpu.memory_space<vmem>>, vector<8x128xf32>,
      } else {
      }
    } else {
    }
    return
  }
  func.func @transform_0(%arg0: i32, %arg1: i32) -> (i32, i32) {
    %c0_i32 = arith.constant 0 : i32
    return %arg0, %arg1 : i32, i32
  }
  func.func @transform_1(%arg0: i32, %arg1: i32) -> (i32, i32) {
    %c0_i32 = arith.constant 0 : i32
    %c0_i32_0 = arith.constant 0 : i32
    %c0_i32_1 = arith.constant 0 : i32
    return %c0_i32, %c0_i32_0 : i32, i32
  }
  func.func @transform_2(%arg0: i32, %arg1: i32) -> (i32, i32) {
    %c0_i32 = arith.constant 0 : i32
    %c0_i32_0 = arith.constant 0 : i32
    %c0_i32_1 = arith.constant 0 : i32
    return %c0_i32, %c0_i32_0 : i32, i32
  }
  func.func @transform_3(%arg0: i32, %arg1: i32) -> (i32, i32) {
    %c0_i32 = arith.constant 0 : i32
    %c0_i32_0 = arith.constant 0 : i32
    return %c0_i32, %arg0 : i32, i32
  }
  func.func @transform_4(%arg0: i32, %arg1: i32) -> (i32, i32) {
    %c0_i32 = arith.constant 0 : i32
    %c0_i32_0 = arith.constant 0 : i32
    %c0_i32_1 = arith.constant 0 : i32
    return %c0_i32, %c0_i32_0 : i32, i32
  }
  func.func @transform_5(%arg0: i32, %arg1: i32) -> (i32, i32) {
    %c0_i32 = arith.constant 0 : i32
    %c0_i32_0 = arith.constant 0 : i32
    %c0_i32_1 = arith.constant 0 : i32
    return %c0_i32, %c0_i32_0 : i32, i32
  }
  func.func @transform_6(%arg0: i32, %arg1: i32) -> (i32, i32) {
    %c0_i32 = arith.constant 0 : i32
    %c0_i32_0 = arith.constant 0 : i32
    %c0_i32_1 = arith.constant 0 : i32
    return %c0_i32, %c0_i32_0 : i32, i32
  }
  func.func @transform_7(%arg0: i32, %arg1: i32) -> (i32, i32) {
    %c0_i32 = arith.constant 0 : i32
    %c0_i32_0 = arith.constant 0 : i32
    %c0_i32_1 = arith.constant 0 : i32
    return %c0_i32, %c0_i32_0 : i32, i32
  }
  func.func @transform_8(%arg0: i32, %arg1: i32) -> (i32, i32) {
    %c0_i32 = arith.constant 0 : i32
    %c0_i32_0 = arith.constant 0 : i32
    %c0_i32_1 = arith.constant 0 : i32
    return %c0_i32, %c0_i32_0 : i32, i32
  }
}

</mosaic_0001>

<llo_original>
// kernel: job_classifier_gnn_forward.3
$region0: #{job_classifier_gnn_forward.3}
  #allocation0 [shape = 'u32[]', space=smem, size = 0x4, offset = 0x4, fixed_abs, tag = 'smem constant byte address 0x4 - core index']
  #allocation1 [shape = 'u32[144,128]{1,0:T(1,128)}', space=vmem, size = 0x12000, scoped, tag = 'internal scratch']
  %s0 = inlined_call_operand.vmem [shape: bf16[256,128], index: 0, kind: input, shape index: {}]
  %s1 = inlined_call_operand.vmem [shape: bf16[128,128], index: 1, kind: input, shape index: {}]
  %s2 = inlined_call_operand.vmem [shape: bf16[256,128], index: 2, kind: output, shape index: {}]
  %s3 = sld [smem:[#allocation0]]
  $region18: #{job_classifier_gnn_forward.3} parent=0
    _
  %s5 = ssub.s32 1, %s3
  %s6 = scalar_select 0, %s5, %s3
  // Predicated region
  $region2: #{job_classifier_gnn_forward.3} parent=0 // pred_check
    _
  $region3: #{job_classifier_gnn_forward.3} parent=0 // pred_check_branch
    %8 = sbr.rel (0) target = $region5
  $region4: #{job_classifier_gnn_forward.3} parent=0 // pred_region
    _
  $region5: #{job_classifier_gnn_forward.3} parent=0 // pred_fallthru
    _
  // Predicated region
  $region6: #{job_classifier_gnn_forward.3} parent=0 // pred_check
    _
  $region7: #{job_classifier_gnn_forward.3} parent=0 // pred_check_branch
    %10 = sbr.rel (0) target = $region9
  $region8: #{job_classifier_gnn_forward.3} parent=0 // pred_region
    _
  $region9: #{job_classifier_gnn_forward.3} parent=0 // pred_fallthru
    _
  %v12 = vld [vmem:[%s0] sm:$0xf]
  %v13 = vld [vmem:[%s0 + $0x4] sm:$0xf]
  %v14 = vld [vmem:[%s0 + $0x8] sm:$0xf]
  %v15 = vld [vmem:[%s0 + $0xc] sm:$0xf]
  %v16 = vld [vmem:[%s0 + $0x10] sm:$0xf]
  %v17 = vld [vmem:[%s0 + $0x14] sm:$0xf]
  %v18 = vld [vmem:[%s0 + $0x18] sm:$0xf]
  %v19 = vld [vmem:[%s0 + $0x1c] sm:$0xf]
  %v20 = vld [vmem:[%s0 + $0x20] sm:$0xf]
  %v21 = vld [vmem:[%s0 + $0x24] sm:$0xf]
  %v22 = vld [vmem:[%s0 + $0x28] sm:$0xf]
  %v23 = vld [vmem:[%s0 + $0x2c] sm:$0xf]
  %v24 = vld [vmem:[%s0 + $0x30] sm:$0xf]
  %v25 = vld [vmem:[%s0 + $0x34] sm:$0xf]
  %v26 = vld [vmem:[%s0 + $0x38] sm:$0xf]
  %v27 = vld [vmem:[%s0 + $0x3c] sm:$0xf]
  %v28 = vld [vmem:[%s0 + $0x40] sm:$0xf]
  %v29 = vld [vmem:[%s0 + $0x44] sm:$0xf]
  %v30 = vld [vmem:[%s0 + $0x48] sm:$0xf]
  %v31 = vld [vmem:[%s0 + $0x4c] sm:$0xf]
  %v32 = vld [vmem:[%s0 + $0x50] sm:$0xf]
  %v33 = vld [vmem:[%s0 + $0x54] sm:$0xf]
  %v34 = vld [vmem:[%s0 + $0x58] sm:$0xf]
  %v35 = vld [vmem:[%s0 + $0x5c] sm:$0xf]
  %v36 = vld [vmem:[%s0 + $0x60] sm:$0xf]
  %v37 = vld [vmem:[%s0 + $0x64] sm:$0xf]
  %v38 = vld [vmem:[%s0 + $0x68] sm:$0xf]
  %v39 = vld [vmem:[%s0 + $0x6c] sm:$0xf]
  %v40 = vld [vmem:[%s0 + $0x70] sm:$0xf]
  %v41 = vld [vmem:[%s0 + $0x74] sm:$0xf]
  %v42 = vld [vmem:[%s0 + $0x78] sm:$0xf]
  %v43 = vld [vmem:[%s0 + $0x7c] sm:$0xf]
  %v44 = vld [vmem:[%s1] sm:$0xf]
  %v45 = vld [vmem:[%s1 + $0x4] sm:$0xf]
  %v46 = vld [vmem:[%s1 + $0x8] sm:$0xf]
  %v47 = vld [vmem:[%s1 + $0xc] sm:$0xf]
  %v48 = vld [vmem:[%s1 + $0x10] sm:$0xf]
  %v49 = vld [vmem:[%s1 + $0x14] sm:$0xf]
  %v50 = vld [vmem:[%s1 + $0x18] sm:$0xf]
  %v51 = vld [vmem:[%s1 + $0x1c] sm:$0xf]
  %v52 = vld [vmem:[%s1 + $0x20] sm:$0xf]
  %v53 = vld [vmem:[%s1 + $0x24] sm:$0xf]
  %v54 = vld [vmem:[%s1 + $0x28] sm:$0xf]
  %v55 = vld [vmem:[%s1 + $0x2c] sm:$0xf]
  %v56 = vld [vmem:[%s1 + $0x30] sm:$0xf]
  %v57 = vld [vmem:[%s1 + $0x34] sm:$0xf]
  %v58 = vld [vmem:[%s1 + $0x38] sm:$0xf]
  %v59 = vld [vmem:[%s1 + $0x3c] sm:$0xf]
  %v92 = vunpack.c.l.b16 %v12
  %v93 = vunpack.c.l.b16 %v13
  %v94 = vunpack.c.l.b16 %v14
  %v95 = vunpack.c.l.b16 %v15
  %v96 = vunpack.c.l.b16 %v16
  %v97 = vunpack.c.l.b16 %v17
  %v98 = vunpack.c.l.b16 %v18
  %v99 = vunpack.c.l.b16 %v19
  %v100 = vunpack.c.l.b16 %v20
  %v101 = vunpack.c.l.b16 %v21
  %v102 = vunpack.c.l.b16 %v22
  %v103 = vunpack.c.l.b16 %v23
  %v104 = vunpack.c.l.b16 %v24
  %v105 = vunpack.c.l.b16 %v25
  %v106 = vunpack.c.l.b16 %v26
  %v107 = vunpack.c.l.b16 %v27
  %v108 = vunpack.c.l.b16 %v28
  %v109 = vunpack.c.l.b16 %v29
  %v110 = vunpack.c.l.b16 %v30
  %v111 = vunpack.c.l.b16 %v31
  %v112 = vunpack.c.l.b16 %v32
  %v113 = vunpack.c.l.b16 %v33
  %v114 = vunpack.c.l.b16 %v34
  %v115 = vunpack.c.l.b16 %v35
  %v116 = vunpack.c.l.b16 %v36
  %v117 = vunpack.c.l.b16 %v37
  %v118 = vunpack.c.l.b16 %v38
  %v119 = vunpack.c.l.b16 %v39
  %v120 = vunpack.c.l.b16 %v40
  %v121 = vunpack.c.l.b16 %v41
  %v122 = vunpack.c.l.b16 %v42
  %v123 = vunpack.c.l.b16 %v43
  %v124 = vpack.c.b16 %v93, %v92
  %v125 = vpack.c.b16 %v95, %v94
  %v126 = vpack.c.b16 %v97, %v96
  %v127 = vpack.c.b16 %v99, %v98
  %v128 = vpack.c.b16 %v101, %v100
  %v129 = vpack.c.b16 %v103, %v102
  %v130 = vpack.c.b16 %v105, %v104
  %v131 = vpack.c.b16 %v107, %v106
  %v132 = vpack.c.b16 %v109, %v108
  %v133 = vpack.c.b16 %v111, %v110
  %v134 = vpack.c.b16 %v113, %v112
  %v135 = vpack.c.b16 %v115, %v114
  %v136 = vpack.c.b16 %v117, %v116
  %v137 = vpack.c.b16 %v119, %v118
  %v138 = vpack.c.b16 %v121, %v120
  %v139 = vpack.c.b16 %v123, %v122
  %v172 = vunpack.c.l.b16 %v44
  %v173 = vunpack.c.l.b16 %v45
  %v174 = vunpack.c.l.b16 %v46
  %v175 = vunpack.c.l.b16 %v47
  %v176 = vunpack.c.l.b16 %v48
  %v177 = vunpack.c.l.b16 %v49
  %v178 = vunpack.c.l.b16 %v50
  %v179 = vunpack.c.l.b16 %v51
  %v180 = vunpack.c.l.b16 %v52
  %v181 = vunpack.c.l.b16 %v53
  %v182 = vunpack.c.l.b16 %v54
  %v183 = vunpack.c.l.b16 %v55
  %v184 = vunpack.c.l.b16 %v56
  %v185 = vunpack.c.l.b16 %v57
  %v186 = vunpack.c.l.b16 %v58
  %v187 = vunpack.c.l.b16 %v59
  %v188 = vpack.c.b16 %v173, %v172
  %v189 = vpack.c.b16 %v175, %v174
  %v190 = vpack.c.b16 %v177, %v176
  %v191 = vpack.c.b16 %v179, %v178
  %v192 = vpack.c.b16 %v181, %v180
  %v193 = vpack.c.b16 %v183, %v182
  %v194 = vpack.c.b16 %v185, %v184
  %v195 = vpack.c.b16 %v187, %v186
  %204 = vmatprep.subr.bf16.mxu0 0
  %205 = vmatpush1.bf16.msra.mxu0 %v188
  %206 = vmatprep.subr.bf16.mxu0 0
  %207 = vmatpush1.bf16.msra.mxu0 %v189
  %208 = vmatprep.subr.bf16.mxu0 0
  %209 = vmatpush1.bf16.msra.mxu0 %v190
  %210 = vmatprep.subr.bf16.mxu0 0
  %211 = vmatpush1.bf16.msra.mxu0 %v191
  %212 = vmatprep.subr.bf16.mxu0 0
  %213 = vmatpush1.bf16.msra.mxu0 %v192
  %214 = vmatprep.subr.bf16.mxu0 0
  %215 = vmatpush1.bf16.msra.mxu0 %v193
  %216 = vmatprep.subr.bf16.mxu0 0
  %217 = vmatpush1.bf16.msra.mxu0 %v194
  %218 = vmatprep.subr.bf16.mxu0 0
  %219 = vmatpush1.bf16.msra.mxu0 %v195
  %220 = vmatprep.subr.bf16.mxu0 0
  %221 = vmatpush1.bf16.msra.mxu0 0
  %222 = vmatprep.subr.bf16.mxu0 0
  %223 = vmatpush1.bf16.msra.mxu0 0
  %224 = vmatprep.subr.bf16.mxu0 0
  %225 = vmatpush1.bf16.msra.mxu0 0
  %226 = vmatprep.subr.bf16.mxu0 0
  %227 = vmatpush1.bf16.msra.mxu0 0
  %228 = vmatprep.subr.bf16.mxu0 0
  %229 = vmatpush1.bf16.msra.mxu0 0
  %230 = vmatprep.subr.bf16.mxu0 0
  %231 = vmatpush1.bf16.msra.mxu0 0
  %232 = vmatprep.subr.bf16.mxu0 0
  %233 = vmatpush1.bf16.msra.mxu0 0
  %234 = vmatprep.subr.bf16.mxu0 0
  %235 = vmatpush1.bf16.msra.mxu0 0
  %236 = vmatprep.mubr.bf16.mxu0 0
  %237 = vmatmul.mubr.bf16.gmra.mrb[0].mxu0 %v124
  %v238 = vpop.f32.mrb[0].mxu0
  %v239 = vadd.f32 0.0, %v238
  %v240 = vpop.f32.mrb[0].mxu0
  %v241 = vpop.f32.mrb[0].mxu0
  %v242 = vadd.f32 0.0, %v241
  %v243 = vpop.f32.mrb[0].mxu0
  %244 = vmatprep.mubr.bf16.mxu0 0
  %245 = vmatmul.mubr.bf16.gmra.mrb[0].mxu0 %v125
  %v246 = vpop.f32.mrb[0].mxu0
  %v247 = vadd.f32 0.0, %v246
  %v248 = vpop.f32.mrb[0].mxu0
  %v249 = vpop.f32.mrb[0].mxu0
  %v250 = vadd.f32 0.0, %v249
  %v251 = vpop.f32.mrb[0].mxu0
  %252 = vmatprep.mubr.bf16.mxu0 0
  %253 = vmatmul.mubr.bf16.gmra.mrb[0].mxu0 %v126
  %v254 = vpop.f32.mrb[0].mxu0
  %v255 = vadd.f32 0.0, %v254
  %v256 = vpop.f32.mrb[0].mxu0
  %v257 = vpop.f32.mrb[0].mxu0
  %v258 = vadd.f32 0.0, %v257
  %v259 = vpop.f32.mrb[0].mxu0
  %260 = vmatprep.mubr.bf16.mxu0 0
  %261 = vmatmul.mubr.bf16.gmra.mrb[0].mxu0 %v127
  %v262 = vpop.f32.mrb[0].mxu0
  %v263 = vadd.f32 0.0, %v262
  %v264 = vpop.f32.mrb[0].mxu0
  %v265 = vpop.f32.mrb[0].mxu0
  %v266 = vadd.f32 0.0, %v265
  %v267 = vpop.f32.mrb[0].mxu0
  %268 = vmatprep.mubr.bf16.mxu0 0
  %269 = vmatmul.mubr.bf16.gmra.mrb[0].mxu0 %v128
  %v270 = vpop.f32.mrb[0].mxu0
  %v271 = vadd.f32 0.0, %v270
  %v272 = vpop.f32.mrb[0].mxu0
  %v273 = vpop.f32.mrb[0].mxu0
  %v274 = vadd.f32 0.0, %v273
  %v275 = vpop.f32.mrb[0].mxu0
  %276 = vmatprep.mubr.bf16.mxu0 0
  %277 = vmatmul.mubr.bf16.gmra.mrb[0].mxu0 %v129
  %v278 = vpop.f32.mrb[0].mxu0
  %v279 = vadd.f32 0.0, %v278
  %v280 = vpop.f32.mrb[0].mxu0
  %v281 = vpop.f32.mrb[0].mxu0
  %v282 = vadd.f32 0.0, %v281
  %v283 = vpop.f32.mrb[0].mxu0
  %284 = vmatprep.mubr.bf16.mxu0 0
  %285 = vmatmul.mubr.bf16.gmra.mrb[0].mxu0 %v130
  %v286 = vpop.f32.mrb[0].mxu0
  %v287 = vadd.f32 0.0, %v286
  %v288 = vpop.f32.mrb[0].mxu0
  %v289 = vpop.f32.mrb[0].mxu0
  %v290 = vadd.f32 0.0, %v289
  %v291 = vpop.f32.mrb[0].mxu0
  %292 = vmatprep.mubr.bf16.mxu0 0
  %293 = vmatmul.mubr.bf16.gmra.mrb[0].mxu0 %v131
  %v294 = vpop.f32.mrb[0].mxu0
  %v295 = vadd.f32 0.0, %v294
  %v296 = vpop.f32.mrb[0].mxu0
  %v297 = vpop.f32.mrb[0].mxu0
  %v298 = vadd.f32 0.0, %v297
  %v299 = vpop.f32.mrb[0].mxu0
  %300 = vmatprep.mubr.bf16.mxu0 0
  %301 = vmatmul.mubr.bf16.gmra.mrb[0].mxu0 %v132
  %v302 = vpop.f32.mrb[0].mxu0
  %v303 = vadd.f32 0.0, %v302
  %v304 = vpop.f32.mrb[0].mxu0
  %v305 = vpop.f32.mrb[0].mxu0
  %v306 = vadd.f32 0.0, %v305
  %v307 = vpop.f32.mrb[0].mxu0
  %308 = vmatprep.mubr.bf16.mxu0 0
  %309 = vmatmul.mubr.bf16.gmra.mrb[0].mxu0 %v133
  %v310 = vpop.f32.mrb[0].mxu0
  %v311 = vadd.f32 0.0, %v310
  %v312 = vpop.f32.mrb[0].mxu0
  %v313 = vpop.f32.mrb[0].mxu0
  %v314 = vadd.f32 0.0, %v313
  %v315 = vpop.f32.mrb[0].mxu0
  %316 = vmatprep.mubr.bf16.mxu0 0
  %317 = vmatmul.mubr.bf16.gmra.mrb[0].mxu0 %v134
  %v318 = vpop.f32.mrb[0].mxu0
  %v319 = vadd.f32 0.0, %v318
  %v320 = vpop.f32.mrb[0].mxu0
  %v321 = vpop.f32.mrb[0].mxu0
  %v322 = vadd.f32 0.0, %v321
  %v323 = vpop.f32.mrb[0].mxu0
  %324 = vmatprep.mubr.bf16.mxu0 0
  %325 = vmatmul.mubr.bf16.gmra.mrb[0].mxu0 %v135
  %v326 = vpop.f32.mrb[0].mxu0
  %v327 = vadd.f32 0.0, %v326
  %v328 = vpop.f32.mrb[0].mxu0
  %v329 = vpop.f32.mrb[0].mxu0
  %v330 = vadd.f32 0.0, %v329
  %v331 = vpop.f32.mrb[0].mxu0
  %332 = vmatprep.mubr.bf16.mxu0 0
  %333 = vmatmul.mubr.bf16.gmra.mrb[0].mxu0 %v136
  %v334 = vpop.f32.mrb[0].mxu0
  %v335 = vadd.f32 0.0, %v334
  %v336 = vpop.f32.mrb[0].mxu0
  %v337 = vpop.f32.mrb[0].mxu0
  %v338 = vadd.f32 0.0, %v337
  %v339 = vpop.f32.mrb[0].mxu0
  %340 = vmatprep.mubr.bf16.mxu0 0
  %341 = vmatmul.mubr.bf16.gmra.mrb[0].mxu0 %v137
  %v342 = vpop.f32.mrb[0].mxu0
  %v343 = vadd.f32 0.0, %v342
  %v344 = vpop.f32.mrb[0].mxu0
  %v345 = vpop.f32.mrb[0].mxu0
  %v346 = vadd.f32 0.0, %v345
  %v347 = vpop.f32.mrb[0].mxu0
  %348 = vmatprep.mubr.bf16.mxu0 0
  %349 = vmatmul.mubr.bf16.gmra.mrb[0].mxu0 %v138
  %v350 = vpop.f32.mrb[0].mxu0
  %v351 = vadd.f32 0.0, %v350
  %v352 = vpop.f32.mrb[0].mxu0
  %v353 = vpop.f32.mrb[0].mxu0
  %v354 = vadd.f32 0.0, %v353
  %v355 = vpop.f32.mrb[0].mxu0
  %356 = vmatprep.mubr.bf16.mxu0 0
  %357 = vmatmul.mubr.bf16.gmra.mrb[0].mxu0 %v139
  %v358 = vpop.f32.mrb[0].mxu0
  %v359 = vadd.f32 0.0, %v358
  %v360 = vpop.f32.mrb[0].mxu0
  %v361 = vpop.f32.mrb[0].mxu0
  %v362 = vadd.f32 0.0, %v361
  %v363 = vpop.f32.mrb[0].mxu0
  %364 = vdwg.mxu0
  %v365 = vpack.c.bf16 %v242, %v239
  %v366 = vpack.c.bf16 %v250, %v247
  %v367 = vpack.c.bf16 %v258, %v255
  %v368 = vpack.c.bf16 %v266, %v263
  %v369 = vpack.c.bf16 %v274, %v271
  %v370 = vpack.c.bf16 %v282, %v279
  %v371 = vpack.c.bf16 %v290, %v287
  %v372 = vpack.c.bf16 %v298, %v295
  %v373 = vpack.c.bf16 %v306, %v303
  %v374 = vpack.c.bf16 %v314, %v311
  %v375 = vpack.c.bf16 %v322, %v319
  %v376 = vpack.c.bf16 %v330, %v327
  %v377 = vpack.c.bf16 %v338, %v335
  %v378 = vpack.c.bf16 %v346, %v343
  %v379 = vpack.c.bf16 %v354, %v351
  %v380 = vpack.c.bf16 %v362, %v359
  %v397 = vunpack.c.l.b16 %v365
  %v398 = vunpack.c.h.b16 %v365
  %v399 = vunpack.c.l.b16 %v366
  %v400 = vunpack.c.h.b16 %v366
  %v401 = vunpack.c.l.b16 %v367
  %v402 = vunpack.c.h.b16 %v367
  %v403 = vunpack.c.l.b16 %v368
  %v404 = vunpack.c.h.b16 %v368
  %v405 = vunpack.c.l.b16 %v369
  %v406 = vunpack.c.h.b16 %v369
  %v407 = vunpack.c.l.b16 %v370
  %v408 = vunpack.c.h.b16 %v370
  %v409 = vunpack.c.l.b16 %v371
  %v410 = vunpack.c.h.b16 %v371
  %v411 = vunpack.c.l.b16 %v372
  %v412 = vunpack.c.h.b16 %v372
  %v413 = vunpack.c.l.b16 %v373
  %v414 = vunpack.c.h.b16 %v373
  %v415 = vunpack.c.l.b16 %v374
  %v416 = vunpack.c.h.b16 %v374
  %v417 = vunpack.c.l.b16 %v375
  %v418 = vunpack.c.h.b16 %v375
  %v419 = vunpack.c.l.b16 %v376
  %v420 = vunpack.c.h.b16 %v376
  %v421 = vunpack.c.l.b16 %v377
  %v422 = vunpack.c.h.b16 %v377
  %v423 = vunpack.c.l.b16 %v378
  %v424 = vunpack.c.h.b16 %v378
  %v425 = vunpack.c.l.b16 %v379
  %v426 = vunpack.c.h.b16 %v379
  %v427 = vunpack.c.l.b16 %v380
  %v428 = vunpack.c.h.b16 %v380
  %v429 = vpack.c.b16 %v397, %v397
  %v430 = vpack.c.b16 %v398, %v398
  %v431 = vpack.c.b16 %v399, %v399
  %v432 = vpack.c.b16 %v400, %v400
  %v433 = vpack.c.b16 %v401, %v401
  %v434 = vpack.c.b16 %v402, %v402
  %v435 = vpack.c.b16 %v403, %v403
  %v436 = vpack.c.b16 %v404, %v404
  %v437 = vpack.c.b16 %v405, %v405
  %v438 = vpack.c.b16 %v406, %v406
  %v439 = vpack.c.b16 %v407, %v407
  %v440 = vpack.c.b16 %v408, %v408
  %v441 = vpack.c.b16 %v409, %v409
  %v442 = vpack.c.b16 %v410, %v410
  %v443 = vpack.c.b16 %v411, %v411
  %v444 = vpack.c.b16 %v412, %v412
  %v445 = vpack.c.b16 %v413, %v413
  %v446 = vpack.c.b16 %v414, %v414
  %v447 = vpack.c.b16 %v415, %v415
  %v448 = vpack.c.b16 %v416, %v416
  %v449 = vpack.c.b16 %v417, %v417
  %v450 = vpack.c.b16 %v418, %v418
  %v451 = vpack.c.b16 %v419, %v419
  %v452 = vpack.c.b16 %v420, %v420
  %v453 = vpack.c.b16 %v421, %v421
  %v454 = vpack.c.b16 %v422, %v422
  %v455 = vpack.c.b16 %v423, %v423
  %v456 = vpack.c.b16 %v424, %v424
  %v457 = vpack.c.b16 %v425, %v425
  %v458 = vpack.c.b16 %v426, %v426
  %v459 = vpack.c.b16 %v427, %v427
  %v460 = vpack.c.b16 %v428, %v428
  %493 = vst [vmem:[%s2] sm:$0xf] %v429
  %494 = vst [vmem:[%s2 + $0x4] sm:$0xf] %v430
  %495 = vst [vmem:[%s2 + $0x8] sm:$0xf] %v431
  %496 = vst [vmem:[%s2 + $0xc] sm:$0xf] %v432
  %497 = vst [vmem:[%s2 + $0x10] sm:$0xf] %v433
  %498 = vst [vmem:[%s2 + $0x14] sm:$0xf] %v434
  %499 = vst [vmem:[%s2 + $0x18] sm:$0xf] %v435
  %500 = vst [vmem:[%s2 + $0x1c] sm:$0xf] %v436
  %501 = vst [vmem:[%s2 + $0x20] sm:$0xf] %v437
  %502 = vst [vmem:[%s2 + $0x24] sm:$0xf] %v438
  %503 = vst [vmem:[%s2 + $0x28] sm:$0xf] %v439
  %504 = vst [vmem:[%s2 + $0x2c] sm:$0xf] %v440
  %505 = vst [vmem:[%s2 + $0x30] sm:$0xf] %v441
  %506 = vst [vmem:[%s2 + $0x34] sm:$0xf] %v442
  %507 = vst [vmem:[%s2 + $0x38] sm:$0xf] %v443
  %508 = vst [vmem:[%s2 + $0x3c] sm:$0xf] %v444
  %509 = vst [vmem:[%s2 + $0x40] sm:$0xf] %v445
  %510 = vst [vmem:[%s2 + $0x44] sm:$0xf] %v446
  %511 = vst [vmem:[%s2 + $0x48] sm:$0xf] %v447
  %512 = vst [vmem:[%s2 + $0x4c] sm:$0xf] %v448
  %513 = vst [vmem:[%s2 + $0x50] sm:$0xf] %v449
  %514 = vst [vmem:[%s2 + $0x54] sm:$0xf] %v450
  %515 = vst [vmem:[%s2 + $0x58] sm:$0xf] %v451
  %516 = vst [vmem:[%s2 + $0x5c] sm:$0xf] %v452
  %517 = vst [vmem:[%s2 + $0x60] sm:$0xf] %v453
  %518 = vst [vmem:[%s2 + $0x64] sm:$0xf] %v454
  %519 = vst [vmem:[%s2 + $0x68] sm:$0xf] %v455
  %520 = vst [vmem:[%s2 + $0x6c] sm:$0xf] %v456
  %521 = vst [vmem:[%s2 + $0x70] sm:$0xf] %v457
  %522 = vst [vmem:[%s2 + $0x74] sm:$0xf] %v458
  %523 = vst [vmem:[%s2 + $0x78] sm:$0xf] %v459
  %524 = vst [vmem:[%s2 + $0x7c] sm:$0xf] %v460
  // Predicated region
  $region10: #{job_classifier_gnn_forward.3} parent=0 // pred_check
    _
  $region11: #{job_classifier_gnn_forward.3} parent=0 // pred_check_branch
    %526 = sbr.rel (0) target = $region13
  $region12: #{job_classifier_gnn_forward.3} parent=0 // pred_region
    _
  $region13: #{job_classifier_gnn_forward.3} parent=0 // pred_fallthru
    _
  // Predicated region
  $region14: #{job_classifier_gnn_forward.3} parent=0 // pred_check
    _
  $region15: #{job_classifier_gnn_forward.3} parent=0 // pred_check_branch
    %528 = sbr.rel (0) target = $region17
  $region16: #{job_classifier_gnn_forward.3} parent=0 // pred_region
    _
  $region17: #{job_classifier_gnn_forward.3} parent=0 // pred_fallthru
    _

// kernel: job_classifier_gnn_forward.4
$region0: #{job_classifier_gnn_forward.4}
  #allocation0 [shape = 'u32[]', space=smem, size = 0x4, offset = 0x4, fixed_abs, tag = 'smem constant byte address 0x4 - core index']
  #allocation1 [shape = 'u32[144,128]{1,0:T(1,128)}', space=vmem, size = 0x12000, scoped, tag = 'internal scratch']
  #allocation2 [shape = 'f32[256,128]{1,0:T(8,128)}', space=vmem, size = 0x20000, scoped, tag = 'scratch operand']
  %s0 = inlined_call_operand.vmem [shape: bf16[256,256], index: 0, kind: input, shape index: {}]
  %s1 = inlined_call_operand.vmem [shape: bf16[256,128], index: 1, kind: input, shape index: {}]
  %s2 = inlined_call_operand.vmem [shape: f32[1,128], index: 2, kind: input, shape index: {}]
  %s3 = inlined_call_operand.vmem [shape: bf16[128,128], index: 3, kind: input, shape index: {}]
  %s4 = inlined_call_operand.vmem [shape: bf16[256,128], index: 4, kind: output, shape index: {}]
  %s5 = sld [smem:[#allocation0]]
  $region34: #{job_classifier_gnn_forward.4} parent=0
    _
  %s7 = ssub.s32 1, %s5
  %s8 = scalar_select 0, %s7, %s5
  // Predicated region
  $region2: #{job_classifier_gnn_forward.4} parent=0 // pred_check
    _
  $region3: #{job_classifier_gnn_forward.4} parent=0 // pred_check_branch
    %10 = sbr.rel (0) target = $region5
  $region4: #{job_classifier_gnn_forward.4} parent=0 // pred_region
    _
  $region5: #{job_classifier_gnn_forward.4} parent=0 // pred_fallthru
    _
  // Predicated region
  $region6: #{job_classifier_gnn_forward.4} parent=0 // pred_check
    _
  $region7: #{job_classifier_gnn_forward.4} parent=0 // pred_check_branch
    %12 = sbr.rel (0) target = $region9
  $region8: #{job_classifier_gnn_forward.4} parent=0 // pred_region
    _
  $region9: #{job_classifier_gnn_forward.4} parent=0 // pred_fallthru
    _
  // Predicated region
  $region10: #{job_classifier_gnn_forward.4} parent=0 // pred_check
    _
  $region11: #{job_classifier_gnn_forward.4} parent=0 // pred_check_branch
    %14 = sbr.rel (0) target = $region13
  $region12: #{job_classifier_gnn_forward.4} parent=0 // pred_region
    _
  $region13: #{job_classifier_gnn_forward.4} parent=0 // pred_fallthru
    _
  // Predicated region
  $region14: #{job_classifier_gnn_forward.4} parent=0 // pred_check
    _
  $region15: #{job_classifier_gnn_forward.4} parent=0 // pred_check_branch
    %16 = sbr.rel (0) target = $region17
  $region16: #{job_classifier_gnn_forward.4} parent=0 // pred_region
    _
  $region17: #{job_classifier_gnn_forward.4} parent=0 // pred_fallthru
    _
  %p18 = scmp.eq.s32.totalorder 0, 0
  // Predicated region
  $region18: #{job_classifier_gnn_forward.4} parent=0 // pred_check
    %p19 = pneg %p18
  $region19: #{job_classifier_gnn_forward.4} parent=0 // pred_check_branch
    %21 = sbr.rel (%p19) target = $region21
  $region20: #{job_classifier_gnn_forward.4} parent=0 // pred_region
    %22 = vst [vmem:[#allocation2] sm:$0xff] 0.0
    %23 = vst [vmem:[#allocation2 + $0x8] sm:$0xff] 0.0
    %24 = vst [vmem:[#allocation2 + $0x10] sm:$0xff] 0.0
    %25 = vst [vmem:[#allocation2 + $0x18] sm:$0xff] 0.0
    %26 = vst [vmem:[#allocation2 + $0x20] sm:$0xff] 0.0
    %27 = vst [vmem:[#allocation2 + $0x28] sm:$0xff] 0.0
    %28 = vst [vmem:[#allocation2 + $0x30] sm:$0xff] 0.0
    %29 = vst [vmem:[#allocation2 + $0x38] sm:$0xff] 0.0
    %30 = vst [vmem:[#allocation2 + $0x40] sm:$0xff] 0.0
    %31 = vst [vmem:[#allocation2 + $0x48] sm:$0xff] 0.0
    %32 = vst [vmem:[#allocation2 + $0x50] sm:$0xff] 0.0
    %33 = vst [vmem:[#allocation2 + $0x58] sm:$0xff] 0.0
    %34 = vst [vmem:[#allocation2 + $0x60] sm:$0xff] 0.0
    %35 = vst [vmem:[#allocation2 + $0x68] sm:$0xff] 0.0
    %36 = vst [vmem:[#allocation2 + $0x70] sm:$0xff] 0.0
    %37 = vst [vmem:[#allocation2 + $0x78] sm:$0xff] 0.0
    %38 = vst [vmem:[#allocation2 + $0x80] sm:$0xff] 0.0
    %39 = vst [vmem:[#allocation2 + $0x88] sm:$0xff] 0.0
    %40 = vst [vmem:[#allocation2 + $0x90] sm:$0xff] 0.0
    %41 = vst [vmem:[#allocation2 + $0x98] sm:$0xff] 0.0
    %42 = vst [vmem:[#allocation2 + $0xa0] sm:$0xff] 0.0
    %43 = vst [vmem:[#allocation2 + $0xa8] sm:$0xff] 0.0
    %44 = vst [vmem:[#allocation2 + $0xb0] sm:$0xff] 0.0
    %45 = vst [vmem:[#allocation2 + $0xb8] sm:$0xff] 0.0
    %46 = vst [vmem:[#allocation2 + $0xc0] sm:$0xff] 0.0
    %47 = vst [vmem:[#allocation2 + $0xc8] sm:$0xff] 0.0
    %48 = vst [vmem:[#allocation2 + $0xd0] sm:$0xff] 0.0
    %49 = vst [vmem:[#allocation2 + $0xd8] sm:$0xff] 0.0
    %50 = vst [vmem:[#allocation2 + $0xe0] sm:$0xff] 0.0
    %51 = vst [vmem:[#allocation2 + $0xe8] sm:$0xff] 0.0
    %52 = vst [vmem:[#allocation2 + $0xf0] sm:$0xff] 0.0
    %53 = vst [vmem:[#allocation2 + $0xf8] sm:$0xff] 0.0
  $region21: #{job_classifier_gnn_forward.4} parent=0 // pred_fallthru
    _
  %s54 = smul.u32 0, 256
  %v55 = vld [vmem:[#allocation2] sm:$0xff]
  %v56 = vld [vmem:[#allocation2 + $0x8] sm:$0xff]
  %v57 = vld [vmem:[#allocation2 + $0x10] sm:$0xff]
  %v58 = vld [vmem:[#allocation2 + $0x18] sm:$0xff]
  %v59 = vld [vmem:[#allocation2 + $0x20] sm:$0xff]
  %v60 = vld [vmem:[#allocation2 + $0x28] sm:$0xff]
  %v61 = vld [vmem:[#allocation2 + $0x30] sm:$0xff]
  %v62 = vld [vmem:[#allocation2 + $0x38] sm:$0xff]
  %v63 = vld [vmem:[#allocation2 + $0x40] sm:$0xff]
  %v64 = vld [vmem:[#allocation2 + $0x48] sm:$0xff]
  %v65 = vld [vmem:[#allocation2 + $0x50] sm:$0xff]
  %v66 = vld [vmem:[#allocation2 + $0x58] sm:$0xff]
  %v67 = vld [vmem:[#allocation2 + $0x60] sm:$0xff]
  %v68 = vld [vmem:[#allocation2 + $0x68] sm:$0xff]
  %v69 = vld [vmem:[#allocation2 + $0x70] sm:$0xff]
  %v70 = vld [vmem:[#allocation2 + $0x78] sm:$0xff]
  %v71 = vld [vmem:[#allocation2 + $0x80] sm:$0xff]
  %v72 = vld [vmem:[#allocation2 + $0x88] sm:$0xff]
  %v73 = vld [vmem:[#allocation2 + $0x90] sm:$0xff]
  %v74 = vld [vmem:[#allocation2 + $0x98] sm:$0xff]
  %v75 = vld [vmem:[#allocation2 + $0xa0] sm:$0xff]
  %v76 = vld [vmem:[#allocation2 + $0xa8] sm:$0xff]
  %v77 = vld [vmem:[#allocation2 + $0xb0] sm:$0xff]
  %v78 = vld [vmem:[#allocation2 + $0xb8] sm:$0xff]
  %v79 = vld [vmem:[#allocation2 + $0xc0] sm:$0xff]
  %v80 = vld [vmem:[#allocation2 + $0xc8] sm:$0xff]
  %v81 = vld [vmem:[#allocation2 + $0xd0] sm:$0xff]
  %v82 = vld [vmem:[#allocation2 + $0xd8] sm:$0xff]
  %v83 = vld [vmem:[#allocation2 + $0xe0] sm:$0xff]
  %v84 = vld [vmem:[#allocation2 + $0xe8] sm:$0xff]
  %v85 = vld [vmem:[#allocation2 + $0xf0] sm:$0xff]
  %v86 = vld [vmem:[#allocation2 + $0xf8] sm:$0xff]
  %v87 = vld [vmem:[%s0] sm:$0xff]
  %v88 = vld [vmem:[%s0 + $0x8] sm:$0xff]
  %v89 = vld [vmem:[%s0 + $0x10] sm:$0xff]
  %v90 = vld [vmem:[%s0 + $0x18] sm:$0xff]
  %v91 = vld [vmem:[%s0 + $0x20] sm:$0xff]
  %v92 = vld [vmem:[%s0 + $0x28] sm:$0xff]
  %v93 = vld [vmem:[%s0 + $0x30] sm:$0xff]
  %v94 = vld [vmem:[%s0 + $0x38] sm:$0xff]
  %v95 = vld [vmem:[%s0 + $0x40] sm:$0xff]
  %v96 = vld [vmem:[%s0 + $0x48] sm:$0xff]
  %v97 = vld [vmem:[%s0 + $0x50] sm:$0xff]
  %v98 = vld [vmem:[%s0 + $0x58] sm:$0xff]
  %v99 = vld [vmem:[%s0 + $0x60] sm:$0xff]
  %v100 = vld [vmem:[%s0 + $0x68] sm:$0xff]
  %v101 = vld [vmem:[%s0 + $0x70] sm:$0xff]
  %v102 = vld [vmem:[%s0 + $0x78] sm:$0xff]
  %v103 = vld [vmem:[%s0 + $0x80] sm:$0xff]
  %v104 = vld [vmem:[%s0 + $0x88] sm:$0xff]
  %v105 = vld [vmem:[%s0 + $0x90] sm:$0xff]
  %v106 = vld [vmem:[%s0 + $0x98] sm:$0xff]
  %v107 = vld [vmem:[%s0 + $0xa0] sm:$0xff]
  %v108 = vld [vmem:[%s0 + $0xa8] sm:$0xff]
  %v109 = vld [vmem:[%s0 + $0xb0] sm:$0xff]
  %v110 = vld [vmem:[%s0 + $0xb8] sm:$0xff]
  %v111 = vld [vmem:[%s0 + $0xc0] sm:$0xff]
  %v112 = vld [vmem:[%s0 + $0xc8] sm:$0xff]
  %v113 = vld [vmem:[%s0 + $0xd0] sm:$0xff]
  %v114 = vld [vmem:[%s0 + $0xd8] sm:$0xff]
  %v115 = vld [vmem:[%s0 + $0xe0] sm:$0xff]
  %v116 = vld [vmem:[%s0 + $0xe8] sm:$0xff]
  %v117 = vld [vmem:[%s0 + $0xf0] sm:$0xff]
  %v118 = vld [vmem:[%s0 + $0xf8] sm:$0xff]
  %s119 = sshra.s32 %s54, 3
  %s120 = sand.u32 %s54, 7
  %s121 = smul.addr %s119, 4
  %s122 = scalar_lea.vmem %s1, %s121
  %v123 = vld [vmem:[%s122] sm:$0xf]
  %v124 = vld [vmem:[%s122 + $0x4] sm:$0xf]
  %v125 = vld [vmem:[%s122 + $0x8] sm:$0xf]
  %v126 = vld [vmem:[%s122 + $0xc] sm:$0xf]
  %v127 = vld [vmem:[%s122 + $0x10] sm:$0xf]
  %v128 = vld [vmem:[%s122 + $0x14] sm:$0xf]
  %v129 = vld [vmem:[%s122 + $0x18] sm:$0xf]
  %v130 = vld [vmem:[%s122 + $0x1c] sm:$0xf]
  %v131 = vld [vmem:[%s122 + $0x20] sm:$0xf]
  %v132 = vld [vmem:[%s122 + $0x24] sm:$0xf]
  %v133 = vld [vmem:[%s122 + $0x28] sm:$0xf]
  %v134 = vld [vmem:[%s122 + $0x2c] sm:$0xf]
  %v135 = vld [vmem:[%s122 + $0x30] sm:$0xf]
  %v136 = vld [vmem:[%s122 + $0x34] sm:$0xf]
  %v137 = vld [vmem:[%s122 + $0x38] sm:$0xf]
  %v138 = vld [vmem:[%s122 + $0x3c] sm:$0xf]
  %v139 = vld [vmem:[%s122 + $0x40] sm:$0xf]
  %v140 = vld [vmem:[%s122 + $0x44] sm:$0xf]
  %v141 = vld [vmem:[%s122 + $0x48] sm:$0xf]
  %v142 = vld [vmem:[%s122 + $0x4c] sm:$0xf]
  %v143 = vld [vmem:[%s122 + $0x50] sm:$0xf]
  %v144 = vld [vmem:[%s122 + $0x54] sm:$0xf]
  %v145 = vld [vmem:[%s122 + $0x58] sm:$0xf]
  %v146 = vld [vmem:[%s122 + $0x5c] sm:$0xf]
  %v147 = vld [vmem:[%s122 + $0x60] sm:$0xf]
  %v148 = vld [vmem:[%s122 + $0x64] sm:$0xf]
  %v149 = vld [vmem:[%s122 + $0x68] sm:$0xf]
  %v150 = vld [vmem:[%s122 + $0x6c] sm:$0xf]
  %v151 = vld [vmem:[%s122 + $0x70] sm:$0xf]
  %v152 = vld [vmem:[%s122 + $0x74] sm:$0xf]
  %v153 = vld [vmem:[%s122 + $0x78] sm:$0xf]
  %v154 = vld [vmem:[%s122 + $0x7c] sm:$0xf]
  %v187 = vunpack.c.l.b16 %v87
  %v188 = vunpack.c.h.b16 %v87
  %v189 = vunpack.c.l.b16 %v88
  %v190 = vunpack.c.h.b16 %v88
  %v191 = vunpack.c.l.b16 %v89
  %v192 = vunpack.c.h.b16 %v89
  %v193 = vunpack.c.l.b16 %v90
  %v194 = vunpack.c.h.b16 %v90
  %v195 = vunpack.c.l.b16 %v91
  %v196 = vunpack.c.h.b16 %v91
  %v197 = vunpack.c.l.b16 %v92
  %v198 = vunpack.c.h.b16 %v92
  %v199 = vunpack.c.l.b16 %v93
  %v200 = vunpack.c.h.b16 %v93
  %v201 = vunpack.c.l.b16 %v94
  %v202 = vunpack.c.h.b16 %v94
  %v203 = vunpack.c.l.b16 %v95
  %v204 = vunpack.c.h.b16 %v95
  %v205 = vunpack.c.l.b16 %v96
  %v206 = vunpack.c.h.b16 %v96
  %v207 = vunpack.c.l.b16 %v97
  %v208 = vunpack.c.h.b16 %v97
  %v209 = vunpack.c.l.b16 %v98
  %v210 = vunpack.c.h.b16 %v98
  %v211 = vunpack.c.l.b16 %v99
  %v212 = vunpack.c.h.b16 %v99
  %v213 = vunpack.c.l.b16 %v100
  %v214 = vunpack.c.h.b16 %v100
  %v215 = vunpack.c.l.b16 %v101
  %v216 = vunpack.c.h.b16 %v101
  %v217 = vunpack.c.l.b16 %v102
  %v218 = vunpack.c.h.b16 %v102
  %v219 = vunpack.c.l.b16 %v103
  %v220 = vunpack.c.h.b16 %v103
  %v221 = vunpack.c.l.b16 %v104
  %v222 = vunpack.c.h.b16 %v104
  %v223 = vunpack.c.l.b16 %v105
  %v224 = vunpack.c.h.b16 %v105
  %v225 = vunpack.c.l.b16 %v106
  %v226 = vunpack.c.h.b16 %v106
  %v227 = vunpack.c.l.b16 %v107
  %v228 = vunpack.c.h.b16 %v107
  %v229 = vunpack.c.l.b16 %v108
  %v230 = vunpack.c.h.b16 %v108
  %v231 = vunpack.c.l.b16 %v109
  %v232 = vunpack.c.h.b16 %v109
  %v233 = vunpack.c.l.b16 %v110
  %v234 = vunpack.c.h.b16 %v110
  %v235 = vunpack.c.l.b16 %v111
  %v236 = vunpack.c.h.b16 %v111
  %v237 = vunpack.c.l.b16 %v112
  %v238 = vunpack.c.h.b16 %v112
  %v239 = vunpack.c.l.b16 %v113
  %v240 = vunpack.c.h.b16 %v113
  %v241 = vunpack.c.l.b16 %v114
  %v242 = vunpack.c.h.b16 %v114
  %v243 = vunpack.c.l.b16 %v115
  %v244 = vunpack.c.h.b16 %v115
  %v245 = vunpack.c.l.b16 %v116
  %v246 = vunpack.c.h.b16 %v116
  %v247 = vunpack.c.l.b16 %v117
  %v248 = vunpack.c.h.b16 %v117
  %v249 = vunpack.c.l.b16 %v118
  %v250 = vunpack.c.h.b16 %v118
  %v251 = vpack.c.b16 %v189, %v187
  %v252 = vpack.c.b16 %v190, %v188
  %v253 = vpack.c.b16 %v193, %v191
  %v254 = vpack.c.b16 %v194, %v192
  %v255 = vpack.c.b16 %v197, %v195
  %v256 = vpack.c.b16 %v198, %v196
  %v257 = vpack.c.b16 %v201, %v199
  %v258 = vpack.c.b16 %v202, %v200
  %v259 = vpack.c.b16 %v205, %v203
  %v260 = vpack.c.b16 %v206, %v204
  %v261 = vpack.c.b16 %v209, %v207
  %v262 = vpack.c.b16 %v210, %v208
  %v263 = vpack.c.b16 %v213, %v211
  %v264 = vpack.c.b16 %v214, %v212
  %v265 = vpack.c.b16 %v217, %v215
  %v266 = vpack.c.b16 %v218, %v216
  %v267 = vpack.c.b16 %v221, %v219
  %v268 = vpack.c.b16 %v222, %v220
  %v269 = vpack.c.b16 %v225, %v223
  %v270 = vpack.c.b16 %v226, %v224
  %v271 = vpack.c.b16 %v229, %v227
  %v272 = vpack.c.b16 %v230, %v228
  %v273 = vpack.c.b16 %v233, %v231
  %v274 = vpack.c.b16 %v234, %v232
  %v275 = vpack.c.b16 %v237, %v235
  %v276 = vpack.c.b16 %v238, %v236
  %v277 = vpack.c.b16 %v241, %v239
  %v278 = vpack.c.b16 %v242, %v240
  %v279 = vpack.c.b16 %v245, %v243
  %v280 = vpack.c.b16 %v246, %v244
  %v281 = vpack.c.b16 %v249, %v247
  %v282 = vpack.c.b16 %v250, %v248
  %v347 = vunpack.c.l.b16 %v123
  %v348 = vunpack.c.l.b16 %v124
  %v349 = vunpack.c.l.b16 %v125
  %v350 = vunpack.c.l.b16 %v126
  %v351 = vunpack.c.l.b16 %v127
  %v352 = vunpack.c.l.b16 %v128
  %v353 = vunpack.c.l.b16 %v129
  %v354 = vunpack.c.l.b16 %v130
  %v355 = vunpack.c.l.b16 %v131
  %v356 = vunpack.c.l.b16 %v132
  %v357 = vunpack.c.l.b16 %v133
  %v358 = vunpack.c.l.b16 %v134
  %v359 = vunpack.c.l.b16 %v135
  %v360 = vunpack.c.l.b16 %v136
  %v361 = vunpack.c.l.b16 %v137
  %v362 = vunpack.c.l.b16 %v138
  %v363 = vunpack.c.l.b16 %v139
  %v364 = vunpack.c.l.b16 %v140
  %v365 = vunpack.c.l.b16 %v141
  %v366 = vunpack.c.l.b16 %v142
  %v367 = vunpack.c.l.b16 %v143
  %v368 = vunpack.c.l.b16 %v144
  %v369 = vunpack.c.l.b16 %v145
  %v370 = vunpack.c.l.b16 %v146
  %v371 = vunpack.c.l.b16 %v147
  %v372 = vunpack.c.l.b16 %v148
  %v373 = vunpack.c.l.b16 %v149
  %v374 = vunpack.c.l.b16 %v150
  %v375 = vunpack.c.l.b16 %v151
  %v376 = vunpack.c.l.b16 %v152
  %v377 = vunpack.c.l.b16 %v153
  %v378 = vunpack.c.l.b16 %v154
  %v379 = vpack.c.b16 %v348, %v347
  %v380 = vpack.c.b16 %v350, %v349
  %v381 = vpack.c.b16 %v352, %v351
  %v382 = vpack.c.b16 %v354, %v353
  %v383 = vpack.c.b16 %v356, %v355
  %v384 = vpack.c.b16 %v358, %v357
  %v385 = vpack.c.b16 %v360, %v359
  %v386 = vpack.c.b16 %v362, %v361
  %v387 = vpack.c.b16 %v364, %v363
  %v388 = vpack.c.b16 %v366, %v365
  %v389 = vpack.c.b16 %v368, %v367
  %v390 = vpack.c.b16 %v370, %v369
  %v391 = vpack.c.b16 %v372, %v371
  %v392 = vpack.c.b16 %v374, %v373
  %v393 = vpack.c.b16 %v376, %v375
  %v394 = vpack.c.b16 %v378, %v377
  %411 = vmatprep.subr.bf16.mxu0 0
  %412 = vmatpush1.bf16.msra.mxu0 %v379
  %413 = vmatprep.subr.bf16.mxu0 0
  %414 = vmatpush1.bf16.msra.mxu0 %v380
  %415 = vmatprep.subr.bf16.mxu0 0
  %416 = vmatpush1.bf16.msra.mxu0 %v381
  %417 = vmatprep.subr.bf16.mxu0 0
  %418 = vmatpush1.bf16.msra.mxu0 %v382
  %419 = vmatprep.subr.bf16.mxu0 0
  %420 = vmatpush1.bf16.msra.mxu0 %v383
  %421 = vmatprep.subr.bf16.mxu0 0
  %422 = vmatpush1.bf16.msra.mxu0 %v384
  %423 = vmatprep.subr.bf16.mxu0 0
  %424 = vmatpush1.bf16.msra.mxu0 %v385
  %425 = vmatprep.subr.bf16.mxu0 0
  %426 = vmatpush1.bf16.msra.mxu0 %v386
  %427 = vmatprep.subr.bf16.mxu0 0
  %428 = vmatpush1.bf16.msra.mxu0 %v387
  %429 = vmatprep.subr.bf16.mxu0 0
  %430 = vmatpush1.bf16.msra.mxu0 %v388
  %431 = vmatprep.subr.bf16.mxu0 0
  %432 = vmatpush1.bf16.msra.mxu0 %v389
  %433 = vmatprep.subr.bf16.mxu0 0
  %434 = vmatpush1.bf16.msra.mxu0 %v390
  %435 = vmatprep.subr.bf16.mxu0 0
  %436 = vmatpush1.bf16.msra.mxu0 %v391
  %437 = vmatprep.subr.bf16.mxu0 0
  %438 = vmatpush1.bf16.msra.mxu0 %v392
  %439 = vmatprep.subr.bf16.mxu0 0
  %440 = vmatpush1.bf16.msra.mxu0 %v393
  %441 = vmatprep.subr.bf16.mxu0 0
  %442 = vmatpush1.bf16.msra.mxu0 %v394
  %443 = vmatprep.mubr.bf16.mxu0 %v252
  %444 = vmatmul.mubr.bf16.gmra.mrb[0].mxu0 %v251
  %v445 = vpop.f32.mrb[0].mxu0
  %v446 = vadd.f32 0.0, %v445
  %v447 = vpop.f32.mrb[0].mxu0
  %v448 = vpop.f32.mrb[0].mxu0
  %v449 = vadd.f32 0.0, %v448
  %v450 = vpop.f32.mrb[0].mxu0
  %451 = vmatprep.mubr.bf16.mxu0 %v254
  %452 = vmatmul.mubr.bf16.gmra.mrb[0].mxu0 %v253
  %v453 = vpop.f32.mrb[0].mxu0
  %v454 = vadd.f32 0.0, %v453
  %v455 = vpop.f32.mrb[0].mxu0
  %v456 = vpop.f32.mrb[0].mxu0
  %v457 = vadd.f32 0.0, %v456
  %v458 = vpop.f32.mrb[0].mxu0
  %459 = vmatprep.mubr.bf16.mxu0 %v256
  %460 = vmatmul.mubr.bf16.gmra.mrb[0].mxu0 %v255
  %v461 = vpop.f32.mrb[0].mxu0
  %v462 = vadd.f32 0.0, %v461
  %v463 = vpop.f32.mrb[0].mxu0
  %v464 = vpop.f32.mrb[0].mxu0
  %v465 = vadd.f32 0.0, %v464
  %v466 = vpop.f32.mrb[0].mxu0
  %467 = vmatprep.mubr.bf16.mxu0 %v258
  %468 = vmatmul.mubr.bf16.gmra.mrb[0].mxu0 %v257
  %v469 = vpop.f32.mrb[0].mxu0
  %v470 = vadd.f32 0.0, %v469
  %v471 = vpop.f32.mrb[0].mxu0
  %v472 = vpop.f32.mrb[0].mxu0
  %v473 = vadd.f32 0.0, %v472
  %v474 = vpop.f32.mrb[0].mxu0
  %475 = vmatprep.mubr.bf16.mxu0 %v260
  %476 = vmatmul.mubr.bf16.gmra.mrb[0].mxu0 %v259
  %v477 = vpop.f32.mrb[0].mxu0
  %v478 = vadd.f32 0.0, %v477
  %v479 = vpop.f32.mrb[0].mxu0
  %v480 = vpop.f32.mrb[0].mxu0
  %v481 = vadd.f32 0.0, %v480
  %v482 = vpop.f32.mrb[0].mxu0
  %483 = vmatprep.mubr.bf16.mxu0 %v262
  %484 = vmatmul.mubr.bf16.gmra.mrb[0].mxu0 %v261
  %v485 = vpop.f32.mrb[0].mxu0
  %v486 = vadd.f32 0.0, %v485
  %v487 = vpop.f32.mrb[0].mxu0
  %v488 = vpop.f32.mrb[0].mxu0
  %v489 = vadd.f32 0.0, %v488
  %v490 = vpop.f32.mrb[0].mxu0
  %491 = vmatprep.mubr.bf16.mxu0 %v264
  %492 = vmatmul.mubr.bf16.gmra.mrb[0].mxu0 %v263
  %v493 = vpop.f32.mrb[0].mxu0
  %v494 = vadd.f32 0.0, %v493
  %v495 = vpop.f32.mrb[0].mxu0
  %v496 = vpop.f32.mrb[0].mxu0
  %v497 = vadd.f32 0.0, %v496
  %v498 = vpop.f32.mrb[0].mxu0
  %499 = vmatprep.mubr.bf16.mxu0 %v266
  %500 = vmatmul.mubr.bf16.gmra.mrb[0].mxu0 %v265
  %v501 = vpop.f32.mrb[0].mxu0
  %v502 = vadd.f32 0.0, %v501
  %v503 = vpop.f32.mrb[0].mxu0
  %v504 = vpop.f32.mrb[0].mxu0
  %v505 = vadd.f32 0.0, %v504
  %v506 = vpop.f32.mrb[0].mxu0
  %507 = vmatprep.mubr.bf16.mxu0 %v268
  %508 = vmatmul.mubr.bf16.gmra.mrb[0].mxu0 %v267
  %v509 = vpop.f32.mrb[0].mxu0
  %v510 = vadd.f32 0.0, %v509
  %v511 = vpop.f32.mrb[0].mxu0
  %v512 = vpop.f32.mrb[0].mxu0
  %v513 = vadd.f32 0.0, %v512
  %v514 = vpop.f32.mrb[0].mxu0
  %515 = vmatprep.mubr.bf16.mxu0 %v270
  %516 = vmatmul.mubr.bf16.gmra.mrb[0].mxu0 %v269
  %v517 = vpop.f32.mrb[0].mxu0
  %v518 = vadd.f32 0.0, %v517
  %v519 = vpop.f32.mrb[0].mxu0
  %v520 = vpop.f32.mrb[0].mxu0
  %v521 = vadd.f32 0.0, %v520
  %v522 = vpop.f32.mrb[0].mxu0
  %523 = vmatprep.mubr.bf16.mxu0 %v272
  %524 = vmatmul.mubr.bf16.gmra.mrb[0].mxu0 %v271
  %v525 = vpop.f32.mrb[0].mxu0
  %v526 = vadd.f32 0.0, %v525
  %v527 = vpop.f32.mrb[0].mxu0
  %v528 = vpop.f32.mrb[0].mxu0
  %v529 = vadd.f32 0.0, %v528
  %v530 = vpop.f32.mrb[0].mxu0
  %531 = vmatprep.mubr.bf16.mxu0 %v274
  %532 = vmatmul.mubr.bf16.gmra.mrb[0].mxu0 %v273
  %v533 = vpop.f32.mrb[0].mxu0
  %v534 = vadd.f32 0.0, %v533
  %v535 = vpop.f32.mrb[0].mxu0
  %v536 = vpop.f32.mrb[0].mxu0
  %v537 = vadd.f32 0.0, %v536
  %v538 = vpop.f32.mrb[0].mxu0
  %539 = vmatprep.mubr.bf16.mxu0 %v276
  %540 = vmatmul.mubr.bf16.gmra.mrb[0].mxu0 %v275
  %v541 = vpop.f32.mrb[0].mxu0
  %v542 = vadd.f32 0.0, %v541
  %v543 = vpop.f32.mrb[0].mxu0
  %v544 = vpop.f32.mrb[0].mxu0
  %v545 = vadd.f32 0.0, %v544
  %v546 = vpop.f32.mrb[0].mxu0
  %547 = vmatprep.mubr.bf16.mxu0 %v278
  %548 = vmatmul.mubr.bf16.gmra.mrb[0].mxu0 %v277
  %v549 = vpop.f32.mrb[0].mxu0
  %v550 = vadd.f32 0.0, %v549
  %v551 = vpop.f32.mrb[0].mxu0
  %v552 = vpop.f32.mrb[0].mxu0
  %v553 = vadd.f32 0.0, %v552
  %v554 = vpop.f32.mrb[0].mxu0
  %555 = vmatprep.mubr.bf16.mxu0 %v280
  %556 = vmatmul.mubr.bf16.gmra.mrb[0].mxu0 %v279
  %v557 = vpop.f32.mrb[0].mxu0
  %v558 = vadd.f32 0.0, %v557
  %v559 = vpop.f32.mrb[0].mxu0
  %v560 = vpop.f32.mrb[0].mxu0
  %v561 = vadd.f32 0.0, %v560
  %v562 = vpop.f32.mrb[0].mxu0
  %563 = vmatprep.mubr.bf16.mxu0 %v282
  %564 = vmatmul.mubr.bf16.gmra.mrb[0].mxu0 %v281
  %v565 = vpop.f32.mrb[0].mxu0
  %v566 = vadd.f32 0.0, %v565
  %v567 = vpop.f32.mrb[0].mxu0
  %v568 = vpop.f32.mrb[0].mxu0
  %v569 = vadd.f32 0.0, %v568
  %v570 = vpop.f32.mrb[0].mxu0
  %571 = vdwg.mxu0
  %v572 = vadd.f32 %v55, %v446
  %v573 = vadd.f32 %v56, %v449
  %v574 = vadd.f32 %v57, %v454
  %v575 = vadd.f32 %v58, %v457
  %v576 = vadd.f32 %v59, %v462
  %v577 = vadd.f32 %v60, %v465
  %v578 = vadd.f32 %v61, %v470
  %v579 = vadd.f32 %v62, %v473
  %v580 = vadd.f32 %v63, %v478
  %v581 = vadd.f32 %v64, %v481
  %v582 = vadd.f32 %v65, %v486
  %v583 = vadd.f32 %v66, %v489
  %v584 = vadd.f32 %v67, %v494
  %v585 = vadd.f32 %v68, %v497
  %v586 = vadd.f32 %v69, %v502
  %v587 = vadd.f32 %v70, %v505
  %v588 = vadd.f32 %v71, %v510
  %v589 = vadd.f32 %v72, %v513
  %v590 = vadd.f32 %v73, %v518
  %v591 = vadd.f32 %v74, %v521
  %v592 = vadd.f32 %v75, %v526
  %v593 = vadd.f32 %v76, %v529
  %v594 = vadd.f32 %v77, %v534
  %v595 = vadd.f32 %v78, %v537
  %v596 = vadd.f32 %v79, %v542
  %v597 = vadd.f32 %v80, %v545
  %v598 = vadd.f32 %v81, %v550
  %v599 = vadd.f32 %v82, %v553
  %v600 = vadd.f32 %v83, %v558
  %v601 = vadd.f32 %v84, %v561
  %v602 = vadd.f32 %v85, %v566
  %v603 = vadd.f32 %v86, %v569
  %604 = vst [vmem:[#allocation2] sm:$0xff] %v572
  %605 = vst [vmem:[#allocation2 + $0x8] sm:$0xff] %v573
  %606 = vst [vmem:[#allocation2 + $0x10] sm:$0xff] %v574
  %607 = vst [vmem:[#allocation2 + $0x18] sm:$0xff] %v575
  %608 = vst [vmem:[#allocation2 + $0x20] sm:$0xff] %v576
  %609 = vst [vmem:[#allocation2 + $0x28] sm:$0xff] %v577
  %610 = vst [vmem:[#allocation2 + $0x30] sm:$0xff] %v578
  %611 = vst [vmem:[#allocation2 + $0x38] sm:$0xff] %v579
  %612 = vst [vmem:[#allocation2 + $0x40] sm:$0xff] %v580
  %613 = vst [vmem:[#allocation2 + $0x48] sm:$0xff] %v581
  %614 = vst [vmem:[#allocation2 + $0x50] sm:$0xff] %v582
  %615 = vst [vmem:[#allocation2 + $0x58] sm:$0xff] %v583
  %616 = vst [vmem:[#allocation2 + $0x60] sm:$0xff] %v584
  %617 = vst [vmem:[#allocation2 + $0x68] sm:$0xff] %v585
  %618 = vst [vmem:[#allocation2 + $0x70] sm:$0xff] %v586
  %619 = vst [vmem:[#allocation2 + $0x78] sm:$0xff] %v587
  %620 = vst [vmem:[#allocation2 + $0x80] sm:$0xff] %v588
  %621 = vst [vmem:[#allocation2 + $0x88] sm:$0xff] %v589
  %622 = vst [vmem:[#allocation2 + $0x90] sm:$0xff] %v590
  %623 = vst [vmem:[#allocation2 + $0x98] sm:$0xff] %v591
  %624 = vst [vmem:[#allocation2 + $0xa0] sm:$0xff] %v592
  %625 = vst [vmem:[#allocation2 + $0xa8] sm:$0xff] %v593
  %626 = vst [vmem:[#allocation2 + $0xb0] sm:$0xff] %v594
  %627 = vst [vmem:[#allocation2 + $0xb8] sm:$0xff] %v595
  %628 = vst [vmem:[#allocation2 + $0xc0] sm:$0xff] %v596
  %629 = vst [vmem:[#allocation2 + $0xc8] sm:$0xff] %v597
  %630 = vst [vmem:[#allocation2 + $0xd0] sm:$0xff] %v598
  %631 = vst [vmem:[#allocation2 + $0xd8] sm:$0xff] %v599
  %632 = vst [vmem:[#allocation2 + $0xe0] sm:$0xff] %v600
  %633 = vst [vmem:[#allocation2 + $0xe8] sm:$0xff] %v601
  %634 = vst [vmem:[#allocation2 + $0xf0] sm:$0xff] %v602
  %635 = vst [vmem:[#allocation2 + $0xf8] sm:$0xff] %v603
  // Predicated region
  $region22: #{job_classifier_gnn_forward.4} parent=0 // pred_check
    %p636 = pneg %p18
  $region23: #{job_classifier_gnn_forward.4} parent=0 // pred_check_branch
    %638 = sbr.rel (%p636) target = $region25
  $region24: #{job_classifier_gnn_forward.4} parent=0 // pred_region
    %v639 = vld [vmem:[#allocation2] sm:$0xff]
    %v640 = vld [vmem:[#allocation2 + $0x8] sm:$0xff]
    %v641 = vld [vmem:[#allocation2 + $0x10] sm:$0xff]
    %v642 = vld [vmem:[#allocation2 + $0x18] sm:$0xff]
    %v643 = vld [vmem:[#allocation2 + $0x20] sm:$0xff]
    %v644 = vld [vmem:[#allocation2 + $0x28] sm:$0xff]
    %v645 = vld [vmem:[#allocation2 + $0x30] sm:$0xff]
    %v646 = vld [vmem:[#allocation2 + $0x38] sm:$0xff]
    %v647 = vld [vmem:[#allocation2 + $0x40] sm:$0xff]
    %v648 = vld [vmem:[#allocation2 + $0x48] sm:$0xff]
    %v649 = vld [vmem:[#allocation2 + $0x50] sm:$0xff]
    %v650 = vld [vmem:[#allocation2 + $0x58] sm:$0xff]
    %v651 = vld [vmem:[#allocation2 + $0x60] sm:$0xff]
    %v652 = vld [vmem:[#allocation2 + $0x68] sm:$0xff]
    %v653 = vld [vmem:[#allocation2 + $0x70] sm:$0xff]
    %v654 = vld [vmem:[#allocation2 + $0x78] sm:$0xff]
    %v655 = vld [vmem:[#allocation2 + $0x80] sm:$0xff]
    %v656 = vld [vmem:[#allocation2 + $0x88] sm:$0xff]
    %v657 = vld [vmem:[#allocation2 + $0x90] sm:$0xff]
    %v658 = vld [vmem:[#allocation2 + $0x98] sm:$0xff]
    %v659 = vld [vmem:[#allocation2 + $0xa0] sm:$0xff]
    %v660 = vld [vmem:[#allocation2 + $0xa8] sm:$0xff]
    %v661 = vld [vmem:[#allocation2 + $0xb0] sm:$0xff]
    %v662 = vld [vmem:[#allocation2 + $0xb8] sm:$0xff]
    %v663 = vld [vmem:[#allocation2 + $0xc0] sm:$0xff]
    %v664 = vld [vmem:[#allocation2 + $0xc8] sm:$0xff]
    %v665 = vld [vmem:[#allocation2 + $0xd0] sm:$0xff]
    %v666 = vld [vmem:[#allocation2 + $0xd8] sm:$0xff]
    %v667 = vld [vmem:[#allocation2 + $0xe0] sm:$0xff]
    %v668 = vld [vmem:[#allocation2 + $0xe8] sm:$0xff]
    %v669 = vld [vmem:[#allocation2 + $0xf0] sm:$0xff]
    %v670 = vld [vmem:[#allocation2 + $0xf8] sm:$0xff]
    %v671 = vld [vmem:[%s2] sm:$0x1]
    %v673 = vlaneseq
    %v674 = vshrl.u32 %v673, 7
    %v675 = vsub.s32 0, %v674
    %v676 = vrot.slane %v671, %v675
    %v678 = vadd.f32 %v639, %v676
    %v679 = vadd.f32 %v640, %v676
    %v680 = vadd.f32 %v641, %v676
    %v681 = vadd.f32 %v642, %v676
    %v682 = vadd.f32 %v643, %v676
    %v683 = vadd.f32 %v644, %v676
    %v684 = vadd.f32 %v645, %v676
    %v685 = vadd.f32 %v646, %v676
    %v686 = vadd.f32 %v647, %v676
    %v687 = vadd.f32 %v648, %v676
    %v688 = vadd.f32 %v649, %v676
    %v689 = vadd.f32 %v650, %v676
    %v690 = vadd.f32 %v651, %v676
    %v691 = vadd.f32 %v652, %v676
    %v692 = vadd.f32 %v653, %v676
    %v693 = vadd.f32 %v654, %v676
    %v694 = vadd.f32 %v655, %v676
    %v695 = vadd.f32 %v656, %v676
    %v696 = vadd.f32 %v657, %v676
    %v697 = vadd.f32 %v658, %v676
    %v698 = vadd.f32 %v659, %v676
    %v699 = vadd.f32 %v660, %v676
    %v700 = vadd.f32 %v661, %v676
    %v701 = vadd.f32 %v662, %v676
    %v702 = vadd.f32 %v663, %v676
    %v703 = vadd.f32 %v664, %v676
    %v704 = vadd.f32 %v665, %v676
    %v705 = vadd.f32 %v666, %v676
    %v706 = vadd.f32 %v667, %v676
    %v707 = vadd.f32 %v668, %v676
    %v708 = vadd.f32 %v669, %v676
    %v709 = vadd.f32 %v670, %v676
    %v710 = vmax.f32 %v678, 0.0
    %v711 = vmax.f32 %v679, 0.0
    %v712 = vmax.f32 %v680, 0.0
    %v713 = vmax.f32 %v681, 0.0
    %v714 = vmax.f32 %v682, 0.0
    %v715 = vmax.f32 %v683, 0.0
    %v716 = vmax.f32 %v684, 0.0
    %v717 = vmax.f32 %v685, 0.0
    %v718 = vmax.f32 %v686, 0.0
    %v719 = vmax.f32 %v687, 0.0
    %v720 = vmax.f32 %v688, 0.0
    %v721 = vmax.f32 %v689, 0.0
    %v722 = vmax.f32 %v690, 0.0
    %v723 = vmax.f32 %v691, 0.0
    %v724 = vmax.f32 %v692, 0.0
    %v725 = vmax.f32 %v693, 0.0
    %v726 = vmax.f32 %v694, 0.0
    %v727 = vmax.f32 %v695, 0.0
    %v728 = vmax.f32 %v696, 0.0
    %v729 = vmax.f32 %v697, 0.0
    %v730 = vmax.f32 %v698, 0.0
    %v731 = vmax.f32 %v699, 0.0
    %v732 = vmax.f32 %v700, 0.0
    %v733 = vmax.f32 %v701, 0.0
    %v734 = vmax.f32 %v702, 0.0
    %v735 = vmax.f32 %v703, 0.0
    %v736 = vmax.f32 %v704, 0.0
    %v737 = vmax.f32 %v705, 0.0
    %v738 = vmax.f32 %v706, 0.0
    %v739 = vmax.f32 %v707, 0.0
    %v740 = vmax.f32 %v708, 0.0
    %v741 = vmax.f32 %v709, 0.0
    %v742 = vpack.c.bf16 %v711, %v710
    %v743 = vpack.c.bf16 %v713, %v712
    %v744 = vpack.c.bf16 %v715, %v714
    %v745 = vpack.c.bf16 %v717, %v716
    %v746 = vpack.c.bf16 %v719, %v718
    %v747 = vpack.c.bf16 %v721, %v720
    %v748 = vpack.c.bf16 %v723, %v722
    %v749 = vpack.c.bf16 %v725, %v724
    %v750 = vpack.c.bf16 %v727, %v726
    %v751 = vpack.c.bf16 %v729, %v728
    %v752 = vpack.c.bf16 %v731, %v730
    %v753 = vpack.c.bf16 %v733, %v732
    %v754 = vpack.c.bf16 %v735, %v734
    %v755 = vpack.c.bf16 %v737, %v736
    %v756 = vpack.c.bf16 %v739, %v738
    %v757 = vpack.c.bf16 %v741, %v740
    %v758 = vld [vmem:[%s3] sm:$0xf]
    %v759 = vld [vmem:[%s3 + $0x4] sm:$0xf]
    %v760 = vld [vmem:[%s3 + $0x8] sm:$0xf]
    %v761 = vld [vmem:[%s3 + $0xc] sm:$0xf]
    %v762 = vld [vmem:[%s3 + $0x10] sm:$0xf]
    %v763 = vld [vmem:[%s3 + $0x14] sm:$0xf]
    %v764 = vld [vmem:[%s3 + $0x18] sm:$0xf]
    %v765 = vld [vmem:[%s3 + $0x1c] sm:$0xf]
    %v766 = vld [vmem:[%s3 + $0x20] sm:$0xf]
    %v767 = vld [vmem:[%s3 + $0x24] sm:$0xf]
    %v768 = vld [vmem:[%s3 + $0x28] sm:$0xf]
    %v769 = vld [vmem:[%s3 + $0x2c] sm:$0xf]
    %v770 = vld [vmem:[%s3 + $0x30] sm:$0xf]
    %v771 = vld [vmem:[%s3 + $0x34] sm:$0xf]
    %v772 = vld [vmem:[%s3 + $0x38] sm:$0xf]
    %v773 = vld [vmem:[%s3 + $0x3c] sm:$0xf]
    %v790 = vunpack.c.l.b16 %v758
    %v791 = vunpack.c.l.b16 %v759
    %v792 = vunpack.c.l.b16 %v760
    %v793 = vunpack.c.l.b16 %v761
    %v794 = vunpack.c.l.b16 %v762
    %v795 = vunpack.c.l.b16 %v763
    %v796 = vunpack.c.l.b16 %v764
    %v797 = vunpack.c.l.b16 %v765
    %v798 = vunpack.c.l.b16 %v766
    %v799 = vunpack.c.l.b16 %v767
    %v800 = vunpack.c.l.b16 %v768
    %v801 = vunpack.c.l.b16 %v769
    %v802 = vunpack.c.l.b16 %v770
    %v803 = vunpack.c.l.b16 %v771
    %v804 = vunpack.c.l.b16 %v772
    %v805 = vunpack.c.l.b16 %v773
    %v806 = vpack.c.b16 %v791, %v790
    %v807 = vpack.c.b16 %v793, %v792
    %v808 = vpack.c.b16 %v795, %v794
    %v809 = vpack.c.b16 %v797, %v796
    %v810 = vpack.c.b16 %v799, %v798
    %v811 = vpack.c.b16 %v801, %v800
    %v812 = vpack.c.b16 %v803, %v802
    %v813 = vpack.c.b16 %v805, %v804
    %822 = vmatprep.subr.bf16.mxu0 0
    %823 = vmatpush1.bf16.msra.mxu0 %v806
    %824 = vmatprep.subr.bf16.mxu0 0
    %825 = vmatpush1.bf16.msra.mxu0 %v807
    %826 = vmatprep.subr.bf16.mxu0 0
    %827 = vmatpush1.bf16.msra.mxu0 %v808
    %828 = vmatprep.subr.bf16.mxu0 0
    %829 = vmatpush1.bf16.msra.mxu0 %v809
    %830 = vmatprep.subr.bf16.mxu0 0
    %831 = vmatpush1.bf16.msra.mxu0 %v810
    %832 = vmatprep.subr.bf16.mxu0 0
    %833 = vmatpush1.bf16.msra.mxu0 %v811
    %834 = vmatprep.subr.bf16.mxu0 0
    %835 = vmatpush1.bf16.msra.mxu0 %v812
    %836 = vmatprep.subr.bf16.mxu0 0
    %837 = vmatpush1.bf16.msra.mxu0 %v813
    %838 = vmatprep.subr.bf16.mxu0 0
    %839 = vmatpush1.bf16.msra.mxu0 0
    %840 = vmatprep.subr.bf16.mxu0 0
    %841 = vmatpush1.bf16.msra.mxu0 0
    %842 = vmatprep.subr.bf16.mxu0 0
    %843 = vmatpush1.bf16.msra.mxu0 0
    %844 = vmatprep.subr.bf16.mxu0 0
    %845 = vmatpush1.bf16.msra.mxu0 0
    %846 = vmatprep.subr.bf16.mxu0 0
    %847 = vmatpush1.bf16.msra.mxu0 0
    %848 = vmatprep.subr.bf16.mxu0 0
    %849 = vmatpush1.bf16.msra.mxu0 0
    %850 = vmatprep.subr.bf16.mxu0 0
    %851 = vmatpush1.bf16.msra.mxu0 0
    %852 = vmatprep.subr.bf16.mxu0 0
    %853 = vmatpush1.bf16.msra.mxu0 0
    %854 = vmatprep.mubr.bf16.mxu0 0
    %855 = vmatmul.mubr.bf16.gmra.mrb[0].mxu0 %v742
    %v856 = vpop.f32.mrb[0].mxu0
    %v857 = vadd.f32 0.0, %v856
    %v858 = vpop.f32.mrb[0].mxu0
    %v859 = vpop.f32.mrb[0].mxu0
    %v860 = vadd.f32 0.0, %v859
    %v861 = vpop.f32.mrb[0].mxu0
    %862 = vmatprep.mubr.bf16.mxu0 0
    %863 = vmatmul.mubr.bf16.gmra.mrb[0].mxu0 %v743
    %v864 = vpop.f32.mrb[0].mxu0
    %v865 = vadd.f32 0.0, %v864
    %v866 = vpop.f32.mrb[0].mxu0
    %v867 = vpop.f32.mrb[0].mxu0
    %v868 = vadd.f32 0.0, %v867
    %v869 = vpop.f32.mrb[0].mxu0
    %870 = vmatprep.mubr.bf16.mxu0 0
    %871 = vmatmul.mubr.bf16.gmra.mrb[0].mxu0 %v744
    %v872 = vpop.f32.mrb[0].mxu0
    %v873 = vadd.f32 0.0, %v872
    %v874 = vpop.f32.mrb[0].mxu0
    %v875 = vpop.f32.mrb[0].mxu0
    %v876 = vadd.f32 0.0, %v875
    %v877 = vpop.f32.mrb[0].mxu0
    %878 = vmatprep.mubr.bf16.mxu0 0
    %879 = vmatmul.mubr.bf16.gmra.mrb[0].mxu0 %v745
    %v880 = vpop.f32.mrb[0].mxu0
    %v881 = vadd.f32 0.0, %v880
    %v882 = vpop.f32.mrb[0].mxu0
    %v883 = vpop.f32.mrb[0].mxu0
    %v884 = vadd.f32 0.0, %v883
    %v885 = vpop.f32.mrb[0].mxu0
    %886 = vmatprep.mubr.bf16.mxu0 0
    %887 = vmatmul.mubr.bf16.gmra.mrb[0].mxu0 %v746
    %v888 = vpop.f32.mrb[0].mxu0
    %v889 = vadd.f32 0.0, %v888
    %v890 = vpop.f32.mrb[0].mxu0
    %v891 = vpop.f32.mrb[0].mxu0
    %v892 = vadd.f32 0.0, %v891
    %v893 = vpop.f32.mrb[0].mxu0
    %894 = vmatprep.mubr.bf16.mxu0 0
    %895 = vmatmul.mubr.bf16.gmra.mrb[0].mxu0 %v747
    %v896 = vpop.f32.mrb[0].mxu0
    %v897 = vadd.f32 0.0, %v896
    %v898 = vpop.f32.mrb[0].mxu0
    %v899 = vpop.f32.mrb[0].mxu0
    %v900 = vadd.f32 0.0, %v899
    %v901 = vpop.f32.mrb[0].mxu0
    %902 = vmatprep.mubr.bf16.mxu0 0
    %903 = vmatmul.mubr.bf16.gmra.mrb[0].mxu0 %v748
    %v904 = vpop.f32.mrb[0].mxu0
    %v905 = vadd.f32 0.0, %v904
    %v906 = vpop.f32.mrb[0].mxu0
    %v907 = vpop.f32.mrb[0].mxu0
    %v908 = vadd.f32 0.0, %v907
    %v909 = vpop.f32.mrb[0].mxu0
    %910 = vmatprep.mubr.bf16.mxu0 0
    %911 = vmatmul.mubr.bf16.gmra.mrb[0].mxu0 %v749
    %v912 = vpop.f32.mrb[0].mxu0
    %v913 = vadd.f32 0.0, %v912
    %v914 = vpop.f32.mrb[0].mxu0
    %v915 = vpop.f32.mrb[0].mxu0
    %v916 = vadd.f32 0.0, %v915
    %v917 = vpop.f32.mrb[0].mxu0
    %918 = vmatprep.mubr.bf16.mxu0 0
    %919 = vmatmul.mubr.bf16.gmra.mrb[0].mxu0 %v750
    %v920 = vpop.f32.mrb[0].mxu0
    %v921 = vadd.f32 0.0, %v920
    %v922 = vpop.f32.mrb[0].mxu0
    %v923 = vpop.f32.mrb[0].mxu0
    %v924 = vadd.f32 0.0, %v923
    %v925 = vpop.f32.mrb[0].mxu0
    %926 = vmatprep.mubr.bf16.mxu0 0
    %927 = vmatmul.mubr.bf16.gmra.mrb[0].mxu0 %v751
    %v928 = vpop.f32.mrb[0].mxu0
    %v929 = vadd.f32 0.0, %v928
    %v930 = vpop.f32.mrb[0].mxu0
    %v931 = vpop.f32.mrb[0].mxu0
    %v932 = vadd.f32 0.0, %v931
    %v933 = vpop.f32.mrb[0].mxu0
    %934 = vmatprep.mubr.bf16.mxu0 0
    %935 = vmatmul.mubr.bf16.gmra.mrb[0].mxu0 %v752
    %v936 = vpop.f32.mrb[0].mxu0
    %v937 = vadd.f32 0.0, %v936
    %v938 = vpop.f32.mrb[0].mxu0
    %v939 = vpop.f32.mrb[0].mxu0
    %v940 = vadd.f32 0.0, %v939
    %v941 = vpop.f32.mrb[0].mxu0
    %942 = vmatprep.mubr.bf16.mxu0 0
    %943 = vmatmul.mubr.bf16.gmra.mrb[0].mxu0 %v753
    %v944 = vpop.f32.mrb[0].mxu0
    %v945 = vadd.f32 0.0, %v944
    %v946 = vpop.f32.mrb[0].mxu0
    %v947 = vpop.f32.mrb[0].mxu0
    %v948 = vadd.f32 0.0, %v947
    %v949 = vpop.f32.mrb[0].mxu0
    %950 = vmatprep.mubr.bf16.mxu0 0
    %951 = vmatmul.mubr.bf16.gmra.mrb[0].mxu0 %v754
    %v952 = vpop.f32.mrb[0].mxu0
    %v953 = vadd.f32 0.0, %v952
    %v954 = vpop.f32.mrb[0].mxu0
    %v955 = vpop.f32.mrb[0].mxu0
    %v956 = vadd.f32 0.0, %v955
    %v957 = vpop.f32.mrb[0].mxu0
    %958 = vmatprep.mubr.bf16.mxu0 0
    %959 = vmatmul.mubr.bf16.gmra.mrb[0].mxu0 %v755
    %v960 = vpop.f32.mrb[0].mxu0
    %v961 = vadd.f32 0.0, %v960
    %v962 = vpop.f32.mrb[0].mxu0
    %v963 = vpop.f32.mrb[0].mxu0
    %v964 = vadd.f32 0.0, %v963
    %v965 = vpop.f32.mrb[0].mxu0
    %966 = vmatprep.mubr.bf16.mxu0 0
    %967 = vmatmul.mubr.bf16.gmra.mrb[0].mxu0 %v756
    %v968 = vpop.f32.mrb[0].mxu0
    %v969 = vadd.f32 0.0, %v968
    %v970 = vpop.f32.mrb[0].mxu0
    %v971 = vpop.f32.mrb[0].mxu0
    %v972 = vadd.f32 0.0, %v971
    %v973 = vpop.f32.mrb[0].mxu0
    %974 = vmatprep.mubr.bf16.mxu0 0
    %975 = vmatmul.mubr.bf16.gmra.mrb[0].mxu0 %v757
    %v976 = vpop.f32.mrb[0].mxu0
    %v977 = vadd.f32 0.0, %v976
    %v978 = vpop.f32.mrb[0].mxu0
    %v979 = vpop.f32.mrb[0].mxu0
    %v980 = vadd.f32 0.0, %v979
    %v981 = vpop.f32.mrb[0].mxu0
    %982 = vdwg.mxu0
    %v983 = vpack.c.bf16 %v860, %v857
    %v984 = vpack.c.bf16 %v868, %v865
    %v985 = vpack.c.bf16 %v876, %v873
    %v986 = vpack.c.bf16 %v884, %v881
    %v987 = vpack.c.bf16 %v892, %v889
    %v988 = vpack.c.bf16 %v900, %v897
    %v989 = vpack.c.bf16 %v908, %v905
    %v990 = vpack.c.bf16 %v916, %v913
    %v991 = vpack.c.bf16 %v924, %v921
    %v992 = vpack.c.bf16 %v932, %v929
    %v993 = vpack.c.bf16 %v940, %v937
    %v994 = vpack.c.bf16 %v948, %v945
    %v995 = vpack.c.bf16 %v956, %v953
    %v996 = vpack.c.bf16 %v964, %v961
    %v997 = vpack.c.bf16 %v972, %v969
    %v998 = vpack.c.bf16 %v980, %v977
    %v1015 = vunpack.c.l.b16 %v983
    %v1016 = vunpack.c.h.b16 %v983
    %v1017 = vunpack.c.l.b16 %v984
    %v1018 = vunpack.c.h.b16 %v984
    %v1019 = vunpack.c.l.b16 %v985
    %v1020 = vunpack.c.h.b16 %v985
    %v1021 = vunpack.c.l.b16 %v986
    %v1022 = vunpack.c.h.b16 %v986
    %v1023 = vunpack.c.l.b16 %v987
    %v1024 = vunpack.c.h.b16 %v987
    %v1025 = vunpack.c.l.b16 %v988
    %v1026 = vunpack.c.h.b16 %v988
    %v1027 = vunpack.c.l.b16 %v989
    %v1028 = vunpack.c.h.b16 %v989
    %v1029 = vunpack.c.l.b16 %v990
    %v1030 = vunpack.c.h.b16 %v990
    %v1031 = vunpack.c.l.b16 %v991
    %v1032 = vunpack.c.h.b16 %v991
    %v1033 = vunpack.c.l.b16 %v992
    %v1034 = vunpack.c.h.b16 %v992
    %v1035 = vunpack.c.l.b16 %v993
    %v1036 = vunpack.c.h.b16 %v993
    %v1037 = vunpack.c.l.b16 %v994
    %v1038 = vunpack.c.h.b16 %v994
    %v1039 = vunpack.c.l.b16 %v995
    %v1040 = vunpack.c.h.b16 %v995
    %v1041 = vunpack.c.l.b16 %v996
    %v1042 = vunpack.c.h.b16 %v996
    %v1043 = vunpack.c.l.b16 %v997
    %v1044 = vunpack.c.h.b16 %v997
    %v1045 = vunpack.c.l.b16 %v998
    %v1046 = vunpack.c.h.b16 %v998
    %v1047 = vpack.c.b16 %v1015, %v1015
    %v1048 = vpack.c.b16 %v1016, %v1016
    %v1049 = vpack.c.b16 %v1017, %v1017
    %v1050 = vpack.c.b16 %v1018, %v1018
    %v1051 = vpack.c.b16 %v1019, %v1019
    %v1052 = vpack.c.b16 %v1020, %v1020
    %v1053 = vpack.c.b16 %v1021, %v1021
    %v1054 = vpack.c.b16 %v1022, %v1022
    %v1055 = vpack.c.b16 %v1023, %v1023
    %v1056 = vpack.c.b16 %v1024, %v1024
    %v1057 = vpack.c.b16 %v1025, %v1025
    %v1058 = vpack.c.b16 %v1026, %v1026
    %v1059 = vpack.c.b16 %v1027, %v1027
    %v1060 = vpack.c.b16 %v1028, %v1028
    %v1061 = vpack.c.b16 %v1029, %v1029
    %v1062 = vpack.c.b16 %v1030, %v1030
    %v1063 = vpack.c.b16 %v1031, %v1031
    %v1064 = vpack.c.b16 %v1032, %v1032
    %v1065 = vpack.c.b16 %v1033, %v1033
    %v1066 = vpack.c.b16 %v1034, %v1034
    %v1067 = vpack.c.b16 %v1035, %v1035
    %v1068 = vpack.c.b16 %v1036, %v1036
    %v1069 = vpack.c.b16 %v1037, %v1037
    %v1070 = vpack.c.b16 %v1038, %v1038
    %v1071 = vpack.c.b16 %v1039, %v1039
    %v1072 = vpack.c.b16 %v1040, %v1040
    %v1073 = vpack.c.b16 %v1041, %v1041
    %v1074 = vpack.c.b16 %v1042, %v1042
    %v1075 = vpack.c.b16 %v1043, %v1043
    %v1076 = vpack.c.b16 %v1044, %v1044
    %v1077 = vpack.c.b16 %v1045, %v1045
    %v1078 = vpack.c.b16 %v1046, %v1046
    %1111 = vst [vmem:[%s4] sm:$0xf] %v1047
    %1112 = vst [vmem:[%s4 + $0x4] sm:$0xf] %v1048
    %1113 = vst [vmem:[%s4 + $0x8] sm:$0xf] %v1049
    %1114 = vst [vmem:[%s4 + $0xc] sm:$0xf] %v1050
    %1115 = vst [vmem:[%s4 + $0x10] sm:$0xf] %v1051
    %1116 = vst [vmem:[%s4 + $0x14] sm:$0xf] %v1052
    %1117 = vst [vmem:[%s4 + $0x18] sm:$0xf] %v1053
    %1118 = vst [vmem:[%s4 + $0x1c] sm:$0xf] %v1054
    %1119 = vst [vmem:[%s4 + $0x20] sm:$0xf] %v1055
    %1120 = vst [vmem:[%s4 + $0x24] sm:$0xf] %v1056
    %1121 = vst [vmem:[%s4 + $0x28] sm:$0xf] %v1057
    %1122 = vst [vmem:[%s4 + $0x2c] sm:$0xf] %v1058
    %1123 = vst [vmem:[%s4 + $0x30] sm:$0xf] %v1059
    %1124 = vst [vmem:[%s4 + $0x34] sm:$0xf] %v1060
    %1125 = vst [vmem:[%s4 + $0x38] sm:$0xf] %v1061
    %1126 = vst [vmem:[%s4 + $0x3c] sm:$0xf] %v1062
    %1127 = vst [vmem:[%s4 + $0x40] sm:$0xf] %v1063
    %1128 = vst [vmem:[%s4 + $0x44] sm:$0xf] %v1064
    %1129 = vst [vmem:[%s4 + $0x48] sm:$0xf] %v1065
    %1130 = vst [vmem:[%s4 + $0x4c] sm:$0xf] %v1066
    %1131 = vst [vmem:[%s4 + $0x50] sm:$0xf] %v1067
    %1132 = vst [vmem:[%s4 + $0x54] sm:$0xf] %v1068
    %1133 = vst [vmem:[%s4 + $0x58] sm:$0xf] %v1069
    %1134 = vst [vmem:[%s4 + $0x5c] sm:$0xf] %v1070
    %1135 = vst [vmem:[%s4 + $0x60] sm:$0xf] %v1071
    %1136 = vst [vmem:[%s4 + $0x64] sm:$0xf] %v1072
    %1137 = vst [vmem:[%s4 + $0x68] sm:$0xf] %v1073
    %1138 = vst [vmem:[%s4 + $0x6c] sm:$0xf] %v1074
    %1139 = vst [vmem:[%s4 + $0x70] sm:$0xf] %v1075
    %1140 = vst [vmem:[%s4 + $0x74] sm:$0xf] %v1076
    %1141 = vst [vmem:[%s4 + $0x78] sm:$0xf] %v1077
    %1142 = vst [vmem:[%s4 + $0x7c] sm:$0xf] %v1078
  $region25: #{job_classifier_gnn_forward.4} parent=0 // pred_fallthru
    _
  // Predicated region
  $region26: #{job_classifier_gnn_forward.4} parent=0 // pred_check
    _
  $region27: #{job_classifier_gnn_forward.4} parent=0 // pred_check_branch
    %1144 = sbr.rel (0) target = $region29
  $region28: #{job_classifier_gnn_forward.4} parent=0 // pred_region
    _
  $region29: #{job_classifier_gnn_forward.4} parent=0 // pred_fallthru
    _
  // Predicated region
  $region30: #{job_classifier_gnn_forward.4} parent=0 // pred_check
    _
  $region31: #{job_classifier_gnn_forward.4} parent=0 // pred_check_branch
    %1146 = sbr.rel (0) target = $region33
  $region32: #{job_classifier_gnn_forward.4} parent=0 // pred_region
    _
  $region33: #{job_classifier_gnn_forward.4} parent=0 // pred_fallthru
    _

// kernel: job_classifier_gnn_forward.5
$region0: #{job_classifier_gnn_forward.5}
  #allocation0 [shape = 'u32[]', space=smem, size = 0x4, offset = 0x4, fixed_abs, tag = 'smem constant byte address 0x4 - core index']
  #allocation1 [shape = 'u32[144,128]{1,0:T(1,128)}', space=vmem, size = 0x12000, scoped, tag = 'internal scratch']
  #allocation2 [shape = 'f32[256,128]{1,0:T(8,128)}', space=vmem, size = 0x20000, scoped, tag = 'scratch operand']
  #allocation3 [shape = 'f32[8,128]{1,0:T(8,128)}', space=vmem, size = 0x1000, scoped, tag = 'scratch operand']
  %s0 = inlined_call_operand.vmem [shape: bf16[256,256], index: 0, kind: input, shape index: {}]
  %s1 = inlined_call_operand.vmem [shape: bf16[256,128], index: 1, kind: input, shape index: {}]
  %s2 = inlined_call_operand.vmem [shape: f32[1,128], index: 2, kind: input, shape index: {}]
  %s3 = inlined_call_operand.vmem [shape: f32[8,256], index: 3, kind: input, shape index: {}]
  %s4 = inlined_call_operand.vmem [shape: bf16[128,128], index: 4, kind: input, shape index: {}]
  %s5 = inlined_call_operand.vmem [shape: f32[1,128], index: 5, kind: input, shape index: {}]
  %s6 = inlined_call_operand.vmem [shape: bf16[128,128], index: 6, kind: input, shape index: {}]
  %s7 = inlined_call_operand.vmem [shape: f32[1,128], index: 7, kind: input, shape index: {}]
  %s8 = inlined_call_operand.vmem [shape: f32[8,128], index: 8, kind: output, shape index: {}]
  %s9 = sld [smem:[#allocation0]]
  $region58: #{job_classifier_gnn_forward.5} parent=0
    _
  %s11 = ssub.s32 1, %s9
  %s12 = scalar_select 0, %s11, %s9
  // Predicated region
  $region2: #{job_classifier_gnn_forward.5} parent=0 // pred_check
    _
  $region3: #{job_classifier_gnn_forward.5} parent=0 // pred_check_branch
    %14 = sbr.rel (0) target = $region5
  $region4: #{job_classifier_gnn_forward.5} parent=0 // pred_region
    _
  $region5: #{job_classifier_gnn_forward.5} parent=0 // pred_fallthru
    _
  // Predicated region
  $region6: #{job_classifier_gnn_forward.5} parent=0 // pred_check
    _
  $region7: #{job_classifier_gnn_forward.5} parent=0 // pred_check_branch
    %16 = sbr.rel (0) target = $region9
  $region8: #{job_classifier_gnn_forward.5} parent=0 // pred_region
    _
  $region9: #{job_classifier_gnn_forward.5} parent=0 // pred_fallthru
    _
  // Predicated region
  $region10: #{job_classifier_gnn_forward.5} parent=0 // pred_check
    _
  $region11: #{job_classifier_gnn_forward.5} parent=0 // pred_check_branch
    %18 = sbr.rel (0) target = $region13
  $region12: #{job_classifier_gnn_forward.5} parent=0 // pred_region
    _
  $region13: #{job_classifier_gnn_forward.5} parent=0 // pred_fallthru
    _
  // Predicated region
  $region14: #{job_classifier_gnn_forward.5} parent=0 // pred_check
    _
  $region15: #{job_classifier_gnn_forward.5} parent=0 // pred_check_branch
    %20 = sbr.rel (0) target = $region17
  $region16: #{job_classifier_gnn_forward.5} parent=0 // pred_region
    _
  $region17: #{job_classifier_gnn_forward.5} parent=0 // pred_fallthru
    _
  // Predicated region
  $region18: #{job_classifier_gnn_forward.5} parent=0 // pred_check
    _
  $region19: #{job_classifier_gnn_forward.5} parent=0 // pred_check_branch
    %22 = sbr.rel (0) target = $region21
  $region20: #{job_classifier_gnn_forward.5} parent=0 // pred_region
    _
  $region21: #{job_classifier_gnn_forward.5} parent=0 // pred_fallthru
    _
  // Predicated region
  $region22: #{job_classifier_gnn_forward.5} parent=0 // pred_check
    _
  $region23: #{job_classifier_gnn_forward.5} parent=0 // pred_check_branch
    %24 = sbr.rel (0) target = $region25
  $region24: #{job_classifier_gnn_forward.5} parent=0 // pred_region
    _
  $region25: #{job_classifier_gnn_forward.5} parent=0 // pred_fallthru
    _
  // Predicated region
  $region26: #{job_classifier_gnn_forward.5} parent=0 // pred_check
    _
  $region27: #{job_classifier_gnn_forward.5} parent=0 // pred_check_branch
    %26 = sbr.rel (0) target = $region29
  $region28: #{job_classifier_gnn_forward.5} parent=0 // pred_region
    _
  $region29: #{job_classifier_gnn_forward.5} parent=0 // pred_fallthru
    _
  // Predicated region
  $region30: #{job_classifier_gnn_forward.5} parent=0 // pred_check
    _
  $region31: #{job_classifier_gnn_forward.5} parent=0 // pred_check_branch
    %28 = sbr.rel (0) target = $region33
  $region32: #{job_classifier_gnn_forward.5} parent=0 // pred_region
    _
  $region33: #{job_classifier_gnn_forward.5} parent=0 // pred_fallthru
    _
  %p30 = scmp.eq.s32.totalorder 0, 0
  %p31 = scmp.eq.s32.totalorder 0, 0
  %p32 = pnand %p30, %p31
  %p33 = pneg %p32
  // Predicated region
  $region34: #{job_classifier_gnn_forward.5} parent=0 // pred_check
    _
  $region35: #{job_classifier_gnn_forward.5} parent=0 // pred_check_branch
    %35 = sbr.rel (%p32) target = $region37
  $region36: #{job_classifier_gnn_forward.5} parent=0 // pred_region
    %36 = vst [vmem:[#allocation3] sm:$0xff] 0.0
  $region37: #{job_classifier_gnn_forward.5} parent=0 // pred_fallthru
    _
  // Predicated region
  $region38: #{job_classifier_gnn_forward.5} parent=0 // pred_check
    %p37 = pneg %p31
  $region39: #{job_classifier_gnn_forward.5} parent=0 // pred_check_branch
    %39 = sbr.rel (%p37) target = $region41
  $region40: #{job_classifier_gnn_forward.5} parent=0 // pred_region
    %40 = vst [vmem:[#allocation2] sm:$0xff] 0.0
    %41 = vst [vmem:[#allocation2 + $0x8] sm:$0xff] 0.0
    %42 = vst [vmem:[#allocation2 + $0x10] sm:$0xff] 0.0
    %43 = vst [vmem:[#allocation2 + $0x18] sm:$0xff] 0.0
    %44 = vst [vmem:[#allocation2 + $0x20] sm:$0xff] 0.0
    %45 = vst [vmem:[#allocation2 + $0x28] sm:$0xff] 0.0
    %46 = vst [vmem:[#allocation2 + $0x30] sm:$0xff] 0.0
    %47 = vst [vmem:[#allocation2 + $0x38] sm:$0xff] 0.0
    %48 = vst [vmem:[#allocation2 + $0x40] sm:$0xff] 0.0
    %49 = vst [vmem:[#allocation2 + $0x48] sm:$0xff] 0.0
    %50 = vst [vmem:[#allocation2 + $0x50] sm:$0xff] 0.0
    %51 = vst [vmem:[#allocation2 + $0x58] sm:$0xff] 0.0
    %52 = vst [vmem:[#allocation2 + $0x60] sm:$0xff] 0.0
    %53 = vst [vmem:[#allocation2 + $0x68] sm:$0xff] 0.0
    %54 = vst [vmem:[#allocation2 + $0x70] sm:$0xff] 0.0
    %55 = vst [vmem:[#allocation2 + $0x78] sm:$0xff] 0.0
    %56 = vst [vmem:[#allocation2 + $0x80] sm:$0xff] 0.0
    %57 = vst [vmem:[#allocation2 + $0x88] sm:$0xff] 0.0
    %58 = vst [vmem:[#allocation2 + $0x90] sm:$0xff] 0.0
    %59 = vst [vmem:[#allocation2 + $0x98] sm:$0xff] 0.0
    %60 = vst [vmem:[#allocation2 + $0xa0] sm:$0xff] 0.0
    %61 = vst [vmem:[#allocation2 + $0xa8] sm:$0xff] 0.0
    %62 = vst [vmem:[#allocation2 + $0xb0] sm:$0xff] 0.0
    %63 = vst [vmem:[#allocation2 + $0xb8] sm:$0xff] 0.0
    %64 = vst [vmem:[#allocation2 + $0xc0] sm:$0xff] 0.0
    %65 = vst [vmem:[#allocation2 + $0xc8] sm:$0xff] 0.0
    %66 = vst [vmem:[#allocation2 + $0xd0] sm:$0xff] 0.0
    %67 = vst [vmem:[#allocation2 + $0xd8] sm:$0xff] 0.0
    %68 = vst [vmem:[#allocation2 + $0xe0] sm:$0xff] 0.0
    %69 = vst [vmem:[#allocation2 + $0xe8] sm:$0xff] 0.0
    %70 = vst [vmem:[#allocation2 + $0xf0] sm:$0xff] 0.0
    %71 = vst [vmem:[#allocation2 + $0xf8] sm:$0xff] 0.0
  $region41: #{job_classifier_gnn_forward.5} parent=0 // pred_fallthru
    _
  %s72 = smul.u32 0, 256
  %v73 = vld [vmem:[#allocation2] sm:$0xff]
  %v74 = vld [vmem:[#allocation2 + $0x8] sm:$0xff]
  %v75 = vld [vmem:[#allocation2 + $0x10] sm:$0xff]
  %v76 = vld [vmem:[#allocation2 + $0x18] sm:$0xff]
  %v77 = vld [vmem:[#allocation2 + $0x20] sm:$0xff]
  %v78 = vld [vmem:[#allocation2 + $0x28] sm:$0xff]
  %v79 = vld [vmem:[#allocation2 + $0x30] sm:$0xff]
  %v80 = vld [vmem:[#allocation2 + $0x38] sm:$0xff]
  %v81 = vld [vmem:[#allocation2 + $0x40] sm:$0xff]
  %v82 = vld [vmem:[#allocation2 + $0x48] sm:$0xff]
  %v83 = vld [vmem:[#allocation2 + $0x50] sm:$0xff]
  %v84 = vld [vmem:[#allocation2 + $0x58] sm:$0xff]
  %v85 = vld [vmem:[#allocation2 + $0x60] sm:$0xff]
  %v86 = vld [vmem:[#allocation2 + $0x68] sm:$0xff]
  %v87 = vld [vmem:[#allocation2 + $0x70] sm:$0xff]
  %v88 = vld [vmem:[#allocation2 + $0x78] sm:$0xff]
  %v89 = vld [vmem:[#allocation2 + $0x80] sm:$0xff]
  %v90 = vld [vmem:[#allocation2 + $0x88] sm:$0xff]
  %v91 = vld [vmem:[#allocation2 + $0x90] sm:$0xff]
  %v92 = vld [vmem:[#allocation2 + $0x98] sm:$0xff]
  %v93 = vld [vmem:[#allocation2 + $0xa0] sm:$0xff]
  %v94 = vld [vmem:[#allocation2 + $0xa8] sm:$0xff]
  %v95 = vld [vmem:[#allocation2 + $0xb0] sm:$0xff]
  %v96 = vld [vmem:[#allocation2 + $0xb8] sm:$0xff]
  %v97 = vld [vmem:[#allocation2 + $0xc0] sm:$0xff]
  %v98 = vld [vmem:[#allocation2 + $0xc8] sm:$0xff]
  %v99 = vld [vmem:[#allocation2 + $0xd0] sm:$0xff]
  %v100 = vld [vmem:[#allocation2 + $0xd8] sm:$0xff]
  %v101 = vld [vmem:[#allocation2 + $0xe0] sm:$0xff]
  %v102 = vld [vmem:[#allocation2 + $0xe8] sm:$0xff]
  %v103 = vld [vmem:[#allocation2 + $0xf0] sm:$0xff]
  %v104 = vld [vmem:[#allocation2 + $0xf8] sm:$0xff]
  %v105 = vld [vmem:[%s0] sm:$0xff]
  %v106 = vld [vmem:[%s0 + $0x8] sm:$0xff]
  %v107 = vld [vmem:[%s0 + $0x10] sm:$0xff]
  %v108 = vld [vmem:[%s0 + $0x18] sm:$0xff]
  %v109 = vld [vmem:[%s0 + $0x20] sm:$0xff]
  %v110 = vld [vmem:[%s0 + $0x28] sm:$0xff]
  %v111 = vld [vmem:[%s0 + $0x30] sm:$0xff]
  %v112 = vld [vmem:[%s0 + $0x38] sm:$0xff]
  %v113 = vld [vmem:[%s0 + $0x40] sm:$0xff]
  %v114 = vld [vmem:[%s0 + $0x48] sm:$0xff]
  %v115 = vld [vmem:[%s0 + $0x50] sm:$0xff]
  %v116 = vld [vmem:[%s0 + $0x58] sm:$0xff]
  %v117 = vld [vmem:[%s0 + $0x60] sm:$0xff]
  %v118 = vld [vmem:[%s0 + $0x68] sm:$0xff]
  %v119 = vld [vmem:[%s0 + $0x70] sm:$0xff]
  %v120 = vld [vmem:[%s0 + $0x78] sm:$0xff]
  %v121 = vld [vmem:[%s0 + $0x80] sm:$0xff]
  %v122 = vld [vmem:[%s0 + $0x88] sm:$0xff]
  %v123 = vld [vmem:[%s0 + $0x90] sm:$0xff]
  %v124 = vld [vmem:[%s0 + $0x98] sm:$0xff]
  %v125 = vld [vmem:[%s0 + $0xa0] sm:$0xff]
  %v126 = vld [vmem:[%s0 + $0xa8] sm:$0xff]
  %v127 = vld [vmem:[%s0 + $0xb0] sm:$0xff]
  %v128 = vld [vmem:[%s0 + $0xb8] sm:$0xff]
  %v129 = vld [vmem:[%s0 + $0xc0] sm:$0xff]
  %v130 = vld [vmem:[%s0 + $0xc8] sm:$0xff]
  %v131 = vld [vmem:[%s0 + $0xd0] sm:$0xff]
  %v132 = vld [vmem:[%s0 + $0xd8] sm:$0xff]
  %v133 = vld [vmem:[%s0 + $0xe0] sm:$0xff]
  %v134 = vld [vmem:[%s0 + $0xe8] sm:$0xff]
  %v135 = vld [vmem:[%s0 + $0xf0] sm:$0xff]
  %v136 = vld [vmem:[%s0 + $0xf8] sm:$0xff]
  %s137 = sshra.s32 %s72, 3
  %s138 = sand.u32 %s72, 7
  %s139 = smul.addr %s137, 4
  %s140 = scalar_lea.vmem %s1, %s139
  %v141 = vld [vmem:[%s140] sm:$0xf]
  %v142 = vld [vmem:[%s140 + $0x4] sm:$0xf]
  %v143 = vld [vmem:[%s140 + $0x8] sm:$0xf]
  %v144 = vld [vmem:[%s140 + $0xc] sm:$0xf]
  %v145 = vld [vmem:[%s140 + $0x10] sm:$0xf]
  %v146 = vld [vmem:[%s140 + $0x14] sm:$0xf]
  %v147 = vld [vmem:[%s140 + $0x18] sm:$0xf]
  %v148 = vld [vmem:[%s140 + $0x1c] sm:$0xf]
  %v149 = vld [vmem:[%s140 + $0x20] sm:$0xf]
  %v150 = vld [vmem:[%s140 + $0x24] sm:$0xf]
  %v151 = vld [vmem:[%s140 + $0x28] sm:$0xf]
  %v152 = vld [vmem:[%s140 + $0x2c] sm:$0xf]
  %v153 = vld [vmem:[%s140 + $0x30] sm:$0xf]
  %v154 = vld [vmem:[%s140 + $0x34] sm:$0xf]
  %v155 = vld [vmem:[%s140 + $0x38] sm:$0xf]
  %v156 = vld [vmem:[%s140 + $0x3c] sm:$0xf]
  %v157 = vld [vmem:[%s140 + $0x40] sm:$0xf]
  %v158 = vld [vmem:[%s140 + $0x44] sm:$0xf]
  %v159 = vld [vmem:[%s140 + $0x48] sm:$0xf]
  %v160 = vld [vmem:[%s140 + $0x4c] sm:$0xf]
  %v161 = vld [vmem:[%s140 + $0x50] sm:$0xf]
  %v162 = vld [vmem:[%s140 + $0x54] sm:$0xf]
  %v163 = vld [vmem:[%s140 + $0x58] sm:$0xf]
  %v164 = vld [vmem:[%s140 + $0x5c] sm:$0xf]
  %v165 = vld [vmem:[%s140 + $0x60] sm:$0xf]
  %v166 = vld [vmem:[%s140 + $0x64] sm:$0xf]
  %v167 = vld [vmem:[%s140 + $0x68] sm:$0xf]
  %v168 = vld [vmem:[%s140 + $0x6c] sm:$0xf]
  %v169 = vld [vmem:[%s140 + $0x70] sm:$0xf]
  %v170 = vld [vmem:[%s140 + $0x74] sm:$0xf]
  %v171 = vld [vmem:[%s140 + $0x78] sm:$0xf]
  %v172 = vld [vmem:[%s140 + $0x7c] sm:$0xf]
  %v205 = vunpack.c.l.b16 %v105
  %v206 = vunpack.c.h.b16 %v105
  %v207 = vunpack.c.l.b16 %v106
  %v208 = vunpack.c.h.b16 %v106
  %v209 = vunpack.c.l.b16 %v107
  %v210 = vunpack.c.h.b16 %v107
  %v211 = vunpack.c.l.b16 %v108
  %v212 = vunpack.c.h.b16 %v108
  %v213 = vunpack.c.l.b16 %v109
  %v214 = vunpack.c.h.b16 %v109
  %v215 = vunpack.c.l.b16 %v110
  %v216 = vunpack.c.h.b16 %v110
  %v217 = vunpack.c.l.b16 %v111
  %v218 = vunpack.c.h.b16 %v111
  %v219 = vunpack.c.l.b16 %v112
  %v220 = vunpack.c.h.b16 %v112
  %v221 = vunpack.c.l.b16 %v113
  %v222 = vunpack.c.h.b16 %v113
  %v223 = vunpack.c.l.b16 %v114
  %v224 = vunpack.c.h.b16 %v114
  %v225 = vunpack.c.l.b16 %v115
  %v226 = vunpack.c.h.b16 %v115
  %v227 = vunpack.c.l.b16 %v116
  %v228 = vunpack.c.h.b16 %v116
  %v229 = vunpack.c.l.b16 %v117
  %v230 = vunpack.c.h.b16 %v117
  %v231 = vunpack.c.l.b16 %v118
  %v232 = vunpack.c.h.b16 %v118
  %v233 = vunpack.c.l.b16 %v119
  %v234 = vunpack.c.h.b16 %v119
  %v235 = vunpack.c.l.b16 %v120
  %v236 = vunpack.c.h.b16 %v120
  %v237 = vunpack.c.l.b16 %v121
  %v238 = vunpack.c.h.b16 %v121
  %v239 = vunpack.c.l.b16 %v122
  %v240 = vunpack.c.h.b16 %v122
  %v241 = vunpack.c.l.b16 %v123
  %v242 = vunpack.c.h.b16 %v123
  %v243 = vunpack.c.l.b16 %v124
  %v244 = vunpack.c.h.b16 %v124
  %v245 = vunpack.c.l.b16 %v125
  %v246 = vunpack.c.h.b16 %v125
  %v247 = vunpack.c.l.b16 %v126
  %v248 = vunpack.c.h.b16 %v126
  %v249 = vunpack.c.l.b16 %v127
  %v250 = vunpack.c.h.b16 %v127
  %v251 = vunpack.c.l.b16 %v128
  %v252 = vunpack.c.h.b16 %v128
  %v253 = vunpack.c.l.b16 %v129
  %v254 = vunpack.c.h.b16 %v129
  %v255 = vunpack.c.l.b16 %v130
  %v256 = vunpack.c.h.b16 %v130
  %v257 = vunpack.c.l.b16 %v131
  %v258 = vunpack.c.h.b16 %v131
  %v259 = vunpack.c.l.b16 %v132
  %v260 = vunpack.c.h.b16 %v132
  %v261 = vunpack.c.l.b16 %v133
  %v262 = vunpack.c.h.b16 %v133
  %v263 = vunpack.c.l.b16 %v134
  %v264 = vunpack.c.h.b16 %v134
  %v265 = vunpack.c.l.b16 %v135
  %v266 = vunpack.c.h.b16 %v135
  %v267 = vunpack.c.l.b16 %v136
  %v268 = vunpack.c.h.b16 %v136
  %v269 = vpack.c.b16 %v207, %v205
  %v270 = vpack.c.b16 %v208, %v206
  %v271 = vpack.c.b16 %v211, %v209
  %v272 = vpack.c.b16 %v212, %v210
  %v273 = vpack.c.b16 %v215, %v213
  %v274 = vpack.c.b16 %v216, %v214
  %v275 = vpack.c.b16 %v219, %v217
  %v276 = vpack.c.b16 %v220, %v218
  %v277 = vpack.c.b16 %v223, %v221
  %v278 = vpack.c.b16 %v224, %v222
  %v279 = vpack.c.b16 %v227, %v225
  %v280 = vpack.c.b16 %v228, %v226
  %v281 = vpack.c.b16 %v231, %v229
  %v282 = vpack.c.b16 %v232, %v230
  %v283 = vpack.c.b16 %v235, %v233
  %v284 = vpack.c.b16 %v236, %v234
  %v285 = vpack.c.b16 %v239, %v237
  %v286 = vpack.c.b16 %v240, %v238
  %v287 = vpack.c.b16 %v243, %v241
  %v288 = vpack.c.b16 %v244, %v242
  %v289 = vpack.c.b16 %v247, %v245
  %v290 = vpack.c.b16 %v248, %v246
  %v291 = vpack.c.b16 %v251, %v249
  %v292 = vpack.c.b16 %v252, %v250
  %v293 = vpack.c.b16 %v255, %v253
  %v294 = vpack.c.b16 %v256, %v254
  %v295 = vpack.c.b16 %v259, %v257
  %v296 = vpack.c.b16 %v260, %v258
  %v297 = vpack.c.b16 %v263, %v261
  %v298 = vpack.c.b16 %v264, %v262
  %v299 = vpack.c.b16 %v267, %v265
  %v300 = vpack.c.b16 %v268, %v266
  %v365 = vunpack.c.l.b16 %v141
  %v366 = vunpack.c.l.b16 %v142
  %v367 = vunpack.c.l.b16 %v143
  %v368 = vunpack.c.l.b16 %v144
  %v369 = vunpack.c.l.b16 %v145
  %v370 = vunpack.c.l.b16 %v146
  %v371 = vunpack.c.l.b16 %v147
  %v372 = vunpack.c.l.b16 %v148
  %v373 = vunpack.c.l.b16 %v149
  %v374 = vunpack.c.l.b16 %v150
  %v375 = vunpack.c.l.b16 %v151
  %v376 = vunpack.c.l.b16 %v152
  %v377 = vunpack.c.l.b16 %v153
  %v378 = vunpack.c.l.b16 %v154
  %v379 = vunpack.c.l.b16 %v155
  %v380 = vunpack.c.l.b16 %v156
  %v381 = vunpack.c.l.b16 %v157
  %v382 = vunpack.c.l.b16 %v158
  %v383 = vunpack.c.l.b16 %v159
  %v384 = vunpack.c.l.b16 %v160
  %v385 = vunpack.c.l.b16 %v161
  %v386 = vunpack.c.l.b16 %v162
  %v387 = vunpack.c.l.b16 %v163
  %v388 = vunpack.c.l.b16 %v164
  %v389 = vunpack.c.l.b16 %v165
  %v390 = vunpack.c.l.b16 %v166
  %v391 = vunpack.c.l.b16 %v167
  %v392 = vunpack.c.l.b16 %v168
  %v393 = vunpack.c.l.b16 %v169
  %v394 = vunpack.c.l.b16 %v170
  %v395 = vunpack.c.l.b16 %v171
  %v396 = vunpack.c.l.b16 %v172
  %v397 = vpack.c.b16 %v366, %v365
  %v398 = vpack.c.b16 %v368, %v367
  %v399 = vpack.c.b16 %v370, %v369
  %v400 = vpack.c.b16 %v372, %v371
  %v401 = vpack.c.b16 %v374, %v373
  %v402 = vpack.c.b16 %v376, %v375
  %v403 = vpack.c.b16 %v378, %v377
  %v404 = vpack.c.b16 %v380, %v379
  %v405 = vpack.c.b16 %v382, %v381
  %v406 = vpack.c.b16 %v384, %v383
  %v407 = vpack.c.b16 %v386, %v385
  %v408 = vpack.c.b16 %v388, %v387
  %v409 = vpack.c.b16 %v390, %v389
  %v410 = vpack.c.b16 %v392, %v391
  %v411 = vpack.c.b16 %v394, %v393
  %v412 = vpack.c.b16 %v396, %v395
  %429 = vmatprep.subr.bf16.mxu0 0
  %430 = vmatpush1.bf16.msra.mxu0 %v397
  %431 = vmatprep.subr.bf16.mxu0 0
  %432 = vmatpush1.bf16.msra.mxu0 %v398
  %433 = vmatprep.subr.bf16.mxu0 0
  %434 = vmatpush1.bf16.msra.mxu0 %v399
  %435 = vmatprep.subr.bf16.mxu0 0
  %436 = vmatpush1.bf16.msra.mxu0 %v400
  %437 = vmatprep.subr.bf16.mxu0 0
  %438 = vmatpush1.bf16.msra.mxu0 %v401
  %439 = vmatprep.subr.bf16.mxu0 0
  %440 = vmatpush1.bf16.msra.mxu0 %v402
  %441 = vmatprep.subr.bf16.mxu0 0
  %442 = vmatpush1.bf16.msra.mxu0 %v403
  %443 = vmatprep.subr.bf16.mxu0 0
  %444 = vmatpush1.bf16.msra.mxu0 %v404
  %445 = vmatprep.subr.bf16.mxu0 0
  %446 = vmatpush1.bf16.msra.mxu0 %v405
  %447 = vmatprep.subr.bf16.mxu0 0
  %448 = vmatpush1.bf16.msra.mxu0 %v406
  %449 = vmatprep.subr.bf16.mxu0 0
  %450 = vmatpush1.bf16.msra.mxu0 %v407
  %451 = vmatprep.subr.bf16.mxu0 0
  %452 = vmatpush1.bf16.msra.mxu0 %v408
  %453 = vmatprep.subr.bf16.mxu0 0
  %454 = vmatpush1.bf16.msra.mxu0 %v409
  %455 = vmatprep.subr.bf16.mxu0 0
  %456 = vmatpush1.bf16.msra.mxu0 %v410
  %457 = vmatprep.subr.bf16.mxu0 0
  %458 = vmatpush1.bf16.msra.mxu0 %v411
  %459 = vmatprep.subr.bf16.mxu0 0
  %460 = vmatpush1.bf16.msra.mxu0 %v412
  %461 = vmatprep.mubr.bf16.mxu0 %v270
  %462 = vmatmul.mubr.bf16.gmra.mrb[0].mxu0 %v269
  %v463 = vpop.f32.mrb[0].mxu0
  %v464 = vadd.f32 0.0, %v463
  %v465 = vpop.f32.mrb[0].mxu0
  %v466 = vpop.f32.mrb[0].mxu0
  %v467 = vadd.f32 0.0, %v466
  %v468 = vpop.f32.mrb[0].mxu0
  %469 = vmatprep.mubr.bf16.mxu0 %v272
  %470 = vmatmul.mubr.bf16.gmra.mrb[0].mxu0 %v271
  %v471 = vpop.f32.mrb[0].mxu0
  %v472 = vadd.f32 0.0, %v471
  %v473 = vpop.f32.mrb[0].mxu0
  %v474 = vpop.f32.mrb[0].mxu0
  %v475 = vadd.f32 0.0, %v474
  %v476 = vpop.f32.mrb[0].mxu0
  %477 = vmatprep.mubr.bf16.mxu0 %v274
  %478 = vmatmul.mubr.bf16.gmra.mrb[0].mxu0 %v273
  %v479 = vpop.f32.mrb[0].mxu0
  %v480 = vadd.f32 0.0, %v479
  %v481 = vpop.f32.mrb[0].mxu0
  %v482 = vpop.f32.mrb[0].mxu0
  %v483 = vadd.f32 0.0, %v482
  %v484 = vpop.f32.mrb[0].mxu0
  %485 = vmatprep.mubr.bf16.mxu0 %v276
  %486 = vmatmul.mubr.bf16.gmra.mrb[0].mxu0 %v275
  %v487 = vpop.f32.mrb[0].mxu0
  %v488 = vadd.f32 0.0, %v487
  %v489 = vpop.f32.mrb[0].mxu0
  %v490 = vpop.f32.mrb[0].mxu0
  %v491 = vadd.f32 0.0, %v490
  %v492 = vpop.f32.mrb[0].mxu0
  %493 = vmatprep.mubr.bf16.mxu0 %v278
  %494 = vmatmul.mubr.bf16.gmra.mrb[0].mxu0 %v277
  %v495 = vpop.f32.mrb[0].mxu0
  %v496 = vadd.f32 0.0, %v495
  %v497 = vpop.f32.mrb[0].mxu0
  %v498 = vpop.f32.mrb[0].mxu0
  %v499 = vadd.f32 0.0, %v498
  %v500 = vpop.f32.mrb[0].mxu0
  %501 = vmatprep.mubr.bf16.mxu0 %v280
  %502 = vmatmul.mubr.bf16.gmra.mrb[0].mxu0 %v279
  %v503 = vpop.f32.mrb[0].mxu0
  %v504 = vadd.f32 0.0, %v503
  %v505 = vpop.f32.mrb[0].mxu0
  %v506 = vpop.f32.mrb[0].mxu0
  %v507 = vadd.f32 0.0, %v506
  %v508 = vpop.f32.mrb[0].mxu0
  %509 = vmatprep.mubr.bf16.mxu0 %v282
  %510 = vmatmul.mubr.bf16.gmra.mrb[0].mxu0 %v281
  %v511 = vpop.f32.mrb[0].mxu0
  %v512 = vadd.f32 0.0, %v511
  %v513 = vpop.f32.mrb[0].mxu0
  %v514 = vpop.f32.mrb[0].mxu0
  %v515 = vadd.f32 0.0, %v514
  %v516 = vpop.f32.mrb[0].mxu0
  %517 = vmatprep.mubr.bf16.mxu0 %v284
  %518 = vmatmul.mubr.bf16.gmra.mrb[0].mxu0 %v283
  %v519 = vpop.f32.mrb[0].mxu0
  %v520 = vadd.f32 0.0, %v519
  %v521 = vpop.f32.mrb[0].mxu0
  %v522 = vpop.f32.mrb[0].mxu0
  %v523 = vadd.f32 0.0, %v522
  %v524 = vpop.f32.mrb[0].mxu0
  %525 = vmatprep.mubr.bf16.mxu0 %v286
  %526 = vmatmul.mubr.bf16.gmra.mrb[0].mxu0 %v285
  %v527 = vpop.f32.mrb[0].mxu0
  %v528 = vadd.f32 0.0, %v527
  %v529 = vpop.f32.mrb[0].mxu0
  %v530 = vpop.f32.mrb[0].mxu0
  %v531 = vadd.f32 0.0, %v530
  %v532 = vpop.f32.mrb[0].mxu0
  %533 = vmatprep.mubr.bf16.mxu0 %v288
  %534 = vmatmul.mubr.bf16.gmra.mrb[0].mxu0 %v287
  %v535 = vpop.f32.mrb[0].mxu0
  %v536 = vadd.f32 0.0, %v535
  %v537 = vpop.f32.mrb[0].mxu0
  %v538 = vpop.f32.mrb[0].mxu0
  %v539 = vadd.f32 0.0, %v538
  %v540 = vpop.f32.mrb[0].mxu0
  %541 = vmatprep.mubr.bf16.mxu0 %v290
  %542 = vmatmul.mubr.bf16.gmra.mrb[0].mxu0 %v289
  %v543 = vpop.f32.mrb[0].mxu0
  %v544 = vadd.f32 0.0, %v543
  %v545 = vpop.f32.mrb[0].mxu0
  %v546 = vpop.f32.mrb[0].mxu0
  %v547 = vadd.f32 0.0, %v546
  %v548 = vpop.f32.mrb[0].mxu0
  %549 = vmatprep.mubr.bf16.mxu0 %v292
  %550 = vmatmul.mubr.bf16.gmra.mrb[0].mxu0 %v291
  %v551 = vpop.f32.mrb[0].mxu0
  %v552 = vadd.f32 0.0, %v551
  %v553 = vpop.f32.mrb[0].mxu0
  %v554 = vpop.f32.mrb[0].mxu0
  %v555 = vadd.f32 0.0, %v554
  %v556 = vpop.f32.mrb[0].mxu0
  %557 = vmatprep.mubr.bf16.mxu0 %v294
  %558 = vmatmul.mubr.bf16.gmra.mrb[0].mxu0 %v293
  %v559 = vpop.f32.mrb[0].mxu0
  %v560 = vadd.f32 0.0, %v559
  %v561 = vpop.f32.mrb[0].mxu0
  %v562 = vpop.f32.mrb[0].mxu0
  %v563 = vadd.f32 0.0, %v562
  %v564 = vpop.f32.mrb[0].mxu0
  %565 = vmatprep.mubr.bf16.mxu0 %v296
  %566 = vmatmul.mubr.bf16.gmra.mrb[0].mxu0 %v295
  %v567 = vpop.f32.mrb[0].mxu0
  %v568 = vadd.f32 0.0, %v567
  %v569 = vpop.f32.mrb[0].mxu0
  %v570 = vpop.f32.mrb[0].mxu0
  %v571 = vadd.f32 0.0, %v570
  %v572 = vpop.f32.mrb[0].mxu0
  %573 = vmatprep.mubr.bf16.mxu0 %v298
  %574 = vmatmul.mubr.bf16.gmra.mrb[0].mxu0 %v297
  %v575 = vpop.f32.mrb[0].mxu0
  %v576 = vadd.f32 0.0, %v575
  %v577 = vpop.f32.mrb[0].mxu0
  %v578 = vpop.f32.mrb[0].mxu0
  %v579 = vadd.f32 0.0, %v578
  %v580 = vpop.f32.mrb[0].mxu0
  %581 = vmatprep.mubr.bf16.mxu0 %v300
  %582 = vmatmul.mubr.bf16.gmra.mrb[0].mxu0 %v299
  %v583 = vpop.f32.mrb[0].mxu0
  %v584 = vadd.f32 0.0, %v583
  %v585 = vpop.f32.mrb[0].mxu0
  %v586 = vpop.f32.mrb[0].mxu0
  %v587 = vadd.f32 0.0, %v586
  %v588 = vpop.f32.mrb[0].mxu0
  %589 = vdwg.mxu0
  %v590 = vadd.f32 %v73, %v464
  %v591 = vadd.f32 %v74, %v467
  %v592 = vadd.f32 %v75, %v472
  %v593 = vadd.f32 %v76, %v475
  %v594 = vadd.f32 %v77, %v480
  %v595 = vadd.f32 %v78, %v483
  %v596 = vadd.f32 %v79, %v488
  %v597 = vadd.f32 %v80, %v491
  %v598 = vadd.f32 %v81, %v496
  %v599 = vadd.f32 %v82, %v499
  %v600 = vadd.f32 %v83, %v504
  %v601 = vadd.f32 %v84, %v507
  %v602 = vadd.f32 %v85, %v512
  %v603 = vadd.f32 %v86, %v515
  %v604 = vadd.f32 %v87, %v520
  %v605 = vadd.f32 %v88, %v523
  %v606 = vadd.f32 %v89, %v528
  %v607 = vadd.f32 %v90, %v531
  %v608 = vadd.f32 %v91, %v536
  %v609 = vadd.f32 %v92, %v539
  %v610 = vadd.f32 %v93, %v544
  %v611 = vadd.f32 %v94, %v547
  %v612 = vadd.f32 %v95, %v552
  %v613 = vadd.f32 %v96, %v555
  %v614 = vadd.f32 %v97, %v560
  %v615 = vadd.f32 %v98, %v563
  %v616 = vadd.f32 %v99, %v568
  %v617 = vadd.f32 %v100, %v571
  %v618 = vadd.f32 %v101, %v576
  %v619 = vadd.f32 %v102, %v579
  %v620 = vadd.f32 %v103, %v584
  %v621 = vadd.f32 %v104, %v587
  %622 = vst [vmem:[#allocation2] sm:$0xff] %v590
  %623 = vst [vmem:[#allocation2 + $0x8] sm:$0xff] %v591
  %624 = vst [vmem:[#allocation2 + $0x10] sm:$0xff] %v592
  %625 = vst [vmem:[#allocation2 + $0x18] sm:$0xff] %v593
  %626 = vst [vmem:[#allocation2 + $0x20] sm:$0xff] %v594
  %627 = vst [vmem:[#allocation2 + $0x28] sm:$0xff] %v595
  %628 = vst [vmem:[#allocation2 + $0x30] sm:$0xff] %v596
  %629 = vst [vmem:[#allocation2 + $0x38] sm:$0xff] %v597
  %630 = vst [vmem:[#allocation2 + $0x40] sm:$0xff] %v598
  %631 = vst [vmem:[#allocation2 + $0x48] sm:$0xff] %v599
  %632 = vst [vmem:[#allocation2 + $0x50] sm:$0xff] %v600
  %633 = vst [vmem:[#allocation2 + $0x58] sm:$0xff] %v601
  %634 = vst [vmem:[#allocation2 + $0x60] sm:$0xff] %v602
  %635 = vst [vmem:[#allocation2 + $0x68] sm:$0xff] %v603
  %636 = vst [vmem:[#allocation2 + $0x70] sm:$0xff] %v604
  %637 = vst [vmem:[#allocation2 + $0x78] sm:$0xff] %v605
  %638 = vst [vmem:[#allocation2 + $0x80] sm:$0xff] %v606
  %639 = vst [vmem:[#allocation2 + $0x88] sm:$0xff] %v607
  %640 = vst [vmem:[#allocation2 + $0x90] sm:$0xff] %v608
  %641 = vst [vmem:[#allocation2 + $0x98] sm:$0xff] %v609
  %642 = vst [vmem:[#allocation2 + $0xa0] sm:$0xff] %v610
  %643 = vst [vmem:[#allocation2 + $0xa8] sm:$0xff] %v611
  %644 = vst [vmem:[#allocation2 + $0xb0] sm:$0xff] %v612
  %645 = vst [vmem:[#allocation2 + $0xb8] sm:$0xff] %v613
  %646 = vst [vmem:[#allocation2 + $0xc0] sm:$0xff] %v614
  %647 = vst [vmem:[#allocation2 + $0xc8] sm:$0xff] %v615
  %648 = vst [vmem:[#allocation2 + $0xd0] sm:$0xff] %v616
  %649 = vst [vmem:[#allocation2 + $0xd8] sm:$0xff] %v617
  %650 = vst [vmem:[#allocation2 + $0xe0] sm:$0xff] %v618
  %651 = vst [vmem:[#allocation2 + $0xe8] sm:$0xff] %v619
  %652 = vst [vmem:[#allocation2 + $0xf0] sm:$0xff] %v620
  %653 = vst [vmem:[#allocation2 + $0xf8] sm:$0xff] %v621
  // Predicated region
  $region42: #{job_classifier_gnn_forward.5} parent=0 // pred_check
    %p654 = pneg %p31
  $region43: #{job_classifier_gnn_forward.5} parent=0 // pred_check_branch
    %656 = sbr.rel (%p654) target = $region45
  $region44: #{job_classifier_gnn_forward.5} parent=0 // pred_region
    %v657 = vld [vmem:[#allocation2] sm:$0xff]
    %v658 = vld [vmem:[#allocation2 + $0x8] sm:$0xff]
    %v659 = vld [vmem:[#allocation2 + $0x10] sm:$0xff]
    %v660 = vld [vmem:[#allocation2 + $0x18] sm:$0xff]
    %v661 = vld [vmem:[#allocation2 + $0x20] sm:$0xff]
    %v662 = vld [vmem:[#allocation2 + $0x28] sm:$0xff]
    %v663 = vld [vmem:[#allocation2 + $0x30] sm:$0xff]
    %v664 = vld [vmem:[#allocation2 + $0x38] sm:$0xff]
    %v665 = vld [vmem:[#allocation2 + $0x40] sm:$0xff]
    %v666 = vld [vmem:[#allocation2 + $0x48] sm:$0xff]
    %v667 = vld [vmem:[#allocation2 + $0x50] sm:$0xff]
    %v668 = vld [vmem:[#allocation2 + $0x58] sm:$0xff]
    %v669 = vld [vmem:[#allocation2 + $0x60] sm:$0xff]
    %v670 = vld [vmem:[#allocation2 + $0x68] sm:$0xff]
    %v671 = vld [vmem:[#allocation2 + $0x70] sm:$0xff]
    %v672 = vld [vmem:[#allocation2 + $0x78] sm:$0xff]
    %v673 = vld [vmem:[#allocation2 + $0x80] sm:$0xff]
    %v674 = vld [vmem:[#allocation2 + $0x88] sm:$0xff]
    %v675 = vld [vmem:[#allocation2 + $0x90] sm:$0xff]
    %v676 = vld [vmem:[#allocation2 + $0x98] sm:$0xff]
    %v677 = vld [vmem:[#allocation2 + $0xa0] sm:$0xff]
    %v678 = vld [vmem:[#allocation2 + $0xa8] sm:$0xff]
    %v679 = vld [vmem:[#allocation2 + $0xb0] sm:$0xff]
    %v680 = vld [vmem:[#allocation2 + $0xb8] sm:$0xff]
    %v681 = vld [vmem:[#allocation2 + $0xc0] sm:$0xff]
    %v682 = vld [vmem:[#allocation2 + $0xc8] sm:$0xff]
    %v683 = vld [vmem:[#allocation2 + $0xd0] sm:$0xff]
    %v684 = vld [vmem:[#allocation2 + $0xd8] sm:$0xff]
    %v685 = vld [vmem:[#allocation2 + $0xe0] sm:$0xff]
    %v686 = vld [vmem:[#allocation2 + $0xe8] sm:$0xff]
    %v687 = vld [vmem:[#allocation2 + $0xf0] sm:$0xff]
    %v688 = vld [vmem:[#allocation2 + $0xf8] sm:$0xff]
    %v689 = vld [vmem:[%s2] sm:$0x1]
    %v691 = vlaneseq
    %v692 = vshrl.u32 %v691, 7
    %v693 = vsub.s32 0, %v692
    %v694 = vrot.slane %v689, %v693
    %v696 = vadd.f32 %v657, %v694
    %v697 = vadd.f32 %v658, %v694
    %v698 = vadd.f32 %v659, %v694
    %v699 = vadd.f32 %v660, %v694
    %v700 = vadd.f32 %v661, %v694
    %v701 = vadd.f32 %v662, %v694
    %v702 = vadd.f32 %v663, %v694
    %v703 = vadd.f32 %v664, %v694
    %v704 = vadd.f32 %v665, %v694
    %v705 = vadd.f32 %v666, %v694
    %v706 = vadd.f32 %v667, %v694
    %v707 = vadd.f32 %v668, %v694
    %v708 = vadd.f32 %v669, %v694
    %v709 = vadd.f32 %v670, %v694
    %v710 = vadd.f32 %v671, %v694
    %v711 = vadd.f32 %v672, %v694
    %v712 = vadd.f32 %v673, %v694
    %v713 = vadd.f32 %v674, %v694
    %v714 = vadd.f32 %v675, %v694
    %v715 = vadd.f32 %v676, %v694
    %v716 = vadd.f32 %v677, %v694
    %v717 = vadd.f32 %v678, %v694
    %v718 = vadd.f32 %v679, %v694
    %v719 = vadd.f32 %v680, %v694
    %v720 = vadd.f32 %v681, %v694
    %v721 = vadd.f32 %v682, %v694
    %v722 = vadd.f32 %v683, %v694
    %v723 = vadd.f32 %v684, %v694
    %v724 = vadd.f32 %v685, %v694
    %v725 = vadd.f32 %v686, %v694
    %v726 = vadd.f32 %v687, %v694
    %v727 = vadd.f32 %v688, %v694
    %v728 = vmax.f32 %v696, 0.0
    %v729 = vmax.f32 %v697, 0.0
    %v730 = vmax.f32 %v698, 0.0
    %v731 = vmax.f32 %v699, 0.0
    %v732 = vmax.f32 %v700, 0.0
    %v733 = vmax.f32 %v701, 0.0
    %v734 = vmax.f32 %v702, 0.0
    %v735 = vmax.f32 %v703, 0.0
    %v736 = vmax.f32 %v704, 0.0
    %v737 = vmax.f32 %v705, 0.0
    %v738 = vmax.f32 %v706, 0.0
    %v739 = vmax.f32 %v707, 0.0
    %v740 = vmax.f32 %v708, 0.0
    %v741 = vmax.f32 %v709, 0.0
    %v742 = vmax.f32 %v710, 0.0
    %v743 = vmax.f32 %v711, 0.0
    %v744 = vmax.f32 %v712, 0.0
    %v745 = vmax.f32 %v713, 0.0
    %v746 = vmax.f32 %v714, 0.0
    %v747 = vmax.f32 %v715, 0.0
    %v748 = vmax.f32 %v716, 0.0
    %v749 = vmax.f32 %v717, 0.0
    %v750 = vmax.f32 %v718, 0.0
    %v751 = vmax.f32 %v719, 0.0
    %v752 = vmax.f32 %v720, 0.0
    %v753 = vmax.f32 %v721, 0.0
    %v754 = vmax.f32 %v722, 0.0
    %v755 = vmax.f32 %v723, 0.0
    %v756 = vmax.f32 %v724, 0.0
    %v757 = vmax.f32 %v725, 0.0
    %v758 = vmax.f32 %v726, 0.0
    %v759 = vmax.f32 %v727, 0.0
    %v760 = vld [vmem:[#allocation3] sm:$0xff]
    %v761 = vld [vmem:[%s3] sm:$0xff]
    %v762 = vld [vmem:[%s3 + $0x8] sm:$0xff]
    %763 = vmatprep.subr.mxu0 0.0
    %764 = vmatpush1.msra.mxu0 %v728
    %765 = vmatprep.subr.mxu0 0.0
    %766 = vmatpush1.msra.mxu0 %v729
    %767 = vmatprep.subr.mxu0 0.0
    %768 = vmatpush1.msra.mxu0 %v730
    %769 = vmatprep.subr.mxu0 0.0
    %770 = vmatpush1.msra.mxu0 %v731
    %771 = vmatprep.subr.mxu0 0.0
    %772 = vmatpush1.msra.mxu0 %v732
    %773 = vmatprep.subr.mxu0 0.0
    %774 = vmatpush1.msra.mxu0 %v733
    %775 = vmatprep.subr.mxu0 0.0
    %776 = vmatpush1.msra.mxu0 %v734
    %777 = vmatprep.subr.mxu0 0.0
    %778 = vmatpush1.msra.mxu0 %v735
    %779 = vmatprep.subr.mxu0 0.0
    %780 = vmatpush1.msra.mxu0 %v736
    %781 = vmatprep.subr.mxu0 0.0
    %782 = vmatpush1.msra.mxu0 %v737
    %783 = vmatprep.subr.mxu0 0.0
    %784 = vmatpush1.msra.mxu0 %v738
    %785 = vmatprep.subr.mxu0 0.0
    %786 = vmatpush1.msra.mxu0 %v739
    %787 = vmatprep.subr.mxu0 0.0
    %788 = vmatpush1.msra.mxu0 %v740
    %789 = vmatprep.subr.mxu0 0.0
    %790 = vmatpush1.msra.mxu0 %v741
    %791 = vmatprep.subr.mxu0 0.0
    %792 = vmatpush1.msra.mxu0 %v742
    %793 = vmatprep.subr.mxu0 0.0
    %794 = vmatpush1.msra.mxu0 %v743
    %795 = vmatprep.subr.mxu0 0.0
    %796 = vmatpush1.msra.mxu0 %v744
    %797 = vmatprep.subr.mxu0 0.0
    %798 = vmatpush1.msra.mxu0 %v745
    %799 = vmatprep.subr.mxu0 0.0
    %800 = vmatpush1.msra.mxu0 %v746
    %801 = vmatprep.subr.mxu0 0.0
    %802 = vmatpush1.msra.mxu0 %v747
    %803 = vmatprep.subr.mxu0 0.0
    %804 = vmatpush1.msra.mxu0 %v748
    %805 = vmatprep.subr.mxu0 0.0
    %806 = vmatpush1.msra.mxu0 %v749
    %807 = vmatprep.subr.mxu0 0.0
    %808 = vmatpush1.msra.mxu0 %v750
    %809 = vmatprep.subr.mxu0 0.0
    %810 = vmatpush1.msra.mxu0 %v751
    %811 = vmatprep.subr.mxu0 0.0
    %812 = vmatpush1.msra.mxu0 %v752
    %813 = vmatprep.subr.mxu0 0.0
    %814 = vmatpush1.msra.mxu0 %v753
    %815 = vmatprep.subr.mxu0 0.0
    %816 = vmatpush1.msra.mxu0 %v754
    %817 = vmatprep.subr.mxu0 0.0
    %818 = vmatpush1.msra.mxu0 %v755
    %819 = vmatprep.subr.mxu0 0.0
    %820 = vmatpush1.msra.mxu0 %v756
    %821 = vmatprep.subr.mxu0 0.0
    %822 = vmatpush1.msra.mxu0 %v757
    %823 = vmatprep.subr.mxu0 0.0
    %824 = vmatpush1.msra.mxu0 %v758
    %825 = vmatprep.subr.mxu0 0.0
    %826 = vmatpush1.msra.mxu0 %v759
    %827 = vmatprep.mubr.f32.mxu0 %v762
    %828 = vmatmul.mubr.f32.gmra.mrb[0].mxu0 %v761
    %v829 = vpop.f32.mrb[0].mxu0
    %v830 = vadd.f32 0.0, %v829
    %v831 = vpop.f32.mrb[0].mxu0
    %832 = vdwg.mxu0
    %v833 = vadd.f32 %v760, %v830
    %834 = vst [vmem:[#allocation3] sm:$0xff] %v833
    // Predicated region
    $region46: #{job_classifier_gnn_forward.5} parent=44 // pred_check
      %p835 = pneg %p30
    $region47: #{job_classifier_gnn_forward.5} parent=44 // pred_check_branch
      %837 = sbr.rel (%p835) target = $region49
    $region48: #{job_classifier_gnn_forward.5} parent=44 // pred_region
      %v838 = vld [vmem:[#allocation3] sm:$0xff]
      %v839 = vpack.c.bf16 %v838, %v838
      %v840 = vld [vmem:[%s4] sm:$0xf]
      %v841 = vld [vmem:[%s4 + $0x4] sm:$0xf]
      %v842 = vld [vmem:[%s4 + $0x8] sm:$0xf]
      %v843 = vld [vmem:[%s4 + $0xc] sm:$0xf]
      %v844 = vld [vmem:[%s4 + $0x10] sm:$0xf]
      %v845 = vld [vmem:[%s4 + $0x14] sm:$0xf]
      %v846 = vld [vmem:[%s4 + $0x18] sm:$0xf]
      %v847 = vld [vmem:[%s4 + $0x1c] sm:$0xf]
      %v848 = vld [vmem:[%s4 + $0x20] sm:$0xf]
      %v849 = vld [vmem:[%s4 + $0x24] sm:$0xf]
      %v850 = vld [vmem:[%s4 + $0x28] sm:$0xf]
      %v851 = vld [vmem:[%s4 + $0x2c] sm:$0xf]
      %v852 = vld [vmem:[%s4 + $0x30] sm:$0xf]
      %v853 = vld [vmem:[%s4 + $0x34] sm:$0xf]
      %v854 = vld [vmem:[%s4 + $0x38] sm:$0xf]
      %v855 = vld [vmem:[%s4 + $0x3c] sm:$0xf]
      %v856 = vld [vmem:[%s5] sm:$0x1]
      %v858 = vlaneseq
      %v859 = vshrl.u32 %v858, 7
      %v860 = vsub.s32 0, %v859
      %v861 = vrot.slane %v856, %v860
      %v879 = vunpack.c.l.b16 %v840
      %v880 = vunpack.c.l.b16 %v841
      %v881 = vunpack.c.l.b16 %v842
      %v882 = vunpack.c.l.b16 %v843
      %v883 = vunpack.c.l.b16 %v844
      %v884 = vunpack.c.l.b16 %v845
      %v885 = vunpack.c.l.b16 %v846
      %v886 = vunpack.c.l.b16 %v847
      %v887 = vunpack.c.l.b16 %v848
      %v888 = vunpack.c.l.b16 %v849
      %v889 = vunpack.c.l.b16 %v850
      %v890 = vunpack.c.l.b16 %v851
      %v891 = vunpack.c.l.b16 %v852
      %v892 = vunpack.c.l.b16 %v853
      %v893 = vunpack.c.l.b16 %v854
      %v894 = vunpack.c.l.b16 %v855
      %v895 = vpack.c.b16 %v880, %v879
      %v896 = vpack.c.b16 %v882, %v881
      %v897 = vpack.c.b16 %v884, %v883
      %v898 = vpack.c.b16 %v886, %v885
      %v899 = vpack.c.b16 %v888, %v887
      %v900 = vpack.c.b16 %v890, %v889
      %v901 = vpack.c.b16 %v892, %v891
      %v902 = vpack.c.b16 %v894, %v893
      %911 = vmatprep.subr.bf16.mxu0 0
      %912 = vmatpush1.bf16.msra.mxu0 %v895
      %913 = vmatprep.subr.bf16.mxu0 0
      %914 = vmatpush1.bf16.msra.mxu0 %v896
      %915 = vmatprep.subr.bf16.mxu0 0
      %916 = vmatpush1.bf16.msra.mxu0 %v897
      %917 = vmatprep.subr.bf16.mxu0 0
      %918 = vmatpush1.bf16.msra.mxu0 %v898
      %919 = vmatprep.subr.bf16.mxu0 0
      %920 = vmatpush1.bf16.msra.mxu0 %v899
      %921 = vmatprep.subr.bf16.mxu0 0
      %922 = vmatpush1.bf16.msra.mxu0 %v900
      %923 = vmatprep.subr.bf16.mxu0 0
      %924 = vmatpush1.bf16.msra.mxu0 %v901
      %925 = vmatprep.subr.bf16.mxu0 0
      %926 = vmatpush1.bf16.msra.mxu0 %v902
      %927 = vmatprep.subr.bf16.mxu0 0
      %928 = vmatpush1.bf16.msra.mxu0 0
      %929 = vmatprep.subr.bf16.mxu0 0
      %930 = vmatpush1.bf16.msra.mxu0 0
      %931 = vmatprep.subr.bf16.mxu0 0
      %932 = vmatpush1.bf16.msra.mxu0 0
      %933 = vmatprep.subr.bf16.mxu0 0
      %934 = vmatpush1.bf16.msra.mxu0 0
      %935 = vmatprep.subr.bf16.mxu0 0
      %936 = vmatpush1.bf16.msra.mxu0 0
      %937 = vmatprep.subr.bf16.mxu0 0
      %938 = vmatpush1.bf16.msra.mxu0 0
      %939 = vmatprep.subr.bf16.mxu0 0
      %940 = vmatpush1.bf16.msra.mxu0 0
      %941 = vmatprep.subr.bf16.mxu0 0
      %942 = vmatpush1.bf16.msra.mxu0 0
      %943 = vmatprep.mubr.bf16.mxu0 0
      %944 = vmatmul.mubr.bf16.gmra.mrb[0].mxu0 %v839
      %v945 = vpop.f32.mrb[0].mxu0
      %v946 = vadd.f32 %v861, %v945
      %v947 = vpop.f32.mrb[0].mxu0
      %v948 = vpop.f32.mrb[0].mxu0
      %v949 = vpop.f32.mrb[0].mxu0
      %950 = vdwg.mxu0
      %v951 = vmax.f32 %v946, 0.0
      %v952 = vpack.c.bf16 %v951, %v951
      %v953 = vld [vmem:[%s6] sm:$0xf]
      %v954 = vld [vmem:[%s6 + $0x4] sm:$0xf]
      %v955 = vld [vmem:[%s6 + $0x8] sm:$0xf]
      %v956 = vld [vmem:[%s6 + $0xc] sm:$0xf]
      %v957 = vld [vmem:[%s6 + $0x10] sm:$0xf]
      %v958 = vld [vmem:[%s6 + $0x14] sm:$0xf]
      %v959 = vld [vmem:[%s6 + $0x18] sm:$0xf]
      %v960 = vld [vmem:[%s6 + $0x1c] sm:$0xf]
      %v961 = vld [vmem:[%s6 + $0x20] sm:$0xf]
      %v962 = vld [vmem:[%s6 + $0x24] sm:$0xf]
      %v963 = vld [vmem:[%s6 + $0x28] sm:$0xf]
      %v964 = vld [vmem:[%s6 + $0x2c] sm:$0xf]
      %v965 = vld [vmem:[%s6 + $0x30] sm:$0xf]
      %v966 = vld [vmem:[%s6 + $0x34] sm:$0xf]
      %v967 = vld [vmem:[%s6 + $0x38] sm:$0xf]
      %v968 = vld [vmem:[%s6 + $0x3c] sm:$0xf]
      %v969 = vld [vmem:[%s7] sm:$0x1]
      %v971 = vlaneseq
      %v972 = vshrl.u32 %v971, 7
      %v973 = vsub.s32 0, %v972
      %v974 = vrot.slane %v969, %v973
      %v992 = vunpack.c.l.b16 %v953
      %v993 = vunpack.c.l.b16 %v954
      %v994 = vunpack.c.l.b16 %v955
      %v995 = vunpack.c.l.b16 %v956
      %v996 = vunpack.c.l.b16 %v957
      %v997 = vunpack.c.l.b16 %v958
      %v998 = vunpack.c.l.b16 %v959
      %v999 = vunpack.c.l.b16 %v960
      %v1000 = vunpack.c.l.b16 %v961
      %v1001 = vunpack.c.l.b16 %v962
      %v1002 = vunpack.c.l.b16 %v963
      %v1003 = vunpack.c.l.b16 %v964
      %v1004 = vunpack.c.l.b16 %v965
      %v1005 = vunpack.c.l.b16 %v966
      %v1006 = vunpack.c.l.b16 %v967
      %v1007 = vunpack.c.l.b16 %v968
      %v1008 = vpack.c.b16 %v993, %v992
      %v1009 = vpack.c.b16 %v995, %v994
      %v1010 = vpack.c.b16 %v997, %v996
      %v1011 = vpack.c.b16 %v999, %v998
      %v1012 = vpack.c.b16 %v1001, %v1000
      %v1013 = vpack.c.b16 %v1003, %v1002
      %v1014 = vpack.c.b16 %v1005, %v1004
      %v1015 = vpack.c.b16 %v1007, %v1006
      %1024 = vmatprep.subr.bf16.mxu0 0
      %1025 = vmatpush1.bf16.msra.mxu0 %v1008
      %1026 = vmatprep.subr.bf16.mxu0 0
      %1027 = vmatpush1.bf16.msra.mxu0 %v1009
      %1028 = vmatprep.subr.bf16.mxu0 0
      %1029 = vmatpush1.bf16.msra.mxu0 %v1010
      %1030 = vmatprep.subr.bf16.mxu0 0
      %1031 = vmatpush1.bf16.msra.mxu0 %v1011
      %1032 = vmatprep.subr.bf16.mxu0 0
      %1033 = vmatpush1.bf16.msra.mxu0 %v1012
      %1034 = vmatprep.subr.bf16.mxu0 0
      %1035 = vmatpush1.bf16.msra.mxu0 %v1013
      %1036 = vmatprep.subr.bf16.mxu0 0
      %1037 = vmatpush1.bf16.msra.mxu0 %v1014
      %1038 = vmatprep.subr.bf16.mxu0 0
      %1039 = vmatpush1.bf16.msra.mxu0 %v1015
      %1040 = vmatprep.subr.bf16.mxu0 0
      %1041 = vmatpush1.bf16.msra.mxu0 0
      %1042 = vmatprep.subr.bf16.mxu0 0
      %1043 = vmatpush1.bf16.msra.mxu0 0
      %1044 = vmatprep.subr.bf16.mxu0 0
      %1045 = vmatpush1.bf16.msra.mxu0 0
      %1046 = vmatprep.subr.bf16.mxu0 0
      %1047 = vmatpush1.bf16.msra.mxu0 0
      %1048 = vmatprep.subr.bf16.mxu0 0
      %1049 = vmatpush1.bf16.msra.mxu0 0
      %1050 = vmatprep.subr.bf16.mxu0 0
      %1051 = vmatpush1.bf16.msra.mxu0 0
      %1052 = vmatprep.subr.bf16.mxu0 0
      %1053 = vmatpush1.bf16.msra.mxu0 0
      %1054 = vmatprep.subr.bf16.mxu0 0
      %1055 = vmatpush1.bf16.msra.mxu0 0
      %1056 = vmatprep.mubr.bf16.mxu0 0
      %1057 = vmatmul.mubr.bf16.gmra.mrb[0].mxu0 %v952
      %v1058 = vpop.f32.mrb[0].mxu0
      %v1059 = vadd.f32 %v974, %v1058
      %v1060 = vpop.f32.mrb[0].mxu0
      %v1061 = vpop.f32.mrb[0].mxu0
      %v1062 = vpop.f32.mrb[0].mxu0
      %1063 = vdwg.mxu0
      %v1064 = vlaneseq
      %v1065 = vand.u32 %v1064, 127
      %vm1066 = vcmp.lt.s32.totalorder %v1065, 5
      %v1067 = vsel %vm1066, %v1059, -1e+30
      %1068 = vmax.xlane.f32.xlu0 %v1067
      %v1069 = vpop.xlane.xlu0 %1068
      %v1070 = vsub.f32 %v1067, %v1069
      %v1071 = vmul.f32 %v1070, 1.442695
      %v1072 = vpow.pop %v1071
      %1073 = vadd.xlane.f32.xlu0 %v1072
      %v1074 = vpop.xlane.xlu0 %1073
      %v1075 = vlog2.pop %v1074
      %v1076 = vmul.f32 %v1075, 0.6931472
      %v1077 = vsub.f32 %v1070, %v1076
      %1078 = vst [vmem:[%s8] sm:$0xff] %v1077
    $region49: #{job_classifier_gnn_forward.5} parent=44 // pred_fallthru
      _
  $region45: #{job_classifier_gnn_forward.5} parent=0 // pred_fallthru
    _
  // Predicated region
  $region50: #{job_classifier_gnn_forward.5} parent=0 // pred_check
    _
  $region51: #{job_classifier_gnn_forward.5} parent=0 // pred_check_branch
    %1080 = sbr.rel (0) target = $region53
  $region52: #{job_classifier_gnn_forward.5} parent=0 // pred_region
    _
  $region53: #{job_classifier_gnn_forward.5} parent=0 // pred_fallthru
    _
  // Predicated region
  $region54: #{job_classifier_gnn_forward.5} parent=0 // pred_check
    _
  $region55: #{job_classifier_gnn_forward.5} parent=0 // pred_check_branch
    %1082 = sbr.rel (0) target = $region57
  $region56: #{job_classifier_gnn_forward.5} parent=0 // pred_region
    _
  $region57: #{job_classifier_gnn_forward.5} parent=0 // pred_fallthru
    _

</llo_original>
